<compile_context>
chip_gen: v7x
topology: tpu7x:2x2x1
jax: 0.10.0
libtpu: 0.0.40
codegen_flags: <defaults>
</compile_context>

<pallas_src>
import jax
import jax.numpy as jnp
from jax.experimental import pallas as pl
from jax.experimental.pallas import tpu as pltpu

LEAKY_RATE = 0.1


def _pointconv_kernel(pts_ref, w1_ref, b1_ref, w2_ref, b2_ref, w3_ref, b3_ref,
                      wl_ref, bl_ref, o_ref):
    """Fused WeightNet MLP + per-point (CD,K)x(K,WN) contraction + Linear + LeakyReLU.

    pts_ref : [1, K, CD, tn]   grouped (xyz_norm ++ features), N-last (lane-dense)
    o_ref   : [1, OUT, tn]
    weights (N-last orientation): w1 [H1,3], w2 [H2,H1], w3 [WN,H2], wl [OUT, CD*WN];
    biases are column vectors [*, 1] (broadcast over lanes).
    """
    _, K, CD, tn = pts_ref.shape
    WN = w3_ref.shape[0]

    s = jnp.zeros((CD, WN, tn), jnp.float32)
    for k in range(K):                                   # static unroll, k outermost
        p_k = pts_ref[0, k].astype(jnp.float32)          # [CD, tn]
        g_k = p_k[:3, :]                                 # grouped_xyz_norm [3, tn]
        # WeightNet: Conv2d(3,H1,1)->ReLU->Conv2d(H1,H2,1)->ReLU->Conv2d(H2,WN,1)->ReLU
        h = jnp.dot(w1_ref[...], g_k, preferred_element_type=jnp.float32) + b1_ref[...]
        h = jnp.maximum(h, 0.0)
        h = jnp.dot(w2_ref[...], h, preferred_element_type=jnp.float32) + b2_ref[...]
        h = jnp.maximum(h, 0.0)
        w = jnp.dot(w3_ref[...], h, preferred_element_type=jnp.float32) + b3_ref[...]
        w = jnp.maximum(w, 0.0)                          # [WN, tn]
        # S[c, w, n] += P[k, c, n] * W[k, w, n]   (lane-dense VPU FMAs)
        s = s + p_k[:, None, :] * w[None, :, :]

    # Linear: single matmul of contraction depth CD*WN (flat index = c*WN + w,
    # matching torch .view(B, N, -1)); then LeakyReLU(0.1).
    s_flat = s.reshape(CD * WN, tn)
    out = jnp.dot(wl_ref[...], s_flat, preferred_element_type=jnp.float32) + bl_ref[...]
    o_ref[0] = jnp.where(out > 0.0, out, LEAKY_RATE * out)


def _pick_tile(n, target=512):
    """Largest power-of-two multiple of 128 that divides n (capped at target), else full n."""
    if n % 128 == 0:
        tn = 128
        while tn * 2 <= target and n % (tn * 2) == 0:
            tn *= 2
        return tn
    return n


def pointconv_pallas(new_points, w1, b1, w2, b2, w3, b3, wl, bl, *, tn=None):
    """new_points: [B, K, CD, N]  ->  [B, OUT, N] float32 (PyTorch output layout)."""
    B, K, CD, N = new_points.shape
    OUT = wl.shape[0]
    if tn is None:
        tn = _pick_tile(N)
    assert N % tn == 0

    def full(a):
        return pl.BlockSpec(a.shape, lambda b, n, _r=a.ndim: (0,) * _r)

    return pl.pallas_call(
        _pointconv_kernel,
        out_shape=jax.ShapeDtypeStruct((B, OUT, N), jnp.float32),
        grid=(B, N // tn),
        in_specs=[
            pl.BlockSpec((1, K, CD, tn), lambda b, n: (b, 0, 0, n)),
            full(w1), full(b1),
            full(w2), full(b2),
            full(w3), full(b3),
            full(wl), full(bl),
        ],
        out_specs=pl.BlockSpec((1, OUT, tn), lambda b, n: (b, 0, n)),
        compiler_params=pltpu.CompilerParams(
            dimension_semantics=("parallel", "parallel")),
    )(new_points, w1, b1, w2, b2, w3, b3, wl, bl)


def pointconv_forward(xyz, points, params, nsample, *, tn=None,
                      store_dtype=jnp.float32):
    """PointConv.forward.  xyz: [B, 3, N], points: [B, D, N] -> [B, out_channel, N].

    store_dtype=jnp.bfloat16 halves HBM traffic of the grouped tensor on v6e/v7x;
    the kernel upcasts to f32 before all compute (safe on v5e too).
    """
    # --- KNN: square_distance + topk(smallest), straight from channel-first xyz.
    # TODO(synk): topk neighbour selection and the index gather have no clean
    # Pallas equivalent; done in plain JAX glue.
    sq = jnp.sum(xyz * xyz, axis=1)                               # [B, N]
    dist = (-2.0 * jnp.einsum('bcn,bcm->bnm', xyz, xyz)
            + sq[:, :, None] + sq[:, None, :])                    # [B, N, N]
    _, idx = jax.lax.top_k(-dist, nsample)                        # [B, N, K]
    idx_kn = jnp.transpose(idx, (0, 2, 1))                        # [B, K, N] (small)

    # --- grouping, gathered directly into the kernel's [B, K, C, N] layout ---
    def gather_cf(feat_cn, idx_kn_b):                             # [C,N],[K,N]->[K,C,N]
        return jax.vmap(lambda row: feat_cn[:, row])(idx_kn_b)

    grouped_xyz = jax.vmap(gather_cf)(xyz, idx_kn)                # [B, K, 3, N]
    grouped_pts = jax.vmap(gather_cf)(points, idx_kn)             # [B, K, D, N]
    grouped_xyz_norm = grouped_xyz - xyz[:, None, :, :]           # [B, K, 3, N]
    new_points = jnp.concatenate([grouped_xyz_norm, grouped_pts], axis=2)  # [B,K,3+D,N]
    new_points = new_points.astype(store_dtype)

    return pointconv_pallas(new_points, *params, tn=tn)           # [B, OUT, N]


def pointconv_reference(xyz, points, params, nsample):
    """Pure-JAX mirror of the PyTorch forward (channel-last math) for checking."""
    w1, b1, w2, b2, w3, b3, wl, bl = params
    xyz_t = jnp.transpose(xyz, (0, 2, 1))                         # [B, N, 3]
    pts_t = jnp.transpose(points, (0, 2, 1))                      # [B, N, D]
    sq = jnp.sum(xyz_t ** 2, -1)
    dist = (-2.0 * jnp.einsum('bnc,bmc->bnm', xyz_t, xyz_t)
            + sq[:, :, None] + sq[:, None, :])
    _, idx = jax.lax.top_k(-dist, nsample)                        # [B, N, K]
    gather = jax.vmap(lambda p, i: p[i])
    gx = gather(xyz_t, idx)                                       # [B, N, K, 3]
    gp = gather(pts_t, idx)                                       # [B, N, K, D]
    gxn = gx - xyz_t[:, :, None, :]
    new_points = jnp.concatenate([gxn, gp], -1)                   # [B, N, K, CD]
    h = jnp.maximum(jnp.einsum('bnkc,hc->bnkh', gxn, w1) + b1[:, 0], 0.0)
    h = jnp.maximum(jnp.einsum('bnkh,gh->bnkg', h, w2) + b2[:, 0], 0.0)
    wts = jnp.maximum(jnp.einsum('bnkg,wg->bnkw', h, w3) + b3[:, 0], 0.0)
    s = jnp.einsum('bnkc,bnkw->bncw', new_points, wts)            # [B, N, CD, WN]
    s_flat = s.reshape(s.shape[0], s.shape[1], -1)                # [B, N, CD*WN]
    out = jnp.einsum('bnf,of->bno', s_flat, wl) + bl[:, 0]
    out = jnp.where(out > 0.0, out, LEAKY_RATE * out)
    return jnp.transpose(out, (0, 2, 1))                          # [B, OUT, N]


def init_params(key, in_channel, out_channel, weightnet=16, hidden=(8, 8)):
    """Deterministic synthetic parameters matching PointConv.__init__ shapes,
    pre-arranged to the exact in-kernel (N-last) layout: conv/linear weights stay
    [out, in], biases become column vectors, linear weight stays flat [OUT, CD*WN]."""
    h1, h2 = hidden
    k = jax.random.split(key, 8)
    w1 = jax.random.normal(k[0], (h1, 3), jnp.float32) * 0.5
    b1 = jax.random.normal(k[1], (h1,), jnp.float32) * 0.1
    w2 = jax.random.normal(k[2], (h2, h1), jnp.float32) * 0.5
    b2 = jax.random.normal(k[3], (h2,), jnp.float32) * 0.1
    w3 = jax.random.normal(k[4], (weightnet, h2), jnp.float32) * 0.5
    b3 = jax.random.normal(k[5], (weightnet,), jnp.float32) * 0.1
    wl = jax.random.normal(k[6], (out_channel, weightnet * in_channel), jnp.float32) * 0.1
    bl = jax.random.normal(k[7], (out_channel,), jnp.float32) * 0.1
    return (w1, b1[:, None], w2, b2[:, None], w3, b3[:, None], wl, bl[:, None])


if __name__ == "__main__":
    B, N, D = 2, 16, 4          # batch, points, feature channels
    nsample = 8                 # K neighbours
    in_channel = 3 + D          # PointConv in_channel (xyz_norm ++ features)
    out_channel = 32
    weightnet = 16

    key = jax.random.PRNGKey(0)
    kx, kp, kw = jax.random.split(key, 3)
    xyz = jax.random.normal(kx, (B, 3, N), jnp.float32)
    points = jax.random.normal(kp, (B, D, N), jnp.float32)
    params = init_params(kw, in_channel, out_channel, weightnet)

    out = pointconv_forward(xyz, points, params, nsample)
    out = jax.block_until_ready(out)
    assert out.shape == (B, out_channel, N), out.shape
    assert jnp.all(jnp.isfinite(out))

    ref = pointconv_reference(xyz, points, params, nsample)
    assert bool(jnp.allclose(out, ref, rtol=1e-3, atol=1e-3)), float(
        jnp.max(jnp.abs(out - ref)))
    print("KERNEL_OK")
</pallas_src>

<mosaic_0001>
module attributes {stable_mosaic.version = 11 : i64} {
  func.func @_pointconv_kernel(%arg0: i32, %arg1: i32, %arg2: memref<1x8x7x16xf32, #tpu.memory_space<vmem>>, %arg3: memref<8x3xf32, #tpu.memory_space<vmem>>, %arg4: memref<8x1xf32, #tpu.memory_space<vmem>>, %arg5: memref<8x8xf32, #tpu.memory_space<vmem>>, %arg6: memref<8x1xf32, #tpu.memory_space<vmem>>, %arg7: memref<16x8xf32, #tpu.memory_space<vmem>>, %arg8: memref<16x1xf32, #tpu.memory_space<vmem>>, %arg9: memref<32x112xf32, #tpu.memory_space<vmem>>, %arg10: memref<32x1xf32, #tpu.memory_space<vmem>>, %arg11: memref<1x32x16xf32, #tpu.memory_space<vmem>>) attributes {dimension_semantics = [#tpu.dimension_semantics<parallel>, #tpu.dimension_semantics<parallel>], iteration_bounds = array<i64: 2, 1>, scalar_prefetch = 0 : i64, scratch_operands = 0 : i64, tpu.core_type = #tpu.core_type<tc>, window_params = [{transform_indices = @transform_0, window_bounds = array<i64: 1, 8, 7, 16>}, {pipeline_mode = #tpu.pipeline_mode<synchronous>, transform_indices = @transform_1, window_bounds = array<i64: 8, 3>}, {pipeline_mode = #tpu.pipeline_mode<synchronous>, transform_indices = @transform_2, window_bounds = array<i64: 8, 1>}, {pipeline_mode = #tpu.pipeline_mode<synchronous>, transform_indices = @transform_3, window_bounds = array<i64: 8, 8>}, {pipeline_mode = #tpu.pipeline_mode<synchronous>, transform_indices = @transform_4, window_bounds = array<i64: 8, 1>}, {pipeline_mode = #tpu.pipeline_mode<synchronous>, transform_indices = @transform_5, window_bounds = array<i64: 16, 8>}, {pipeline_mode = #tpu.pipeline_mode<synchronous>, transform_indices = @transform_6, window_bounds = array<i64: 16, 1>}, {pipeline_mode = #tpu.pipeline_mode<synchronous>, transform_indices = @transform_7, window_bounds = array<i64: 32, 112>}, {pipeline_mode = #tpu.pipeline_mode<synchronous>, transform_indices = @transform_8, window_bounds = array<i64: 32, 1>}, {transform_indices = @transform_9, window_bounds = array<i64: 1, 32, 16>}]} {
    %cst = arith.constant 0.000000e+00 : f32
    %0 = vector.broadcast %cst : f32 to vector<7x16x16xf32>
    %c0 = arith.constant 0 : index
    %c0_0 = arith.constant 0 : index
    %c0_1 = arith.constant 0 : index
    %c0_2 = arith.constant 0 : index
    %1 = vector.load %arg2[%c0, %c0_0, %c0_1, %c0_2] : memref<1x8x7x16xf32, #tpu.memory_space<vmem>>, vector<1x1x7x16xf32>
    %2 = vector.shape_cast %1 : vector<1x1x7x16xf32> to vector<7x16xf32>
    %3 = vector.extract_strided_slice %2 {offsets = [0, 0], sizes = [3, 16], strides = [1, 1]} : vector<7x16xf32> to vector<3x16xf32>
    %c0_3 = arith.constant 0 : index
    %c0_4 = arith.constant 0 : index
    %4 = vector.load %arg3[%c0_3, %c0_4] : memref<8x3xf32, #tpu.memory_space<vmem>>, vector<8x3xf32>
    %cst_5 = arith.constant dense<0.000000e+00> : vector<8x16xf32>
    %5 = tpu.matmul %4, %3, %cst_5 {dimension_numbers = #tpu.dot_dimension_numbers<[1], [0], [0], [1], [0, 0, 1, 1], [], []>} : vector<8x3xf32>, vector<3x16xf32>, vector<8x16xf32> -> vector<8x16xf32>
    %c0_6 = arith.constant 0 : index
    %c0_7 = arith.constant 0 : index
    %6 = vector.load %arg4[%c0_6, %c0_7] : memref<8x1xf32, #tpu.memory_space<vmem>>, vector<8x1xf32>
    %7 = vector.broadcast %6 : vector<8x1xf32> to vector<8x16xf32>
    %8 = arith.addf %5, %7 : vector<8x16xf32>
    %cst_8 = arith.constant 0.000000e+00 : f32
    %9 = vector.broadcast %cst_8 : f32 to vector<8x16xf32>
    %10 = arith.maximumf %8, %9 : vector<8x16xf32>
    %c0_9 = arith.constant 0 : index
    %c0_10 = arith.constant 0 : index
    %11 = vector.load %arg5[%c0_9, %c0_10] : memref<8x8xf32, #tpu.memory_space<vmem>>, vector<8x8xf32>
    %cst_11 = arith.constant dense<0.000000e+00> : vector<8x16xf32>
    %12 = tpu.matmul %11, %10, %cst_11 {dimension_numbers = #tpu.dot_dimension_numbers<[1], [0], [0], [1], [0, 0, 1, 1], [], []>} : vector<8x8xf32>, vector<8x16xf32>, vector<8x16xf32> -> vector<8x16xf32>
    %c0_12 = arith.constant 0 : index
    %c0_13 = arith.constant 0 : index
    %13 = vector.load %arg6[%c0_12, %c0_13] : memref<8x1xf32, #tpu.memory_space<vmem>>, vector<8x1xf32>
    %14 = vector.broadcast %13 : vector<8x1xf32> to vector<8x16xf32>
    %15 = arith.addf %12, %14 : vector<8x16xf32>
    %cst_14 = arith.constant 0.000000e+00 : f32
    %16 = vector.broadcast %cst_14 : f32 to vector<8x16xf32>
    %17 = arith.maximumf %15, %16 : vector<8x16xf32>
    %c0_15 = arith.constant 0 : index
    %c0_16 = arith.constant 0 : index
    %18 = vector.load %arg7[%c0_15, %c0_16] : memref<16x8xf32, #tpu.memory_space<vmem>>, vector<16x8xf32>
    %cst_17 = arith.constant dense<0.000000e+00> : vector<16x16xf32>
    %19 = tpu.matmul %18, %17, %cst_17 {dimension_numbers = #tpu.dot_dimension_numbers<[1], [0], [0], [1], [0, 0, 1, 1], [], []>} : vector<16x8xf32>, vector<8x16xf32>, vector<16x16xf32> -> vector<16x16xf32>
    %c0_18 = arith.constant 0 : index
    %c0_19 = arith.constant 0 : index
    %20 = vector.load %arg8[%c0_18, %c0_19] : memref<16x1xf32, #tpu.memory_space<vmem>>, vector<16x1xf32>
    %21 = vector.broadcast %20 : vector<16x1xf32> to vector<16x16xf32>
    %22 = arith.addf %19, %21 : vector<16x16xf32>
    %cst_20 = arith.constant 0.000000e+00 : f32
    %23 = vector.broadcast %cst_20 : f32 to vector<16x16xf32>
    %24 = arith.maximumf %22, %23 : vector<16x16xf32>
    %25 = vector.shape_cast %2 : vector<7x16xf32> to vector<7x1x16xf32>
    %26 = vector.shape_cast %24 : vector<16x16xf32> to vector<1x16x16xf32>
    %27 = vector.broadcast %25 : vector<7x1x16xf32> to vector<7x16x16xf32>
    %28 = vector.broadcast %26 : vector<1x16x16xf32> to vector<7x16x16xf32>
    %29 = arith.mulf %27, %28 : vector<7x16x16xf32>
    %30 = arith.addf %0, %29 : vector<7x16x16xf32>
    %c0_21 = arith.constant 0 : index
    %c1 = arith.constant 1 : index
    %c0_22 = arith.constant 0 : index
    %c0_23 = arith.constant 0 : index
    %31 = vector.load %arg2[%c0_21, %c1, %c0_22, %c0_23] : memref<1x8x7x16xf32, #tpu.memory_space<vmem>>, vector<1x1x7x16xf32>
    %32 = vector.shape_cast %31 : vector<1x1x7x16xf32> to vector<7x16xf32>
    %33 = vector.extract_strided_slice %32 {offsets = [0, 0], sizes = [3, 16], strides = [1, 1]} : vector<7x16xf32> to vector<3x16xf32>
    %c0_24 = arith.constant 0 : index
    %c0_25 = arith.constant 0 : index
    %34 = vector.load %arg3[%c0_24, %c0_25] : memref<8x3xf32, #tpu.memory_space<vmem>>, vector<8x3xf32>
    %cst_26 = arith.constant dense<0.000000e+00> : vector<8x16xf32>
    %35 = tpu.matmul %34, %33, %cst_26 {dimension_numbers = #tpu.dot_dimension_numbers<[1], [0], [0], [1], [0, 0, 1, 1], [], []>} : vector<8x3xf32>, vector<3x16xf32>, vector<8x16xf32> -> vector<8x16xf32>
    %c0_27 = arith.constant 0 : index
    %c0_28 = arith.constant 0 : index
    %36 = vector.load %arg4[%c0_27, %c0_28] : memref<8x1xf32, #tpu.memory_space<vmem>>, vector<8x1xf32>
    %37 = vector.broadcast %36 : vector<8x1xf32> to vector<8x16xf32>
    %38 = arith.addf %35, %37 : vector<8x16xf32>
    %cst_29 = arith.constant 0.000000e+00 : f32
    %39 = vector.broadcast %cst_29 : f32 to vector<8x16xf32>
    %40 = arith.maximumf %38, %39 : vector<8x16xf32>
    %c0_30 = arith.constant 0 : index
    %c0_31 = arith.constant 0 : index
    %41 = vector.load %arg5[%c0_30, %c0_31] : memref<8x8xf32, #tpu.memory_space<vmem>>, vector<8x8xf32>
    %cst_32 = arith.constant dense<0.000000e+00> : vector<8x16xf32>
    %42 = tpu.matmul %41, %40, %cst_32 {dimension_numbers = #tpu.dot_dimension_numbers<[1], [0], [0], [1], [0, 0, 1, 1], [], []>} : vector<8x8xf32>, vector<8x16xf32>, vector<8x16xf32> -> vector<8x16xf32>
    %c0_33 = arith.constant 0 : index
    %c0_34 = arith.constant 0 : index
    %43 = vector.load %arg6[%c0_33, %c0_34] : memref<8x1xf32, #tpu.memory_space<vmem>>, vector<8x1xf32>
    %44 = vector.broadcast %43 : vector<8x1xf32> to vector<8x16xf32>
    %45 = arith.addf %42, %44 : vector<8x16xf32>
    %cst_35 = arith.constant 0.000000e+00 : f32
    %46 = vector.broadcast %cst_35 : f32 to vector<8x16xf32>
    %47 = arith.maximumf %45, %46 : vector<8x16xf32>
    %c0_36 = arith.constant 0 : index
    %c0_37 = arith.constant 0 : index
    %48 = vector.load %arg7[%c0_36, %c0_37] : memref<16x8xf32, #tpu.memory_space<vmem>>, vector<16x8xf32>
    %cst_38 = arith.constant dense<0.000000e+00> : vector<16x16xf32>
    %49 = tpu.matmul %48, %47, %cst_38 {dimension_numbers = #tpu.dot_dimension_numbers<[1], [0], [0], [1], [0, 0, 1, 1], [], []>} : vector<16x8xf32>, vector<8x16xf32>, vector<16x16xf32> -> vector<16x16xf32>
    %c0_39 = arith.constant 0 : index
    %c0_40 = arith.constant 0 : index
    %50 = vector.load %arg8[%c0_39, %c0_40] : memref<16x1xf32, #tpu.memory_space<vmem>>, vector<16x1xf32>
    %51 = vector.broadcast %50 : vector<16x1xf32> to vector<16x16xf32>
    %52 = arith.addf %49, %51 : vector<16x16xf32>
    %cst_41 = arith.constant 0.000000e+00 : f32
    %53 = vector.broadcast %cst_41 : f32 to vector<16x16xf32>
    %54 = arith.maximumf %52, %53 : vector<16x16xf32>
    %55 = vector.shape_cast %32 : vector<7x16xf32> to vector<7x1x16xf32>
    %56 = vector.shape_cast %54 : vector<16x16xf32> to vector<1x16x16xf32>
    %57 = vector.broadcast %55 : vector<7x1x16xf32> to vector<7x16x16xf32>
    %58 = vector.broadcast %56 : vector<1x16x16xf32> to vector<7x16x16xf32>
    %59 = arith.mulf %57, %58 : vector<7x16x16xf32>
    %60 = arith.addf %30, %59 : vector<7x16x16xf32>
    %c0_42 = arith.constant 0 : index
    %c2 = arith.constant 2 : index
    %c0_43 = arith.constant 0 : index
    %c0_44 = arith.constant 0 : index
    %61 = vector.load %arg2[%c0_42, %c2, %c0_43, %c0_44] : memref<1x8x7x16xf32, #tpu.memory_space<vmem>>, vector<1x1x7x16xf32>
    %62 = vector.shape_cast %61 : vector<1x1x7x16xf32> to vector<7x16xf32>
    %63 = vector.extract_strided_slice %62 {offsets = [0, 0], sizes = [3, 16], strides = [1, 1]} : vector<7x16xf32> to vector<3x16xf32>
    %c0_45 = arith.constant 0 : index
    %c0_46 = arith.constant 0 : index
    %64 = vector.load %arg3[%c0_45, %c0_46] : memref<8x3xf32, #tpu.memory_space<vmem>>, vector<8x3xf32>
    %cst_47 = arith.constant dense<0.000000e+00> : vector<8x16xf32>
    %65 = tpu.matmul %64, %63, %cst_47 {dimension_numbers = #tpu.dot_dimension_numbers<[1], [0], [0], [1], [0, 0, 1, 1], [], []>} : vector<8x3xf32>, vector<3x16xf32>, vector<8x16xf32> -> vector<8x16xf32>
    %c0_48 = arith.constant 0 : index
    %c0_49 = arith.constant 0 : index
    %66 = vector.load %arg4[%c0_48, %c0_49] : memref<8x1xf32, #tpu.memory_space<vmem>>, vector<8x1xf32>
    %67 = vector.broadcast %66 : vector<8x1xf32> to vector<8x16xf32>
    %68 = arith.addf %65, %67 : vector<8x16xf32>
    %cst_50 = arith.constant 0.000000e+00 : f32
    %69 = vector.broadcast %cst_50 : f32 to vector<8x16xf32>
    %70 = arith.maximumf %68, %69 : vector<8x16xf32>
    %c0_51 = arith.constant 0 : index
    %c0_52 = arith.constant 0 : index
    %71 = vector.load %arg5[%c0_51, %c0_52] : memref<8x8xf32, #tpu.memory_space<vmem>>, vector<8x8xf32>
    %cst_53 = arith.constant dense<0.000000e+00> : vector<8x16xf32>
    %72 = tpu.matmul %71, %70, %cst_53 {dimension_numbers = #tpu.dot_dimension_numbers<[1], [0], [0], [1], [0, 0, 1, 1], [], []>} : vector<8x8xf32>, vector<8x16xf32>, vector<8x16xf32> -> vector<8x16xf32>
    %c0_54 = arith.constant 0 : index
    %c0_55 = arith.constant 0 : index
    %73 = vector.load %arg6[%c0_54, %c0_55] : memref<8x1xf32, #tpu.memory_space<vmem>>, vector<8x1xf32>
    %74 = vector.broadcast %73 : vector<8x1xf32> to vector<8x16xf32>
    %75 = arith.addf %72, %74 : vector<8x16xf32>
    %cst_56 = arith.constant 0.000000e+00 : f32
    %76 = vector.broadcast %cst_56 : f32 to vector<8x16xf32>
    %77 = arith.maximumf %75, %76 : vector<8x16xf32>
    %c0_57 = arith.constant 0 : index
    %c0_58 = arith.constant 0 : index
    %78 = vector.load %arg7[%c0_57, %c0_58] : memref<16x8xf32, #tpu.memory_space<vmem>>, vector<16x8xf32>
    %cst_59 = arith.constant dense<0.000000e+00> : vector<16x16xf32>
    %79 = tpu.matmul %78, %77, %cst_59 {dimension_numbers = #tpu.dot_dimension_numbers<[1], [0], [0], [1], [0, 0, 1, 1], [], []>} : vector<16x8xf32>, vector<8x16xf32>, vector<16x16xf32> -> vector<16x16xf32>
    %c0_60 = arith.constant 0 : index
    %c0_61 = arith.constant 0 : index
    %80 = vector.load %arg8[%c0_60, %c0_61] : memref<16x1xf32, #tpu.memory_space<vmem>>, vector<16x1xf32>
    %81 = vector.broadcast %80 : vector<16x1xf32> to vector<16x16xf32>
    %82 = arith.addf %79, %81 : vector<16x16xf32>
    %cst_62 = arith.constant 0.000000e+00 : f32
    %83 = vector.broadcast %cst_62 : f32 to vector<16x16xf32>
    %84 = arith.maximumf %82, %83 : vector<16x16xf32>
    %85 = vector.shape_cast %62 : vector<7x16xf32> to vector<7x1x16xf32>
    %86 = vector.shape_cast %84 : vector<16x16xf32> to vector<1x16x16xf32>
    %87 = vector.broadcast %85 : vector<7x1x16xf32> to vector<7x16x16xf32>
    %88 = vector.broadcast %86 : vector<1x16x16xf32> to vector<7x16x16xf32>
    %89 = arith.mulf %87, %88 : vector<7x16x16xf32>
    %90 = arith.addf %60, %89 : vector<7x16x16xf32>
    %c0_63 = arith.constant 0 : index
    %c3 = arith.constant 3 : index
    %c0_64 = arith.constant 0 : index
    %c0_65 = arith.constant 0 : index
    %91 = vector.load %arg2[%c0_63, %c3, %c0_64, %c0_65] : memref<1x8x7x16xf32, #tpu.memory_space<vmem>>, vector<1x1x7x16xf32>
    %92 = vector.shape_cast %91 : vector<1x1x7x16xf32> to vector<7x16xf32>
    %93 = vector.extract_strided_slice %92 {offsets = [0, 0], sizes = [3, 16], strides = [1, 1]} : vector<7x16xf32> to vector<3x16xf32>
    %c0_66 = arith.constant 0 : index
    %c0_67 = arith.constant 0 : index
    %94 = vector.load %arg3[%c0_66, %c0_67] : memref<8x3xf32, #tpu.memory_space<vmem>>, vector<8x3xf32>
    %cst_68 = arith.constant dense<0.000000e+00> : vector<8x16xf32>
    %95 = tpu.matmul %94, %93, %cst_68 {dimension_numbers = #tpu.dot_dimension_numbers<[1], [0], [0], [1], [0, 0, 1, 1], [], []>} : vector<8x3xf32>, vector<3x16xf32>, vector<8x16xf32> -> vector<8x16xf32>
    %c0_69 = arith.constant 0 : index
    %c0_70 = arith.constant 0 : index
    %96 = vector.load %arg4[%c0_69, %c0_70] : memref<8x1xf32, #tpu.memory_space<vmem>>, vector<8x1xf32>
    %97 = vector.broadcast %96 : vector<8x1xf32> to vector<8x16xf32>
    %98 = arith.addf %95, %97 : vector<8x16xf32>
    %cst_71 = arith.constant 0.000000e+00 : f32
    %99 = vector.broadcast %cst_71 : f32 to vector<8x16xf32>
    %100 = arith.maximumf %98, %99 : vector<8x16xf32>
    %c0_72 = arith.constant 0 : index
    %c0_73 = arith.constant 0 : index
    %101 = vector.load %arg5[%c0_72, %c0_73] : memref<8x8xf32, #tpu.memory_space<vmem>>, vector<8x8xf32>
    %cst_74 = arith.constant dense<0.000000e+00> : vector<8x16xf32>
    %102 = tpu.matmul %101, %100, %cst_74 {dimension_numbers = #tpu.dot_dimension_numbers<[1], [0], [0], [1], [0, 0, 1, 1], [], []>} : vector<8x8xf32>, vector<8x16xf32>, vector<8x16xf32> -> vector<8x16xf32>
    %c0_75 = arith.constant 0 : index
    %c0_76 = arith.constant 0 : index
    %103 = vector.load %arg6[%c0_75, %c0_76] : memref<8x1xf32, #tpu.memory_space<vmem>>, vector<8x1xf32>
    %104 = vector.broadcast %103 : vector<8x1xf32> to vector<8x16xf32>
    %105 = arith.addf %102, %104 : vector<8x16xf32>
    %cst_77 = arith.constant 0.000000e+00 : f32
    %106 = vector.broadcast %cst_77 : f32 to vector<8x16xf32>
    %107 = arith.maximumf %105, %106 : vector<8x16xf32>
    %c0_78 = arith.constant 0 : index
    %c0_79 = arith.constant 0 : index
    %108 = vector.load %arg7[%c0_78, %c0_79] : memref<16x8xf32, #tpu.memory_space<vmem>>, vector<16x8xf32>
    %cst_80 = arith.constant dense<0.000000e+00> : vector<16x16xf32>
    %109 = tpu.matmul %108, %107, %cst_80 {dimension_numbers = #tpu.dot_dimension_numbers<[1], [0], [0], [1], [0, 0, 1, 1], [], []>} : vector<16x8xf32>, vector<8x16xf32>, vector<16x16xf32> -> vector<16x16xf32>
    %c0_81 = arith.constant 0 : index
    %c0_82 = arith.constant 0 : index
    %110 = vector.load %arg8[%c0_81, %c0_82] : memref<16x1xf32, #tpu.memory_space<vmem>>, vector<16x1xf32>
    %111 = vector.broadcast %110 : vector<16x1xf32> to vector<16x16xf32>
    %112 = arith.addf %109, %111 : vector<16x16xf32>
    %cst_83 = arith.constant 0.000000e+00 : f32
    %113 = vector.broadcast %cst_83 : f32 to vector<16x16xf32>
    %114 = arith.maximumf %112, %113 : vector<16x16xf32>
    %115 = vector.shape_cast %92 : vector<7x16xf32> to vector<7x1x16xf32>
    %116 = vector.shape_cast %114 : vector<16x16xf32> to vector<1x16x16xf32>
    %117 = vector.broadcast %115 : vector<7x1x16xf32> to vector<7x16x16xf32>
    %118 = vector.broadcast %116 : vector<1x16x16xf32> to vector<7x16x16xf32>
    %119 = arith.mulf %117, %118 : vector<7x16x16xf32>
    %120 = arith.addf %90, %119 : vector<7x16x16xf32>
    %c0_84 = arith.constant 0 : index
    %c4 = arith.constant 4 : index
    %c0_85 = arith.constant 0 : index
    %c0_86 = arith.constant 0 : index
    %121 = vector.load %arg2[%c0_84, %c4, %c0_85, %c0_86] : memref<1x8x7x16xf32, #tpu.memory_space<vmem>>, vector<1x1x7x16xf32>
    %122 = vector.shape_cast %121 : vector<1x1x7x16xf32> to vector<7x16xf32>
    %123 = vector.extract_strided_slice %122 {offsets = [0, 0], sizes = [3, 16], strides = [1, 1]} : vector<7x16xf32> to vector<3x16xf32>
    %c0_87 = arith.constant 0 : index
    %c0_88 = arith.constant 0 : index
    %124 = vector.load %arg3[%c0_87, %c0_88] : memref<8x3xf32, #tpu.memory_space<vmem>>, vector<8x3xf32>
    %cst_89 = arith.constant dense<0.000000e+00> : vector<8x16xf32>
    %125 = tpu.matmul %124, %123, %cst_89 {dimension_numbers = #tpu.dot_dimension_numbers<[1], [0], [0], [1], [0, 0, 1, 1], [], []>} : vector<8x3xf32>, vector<3x16xf32>, vector<8x16xf32> -> vector<8x16xf32>
    %c0_90 = arith.constant 0 : index
    %c0_91 = arith.constant 0 : index
    %126 = vector.load %arg4[%c0_90, %c0_91] : memref<8x1xf32, #tpu.memory_space<vmem>>, vector<8x1xf32>
    %127 = vector.broadcast %126 : vector<8x1xf32> to vector<8x16xf32>
    %128 = arith.addf %125, %127 : vector<8x16xf32>
    %cst_92 = arith.constant 0.000000e+00 : f32
    %129 = vector.broadcast %cst_92 : f32 to vector<8x16xf32>
    %130 = arith.maximumf %128, %129 : vector<8x16xf32>
    %c0_93 = arith.constant 0 : index
    %c0_94 = arith.constant 0 : index
    %131 = vector.load %arg5[%c0_93, %c0_94] : memref<8x8xf32, #tpu.memory_space<vmem>>, vector<8x8xf32>
    %cst_95 = arith.constant dense<0.000000e+00> : vector<8x16xf32>
    %132 = tpu.matmul %131, %130, %cst_95 {dimension_numbers = #tpu.dot_dimension_numbers<[1], [0], [0], [1], [0, 0, 1, 1], [], []>} : vector<8x8xf32>, vector<8x16xf32>, vector<8x16xf32> -> vector<8x16xf32>
    %c0_96 = arith.constant 0 : index
    %c0_97 = arith.constant 0 : index
    %133 = vector.load %arg6[%c0_96, %c0_97] : memref<8x1xf32, #tpu.memory_space<vmem>>, vector<8x1xf32>
    %134 = vector.broadcast %133 : vector<8x1xf32> to vector<8x16xf32>
    %135 = arith.addf %132, %134 : vector<8x16xf32>
    %cst_98 = arith.constant 0.000000e+00 : f32
    %136 = vector.broadcast %cst_98 : f32 to vector<8x16xf32>
    %137 = arith.maximumf %135, %136 : vector<8x16xf32>
    %c0_99 = arith.constant 0 : index
    %c0_100 = arith.constant 0 : index
    %138 = vector.load %arg7[%c0_99, %c0_100] : memref<16x8xf32, #tpu.memory_space<vmem>>, vector<16x8xf32>
    %cst_101 = arith.constant dense<0.000000e+00> : vector<16x16xf32>
    %139 = tpu.matmul %138, %137, %cst_101 {dimension_numbers = #tpu.dot_dimension_numbers<[1], [0], [0], [1], [0, 0, 1, 1], [], []>} : vector<16x8xf32>, vector<8x16xf32>, vector<16x16xf32> -> vector<16x16xf32>
    %c0_102 = arith.constant 0 : index
    %c0_103 = arith.constant 0 : index
    %140 = vector.load %arg8[%c0_102, %c0_103] : memref<16x1xf32, #tpu.memory_space<vmem>>, vector<16x1xf32>
    %141 = vector.broadcast %140 : vector<16x1xf32> to vector<16x16xf32>
    %142 = arith.addf %139, %141 : vector<16x16xf32>
    %cst_104 = arith.constant 0.000000e+00 : f32
    %143 = vector.broadcast %cst_104 : f32 to vector<16x16xf32>
    %144 = arith.maximumf %142, %143 : vector<16x16xf32>
    %145 = vector.shape_cast %122 : vector<7x16xf32> to vector<7x1x16xf32>
    %146 = vector.shape_cast %144 : vector<16x16xf32> to vector<1x16x16xf32>
    %147 = vector.broadcast %145 : vector<7x1x16xf32> to vector<7x16x16xf32>
    %148 = vector.broadcast %146 : vector<1x16x16xf32> to vector<7x16x16xf32>
    %149 = arith.mulf %147, %148 : vector<7x16x16xf32>
    %150 = arith.addf %120, %149 : vector<7x16x16xf32>
    %c0_105 = arith.constant 0 : index
    %c5 = arith.constant 5 : index
    %c0_106 = arith.constant 0 : index
    %c0_107 = arith.constant 0 : index
    %151 = vector.load %arg2[%c0_105, %c5, %c0_106, %c0_107] : memref<1x8x7x16xf32, #tpu.memory_space<vmem>>, vector<1x1x7x16xf32>
    %152 = vector.shape_cast %151 : vector<1x1x7x16xf32> to vector<7x16xf32>
    %153 = vector.extract_strided_slice %152 {offsets = [0, 0], sizes = [3, 16], strides = [1, 1]} : vector<7x16xf32> to vector<3x16xf32>
    %c0_108 = arith.constant 0 : index
    %c0_109 = arith.constant 0 : index
    %154 = vector.load %arg3[%c0_108, %c0_109] : memref<8x3xf32, #tpu.memory_space<vmem>>, vector<8x3xf32>
    %cst_110 = arith.constant dense<0.000000e+00> : vector<8x16xf32>
    %155 = tpu.matmul %154, %153, %cst_110 {dimension_numbers = #tpu.dot_dimension_numbers<[1], [0], [0], [1], [0, 0, 1, 1], [], []>} : vector<8x3xf32>, vector<3x16xf32>, vector<8x16xf32> -> vector<8x16xf32>
    %c0_111 = arith.constant 0 : index
    %c0_112 = arith.constant 0 : index
    %156 = vector.load %arg4[%c0_111, %c0_112] : memref<8x1xf32, #tpu.memory_space<vmem>>, vector<8x1xf32>
    %157 = vector.broadcast %156 : vector<8x1xf32> to vector<8x16xf32>
    %158 = arith.addf %155, %157 : vector<8x16xf32>
    %cst_113 = arith.constant 0.000000e+00 : f32
    %159 = vector.broadcast %cst_113 : f32 to vector<8x16xf32>
    %160 = arith.maximumf %158, %159 : vector<8x16xf32>
    %c0_114 = arith.constant 0 : index
    %c0_115 = arith.constant 0 : index
    %161 = vector.load %arg5[%c0_114, %c0_115] : memref<8x8xf32, #tpu.memory_space<vmem>>, vector<8x8xf32>
    %cst_116 = arith.constant dense<0.000000e+00> : vector<8x16xf32>
    %162 = tpu.matmul %161, %160, %cst_116 {dimension_numbers = #tpu.dot_dimension_numbers<[1], [0], [0], [1], [0, 0, 1, 1], [], []>} : vector<8x8xf32>, vector<8x16xf32>, vector<8x16xf32> -> vector<8x16xf32>
    %c0_117 = arith.constant 0 : index
    %c0_118 = arith.constant 0 : index
    %163 = vector.load %arg6[%c0_117, %c0_118] : memref<8x1xf32, #tpu.memory_space<vmem>>, vector<8x1xf32>
    %164 = vector.broadcast %163 : vector<8x1xf32> to vector<8x16xf32>
    %165 = arith.addf %162, %164 : vector<8x16xf32>
    %cst_119 = arith.constant 0.000000e+00 : f32
    %166 = vector.broadcast %cst_119 : f32 to vector<8x16xf32>
    %167 = arith.maximumf %165, %166 : vector<8x16xf32>
    %c0_120 = arith.constant 0 : index
    %c0_121 = arith.constant 0 : index
    %168 = vector.load %arg7[%c0_120, %c0_121] : memref<16x8xf32, #tpu.memory_space<vmem>>, vector<16x8xf32>
    %cst_122 = arith.constant dense<0.000000e+00> : vector<16x16xf32>
    %169 = tpu.matmul %168, %167, %cst_122 {dimension_numbers = #tpu.dot_dimension_numbers<[1], [0], [0], [1], [0, 0, 1, 1], [], []>} : vector<16x8xf32>, vector<8x16xf32>, vector<16x16xf32> -> vector<16x16xf32>
    %c0_123 = arith.constant 0 : index
    %c0_124 = arith.constant 0 : index
    %170 = vector.load %arg8[%c0_123, %c0_124] : memref<16x1xf32, #tpu.memory_space<vmem>>, vector<16x1xf32>
    %171 = vector.broadcast %170 : vector<16x1xf32> to vector<16x16xf32>
    %172 = arith.addf %169, %171 : vector<16x16xf32>
    %cst_125 = arith.constant 0.000000e+00 : f32
    %173 = vector.broadcast %cst_125 : f32 to vector<16x16xf32>
    %174 = arith.maximumf %172, %173 : vector<16x16xf32>
    %175 = vector.shape_cast %152 : vector<7x16xf32> to vector<7x1x16xf32>
    %176 = vector.shape_cast %174 : vector<16x16xf32> to vector<1x16x16xf32>
    %177 = vector.broadcast %175 : vector<7x1x16xf32> to vector<7x16x16xf32>
    %178 = vector.broadcast %176 : vector<1x16x16xf32> to vector<7x16x16xf32>
    %179 = arith.mulf %177, %178 : vector<7x16x16xf32>
    %180 = arith.addf %150, %179 : vector<7x16x16xf32>
    %c0_126 = arith.constant 0 : index
    %c6 = arith.constant 6 : index
    %c0_127 = arith.constant 0 : index
    %c0_128 = arith.constant 0 : index
    %181 = vector.load %arg2[%c0_126, %c6, %c0_127, %c0_128] : memref<1x8x7x16xf32, #tpu.memory_space<vmem>>, vector<1x1x7x16xf32>
    %182 = vector.shape_cast %181 : vector<1x1x7x16xf32> to vector<7x16xf32>
    %183 = vector.extract_strided_slice %182 {offsets = [0, 0], sizes = [3, 16], strides = [1, 1]} : vector<7x16xf32> to vector<3x16xf32>
    %c0_129 = arith.constant 0 : index
    %c0_130 = arith.constant 0 : index
    %184 = vector.load %arg3[%c0_129, %c0_130] : memref<8x3xf32, #tpu.memory_space<vmem>>, vector<8x3xf32>
    %cst_131 = arith.constant dense<0.000000e+00> : vector<8x16xf32>
    %185 = tpu.matmul %184, %183, %cst_131 {dimension_numbers = #tpu.dot_dimension_numbers<[1], [0], [0], [1], [0, 0, 1, 1], [], []>} : vector<8x3xf32>, vector<3x16xf32>, vector<8x16xf32> -> vector<8x16xf32>
    %c0_132 = arith.constant 0 : index
    %c0_133 = arith.constant 0 : index
    %186 = vector.load %arg4[%c0_132, %c0_133] : memref<8x1xf32, #tpu.memory_space<vmem>>, vector<8x1xf32>
    %187 = vector.broadcast %186 : vector<8x1xf32> to vector<8x16xf32>
    %188 = arith.addf %185, %187 : vector<8x16xf32>
    %cst_134 = arith.constant 0.000000e+00 : f32
    %189 = vector.broadcast %cst_134 : f32 to vector<8x16xf32>
    %190 = arith.maximumf %188, %189 : vector<8x16xf32>
    %c0_135 = arith.constant 0 : index
    %c0_136 = arith.constant 0 : index
    %191 = vector.load %arg5[%c0_135, %c0_136] : memref<8x8xf32, #tpu.memory_space<vmem>>, vector<8x8xf32>
    %cst_137 = arith.constant dense<0.000000e+00> : vector<8x16xf32>
    %192 = tpu.matmul %191, %190, %cst_137 {dimension_numbers = #tpu.dot_dimension_numbers<[1], [0], [0], [1], [0, 0, 1, 1], [], []>} : vector<8x8xf32>, vector<8x16xf32>, vector<8x16xf32> -> vector<8x16xf32>
    %c0_138 = arith.constant 0 : index
    %c0_139 = arith.constant 0 : index
    %193 = vector.load %arg6[%c0_138, %c0_139] : memref<8x1xf32, #tpu.memory_space<vmem>>, vector<8x1xf32>
    %194 = vector.broadcast %193 : vector<8x1xf32> to vector<8x16xf32>
    %195 = arith.addf %192, %194 : vector<8x16xf32>
    %cst_140 = arith.constant 0.000000e+00 : f32
    %196 = vector.broadcast %cst_140 : f32 to vector<8x16xf32>
    %197 = arith.maximumf %195, %196 : vector<8x16xf32>
    %c0_141 = arith.constant 0 : index
    %c0_142 = arith.constant 0 : index
    %198 = vector.load %arg7[%c0_141, %c0_142] : memref<16x8xf32, #tpu.memory_space<vmem>>, vector<16x8xf32>
    %cst_143 = arith.constant dense<0.000000e+00> : vector<16x16xf32>
    %199 = tpu.matmul %198, %197, %cst_143 {dimension_numbers = #tpu.dot_dimension_numbers<[1], [0], [0], [1], [0, 0, 1, 1], [], []>} : vector<16x8xf32>, vector<8x16xf32>, vector<16x16xf32> -> vector<16x16xf32>
    %c0_144 = arith.constant 0 : index
    %c0_145 = arith.constant 0 : index
    %200 = vector.load %arg8[%c0_144, %c0_145] : memref<16x1xf32, #tpu.memory_space<vmem>>, vector<16x1xf32>
    %201 = vector.broadcast %200 : vector<16x1xf32> to vector<16x16xf32>
    %202 = arith.addf %199, %201 : vector<16x16xf32>
    %cst_146 = arith.constant 0.000000e+00 : f32
    %203 = vector.broadcast %cst_146 : f32 to vector<16x16xf32>
    %204 = arith.maximumf %202, %203 : vector<16x16xf32>
    %205 = vector.shape_cast %182 : vector<7x16xf32> to vector<7x1x16xf32>
    %206 = vector.shape_cast %204 : vector<16x16xf32> to vector<1x16x16xf32>
    %207 = vector.broadcast %205 : vector<7x1x16xf32> to vector<7x16x16xf32>
    %208 = vector.broadcast %206 : vector<1x16x16xf32> to vector<7x16x16xf32>
    %209 = arith.mulf %207, %208 : vector<7x16x16xf32>
    %210 = arith.addf %180, %209 : vector<7x16x16xf32>
    %c0_147 = arith.constant 0 : index
    %c7 = arith.constant 7 : index
    %c0_148 = arith.constant 0 : index
    %c0_149 = arith.constant 0 : index
    %211 = vector.load %arg2[%c0_147, %c7, %c0_148, %c0_149] : memref<1x8x7x16xf32, #tpu.memory_space<vmem>>, vector<1x1x7x16xf32>
    %212 = vector.shape_cast %211 : vector<1x1x7x16xf32> to vector<7x16xf32>
    %213 = vector.extract_strided_slice %212 {offsets = [0, 0], sizes = [3, 16], strides = [1, 1]} : vector<7x16xf32> to vector<3x16xf32>
    %c0_150 = arith.constant 0 : index
    %c0_151 = arith.constant 0 : index
    %214 = vector.load %arg3[%c0_150, %c0_151] : memref<8x3xf32, #tpu.memory_space<vmem>>, vector<8x3xf32>
    %cst_152 = arith.constant dense<0.000000e+00> : vector<8x16xf32>
    %215 = tpu.matmul %214, %213, %cst_152 {dimension_numbers = #tpu.dot_dimension_numbers<[1], [0], [0], [1], [0, 0, 1, 1], [], []>} : vector<8x3xf32>, vector<3x16xf32>, vector<8x16xf32> -> vector<8x16xf32>
    %c0_153 = arith.constant 0 : index
    %c0_154 = arith.constant 0 : index
    %216 = vector.load %arg4[%c0_153, %c0_154] : memref<8x1xf32, #tpu.memory_space<vmem>>, vector<8x1xf32>
    %217 = vector.broadcast %216 : vector<8x1xf32> to vector<8x16xf32>
    %218 = arith.addf %215, %217 : vector<8x16xf32>
    %cst_155 = arith.constant 0.000000e+00 : f32
    %219 = vector.broadcast %cst_155 : f32 to vector<8x16xf32>
    %220 = arith.maximumf %218, %219 : vector<8x16xf32>
    %c0_156 = arith.constant 0 : index
    %c0_157 = arith.constant 0 : index
    %221 = vector.load %arg5[%c0_156, %c0_157] : memref<8x8xf32, #tpu.memory_space<vmem>>, vector<8x8xf32>
    %cst_158 = arith.constant dense<0.000000e+00> : vector<8x16xf32>
    %222 = tpu.matmul %221, %220, %cst_158 {dimension_numbers = #tpu.dot_dimension_numbers<[1], [0], [0], [1], [0, 0, 1, 1], [], []>} : vector<8x8xf32>, vector<8x16xf32>, vector<8x16xf32> -> vector<8x16xf32>
    %c0_159 = arith.constant 0 : index
    %c0_160 = arith.constant 0 : index
    %223 = vector.load %arg6[%c0_159, %c0_160] : memref<8x1xf32, #tpu.memory_space<vmem>>, vector<8x1xf32>
    %224 = vector.broadcast %223 : vector<8x1xf32> to vector<8x16xf32>
    %225 = arith.addf %222, %224 : vector<8x16xf32>
    %cst_161 = arith.constant 0.000000e+00 : f32
    %226 = vector.broadcast %cst_161 : f32 to vector<8x16xf32>
    %227 = arith.maximumf %225, %226 : vector<8x16xf32>
    %c0_162 = arith.constant 0 : index
    %c0_163 = arith.constant 0 : index
    %228 = vector.load %arg7[%c0_162, %c0_163] : memref<16x8xf32, #tpu.memory_space<vmem>>, vector<16x8xf32>
    %cst_164 = arith.constant dense<0.000000e+00> : vector<16x16xf32>
    %229 = tpu.matmul %228, %227, %cst_164 {dimension_numbers = #tpu.dot_dimension_numbers<[1], [0], [0], [1], [0, 0, 1, 1], [], []>} : vector<16x8xf32>, vector<8x16xf32>, vector<16x16xf32> -> vector<16x16xf32>
    %c0_165 = arith.constant 0 : index
    %c0_166 = arith.constant 0 : index
    %230 = vector.load %arg8[%c0_165, %c0_166] : memref<16x1xf32, #tpu.memory_space<vmem>>, vector<16x1xf32>
    %231 = vector.broadcast %230 : vector<16x1xf32> to vector<16x16xf32>
    %232 = arith.addf %229, %231 : vector<16x16xf32>
    %cst_167 = arith.constant 0.000000e+00 : f32
    %233 = vector.broadcast %cst_167 : f32 to vector<16x16xf32>
    %234 = arith.maximumf %232, %233 : vector<16x16xf32>
    %235 = vector.shape_cast %212 : vector<7x16xf32> to vector<7x1x16xf32>
    %236 = vector.shape_cast %234 : vector<16x16xf32> to vector<1x16x16xf32>
    %237 = vector.broadcast %235 : vector<7x1x16xf32> to vector<7x16x16xf32>
    %238 = vector.broadcast %236 : vector<1x16x16xf32> to vector<7x16x16xf32>
    %239 = arith.mulf %237, %238 : vector<7x16x16xf32>
    %240 = arith.addf %210, %239 : vector<7x16x16xf32>
    %241 = vector.shape_cast %240 : vector<7x16x16xf32> to vector<112x16xf32>
    %c0_168 = arith.constant 0 : index
    %c0_169 = arith.constant 0 : index
    %242 = vector.load %arg9[%c0_168, %c0_169] : memref<32x112xf32, #tpu.memory_space<vmem>>, vector<32x112xf32>
    %cst_170 = arith.constant dense<0.000000e+00> : vector<32x16xf32>
    %243 = tpu.matmul %242, %241, %cst_170 {dimension_numbers = #tpu.dot_dimension_numbers<[1], [0], [0], [1], [0, 0, 1, 1], [], []>} : vector<32x112xf32>, vector<112x16xf32>, vector<32x16xf32> -> vector<32x16xf32>
    %c0_171 = arith.constant 0 : index
    %c0_172 = arith.constant 0 : index
    %244 = vector.load %arg10[%c0_171, %c0_172] : memref<32x1xf32, #tpu.memory_space<vmem>>, vector<32x1xf32>
    %245 = vector.broadcast %244 : vector<32x1xf32> to vector<32x16xf32>
    %246 = arith.addf %243, %245 : vector<32x16xf32>
    %cst_173 = arith.constant 0.000000e+00 : f32
    %247 = vector.broadcast %cst_173 : f32 to vector<32x16xf32>
    %248 = arith.cmpf ogt, %246, %247 : vector<32x16xf32>
    %cst_174 = arith.constant 1.000000e-01 : f32
    %249 = vector.broadcast %cst_174 : f32 to vector<32x16xf32>
    %250 = arith.mulf %249, %246 : vector<32x16xf32>
    %251 = arith.select %248, %246, %250 : vector<32x16xi1>, vector<32x16xf32>
    %c0_175 = arith.constant 0 : index
    %c0_176 = arith.constant 0 : index
    %c0_177 = arith.constant 0 : index
    %252 = vector.load %arg11[%c0_175, %c0_176, %c0_177] : memref<1x32x16xf32, #tpu.memory_space<vmem>>, vector<1x32x16xf32>
    %253 = vector.shape_cast %252 : vector<1x32x16xf32> to vector<32x16xf32>
    %254 = vector.shape_cast %251 : vector<32x16xf32> to vector<1x32x16xf32>
    tpu.vector_store %arg11[%c0_175, %c0_176, %c0_177], %254 {strides = array<i32>} : memref<1x32x16xf32, #tpu.memory_space<vmem>>, vector<1x32x16xf32>,
    return
  }
  func.func @transform_0(%arg0: i32, %arg1: i32) -> (i32, i32, i32, i32) {
    %c0_i32 = arith.constant 0 : i32
    %c0_i32_0 = arith.constant 0 : i32
    %c0_i32_1 = arith.constant 0 : i32
    return %arg0, %c0_i32, %c0_i32_0, %arg1 : i32, i32, i32, i32
  }
  func.func @transform_1(%arg0: i32, %arg1: i32) -> (i32, i32) {
    %c0_i32 = arith.constant 0 : i32
    %c0_i32_0 = arith.constant 0 : i32
    %c0_i32_1 = arith.constant 0 : i32
    return %c0_i32, %c0_i32_0 : i32, i32
  }
  func.func @transform_2(%arg0: i32, %arg1: i32) -> (i32, i32) {
    %c0_i32 = arith.constant 0 : i32
    %c0_i32_0 = arith.constant 0 : i32
    %c0_i32_1 = arith.constant 0 : i32
    return %c0_i32, %c0_i32_0 : i32, i32
  }
  func.func @transform_3(%arg0: i32, %arg1: i32) -> (i32, i32) {
    %c0_i32 = arith.constant 0 : i32
    %c0_i32_0 = arith.constant 0 : i32
    %c0_i32_1 = arith.constant 0 : i32
    return %c0_i32, %c0_i32_0 : i32, i32
  }
  func.func @transform_4(%arg0: i32, %arg1: i32) -> (i32, i32) {
    %c0_i32 = arith.constant 0 : i32
    %c0_i32_0 = arith.constant 0 : i32
    %c0_i32_1 = arith.constant 0 : i32
    return %c0_i32, %c0_i32_0 : i32, i32
  }
  func.func @transform_5(%arg0: i32, %arg1: i32) -> (i32, i32) {
    %c0_i32 = arith.constant 0 : i32
    %c0_i32_0 = arith.constant 0 : i32
    %c0_i32_1 = arith.constant 0 : i32
    return %c0_i32, %c0_i32_0 : i32, i32
  }
  func.func @transform_6(%arg0: i32, %arg1: i32) -> (i32, i32) {
    %c0_i32 = arith.constant 0 : i32
    %c0_i32_0 = arith.constant 0 : i32
    %c0_i32_1 = arith.constant 0 : i32
    return %c0_i32, %c0_i32_0 : i32, i32
  }
  func.func @transform_7(%arg0: i32, %arg1: i32) -> (i32, i32) {
    %c0_i32 = arith.constant 0 : i32
    %c0_i32_0 = arith.constant 0 : i32
    %c0_i32_1 = arith.constant 0 : i32
    return %c0_i32, %c0_i32_0 : i32, i32
  }
  func.func @transform_8(%arg0: i32, %arg1: i32) -> (i32, i32) {
    %c0_i32 = arith.constant 0 : i32
    %c0_i32_0 = arith.constant 0 : i32
    %c0_i32_1 = arith.constant 0 : i32
    return %c0_i32, %c0_i32_0 : i32, i32
  }
  func.func @transform_9(%arg0: i32, %arg1: i32) -> (i32, i32, i32) {
    %c0_i32 = arith.constant 0 : i32
    %c0_i32_0 = arith.constant 0 : i32
    return %arg0, %c0_i32, %arg1 : i32, i32, i32
  }
}

</mosaic_0001>

<llo_original>
// kernel: tpu_custom_call.1
$region0: #{tpu_custom_call.1}
  #allocation0 [shape = 'u32[]', space=smem, size = 0x4, offset = 0x4, fixed_abs, tag = 'smem constant byte address 0x4 - core index']
  #allocation1 [shape = 'u32[144,128]{1,0:T(1,128)}', space=vmem, size = 0x12000, scoped, tag = 'internal scratch']
  %s0 = inlined_call_operand.vmem [shape: f32[2,8,7,16], index: 0, kind: input, shape index: {}]
  %s1 = inlined_call_operand.vmem [shape: f32[8,3], index: 1, kind: input, shape index: {}]
  %s2 = inlined_call_operand.vmem [shape: f32[8,1], index: 2, kind: input, shape index: {}]
  %s3 = inlined_call_operand.vmem [shape: f32[8,8], index: 3, kind: input, shape index: {}]
  %s4 = inlined_call_operand.vmem [shape: f32[8,1], index: 4, kind: input, shape index: {}]
  %s5 = inlined_call_operand.vmem [shape: f32[16,8], index: 5, kind: input, shape index: {}]
  %s6 = inlined_call_operand.vmem [shape: f32[16,1], index: 6, kind: input, shape index: {}]
  %s7 = inlined_call_operand.vmem [shape: f32[32,112], index: 7, kind: input, shape index: {}]
  %s8 = inlined_call_operand.vmem [shape: f32[32,1], index: 8, kind: input, shape index: {}]
  %s9 = inlined_call_operand.vmem [shape: f32[2,32,16], index: 9, kind: output, shape index: {}]
  %s10 = sld [smem:[#allocation0]]
  $region69: #{tpu_custom_call.1} parent=0
    _
  %s12 = ssub.s32 1, %s10
  %s13 = scalar_select 0, %s12, %s10
  loop: start=0, step=1, limit=4
  $region2: #{tpu_custom_call.1} parent=0 // loop_pre_header
    _
  $region3: #{tpu_custom_call.1} parent=0 // loop_header
    %s15 = sphi 0, %s19
    %p16 = scmp.ge.s32.totalorder %s15, 4
    %s22 = sphi 0, %s34
    %s23 = sphi 0, %s30
    %s24 = sphi 0, %s22
    %s25 = sphi 0, %s23
    %s26 = sphi 0, %s24
    %s27 = sphi 0, %s25
    %s39 = sphi 0, %s41
    %s42 = sphi 0, %s39
    %s43 = sphi 0, %s42
    %s59 = sphi 0, %s43
    %s63 = sphi 0, %s63
    %s65 = sphi 0, %s63
    %s66 = sphi 0, %s65
    %s80 = sphi 0, %s66
    %s84 = sphi 0, %s84
    %s86 = sphi 0, %s84
    %s87 = sphi 0, %s86
    %s101 = sphi 0, %s87
    %s105 = sphi 0, %s105
    %s107 = sphi 0, %s105
    %s108 = sphi 0, %s107
    %s122 = sphi 0, %s108
    %s126 = sphi 0, %s126
    %s128 = sphi 0, %s126
    %s129 = sphi 0, %s128
    %s143 = sphi 0, %s129
    %s147 = sphi 0, %s147
    %s149 = sphi 0, %s147
    %s150 = sphi 0, %s149
    %s164 = sphi 0, %s150
    %s168 = sphi 0, %s168
    %s170 = sphi 0, %s168
    %s171 = sphi 0, %s170
    %s185 = sphi 0, %s171
    %s189 = sphi 0, %s189
    %s191 = sphi 0, %s189
    %s192 = sphi 0, %s191
    %s206 = sphi 0, %s192
    %s210 = sphi 0, %s210
    %s212 = sphi 0, %s210
    %s213 = sphi 0, %s212
    %s227 = sphi 0, %s213
    %s235 = sphi 0, %s237
    %s238 = sphi 0, %s235
    %s239 = sphi 0, %s238
    %s255 = sphi 0, %s239
  $region4: #{tpu_custom_call.1} parent=0 // loop_header_branch
    %18 = sbr.rel (%p16) target = $region8
  $region5: #{tpu_custom_call.1} parent=0 // loop_body
    %s20 = ssub.s32 %s15, 1
    %s21 = ssub.s32 %s15, 2
    %s28 = sadd.s32 1, %s23
    %p29 = scmp.ge.s32.totalorder %s28, 1
    %s30 = scalar_select %p29, 0, %s28
    %s31 = sadd.s32 1, %s22
    %s32 = scalar_select %p29, %s31, %s22
    %p33 = scmp.ge.s32.totalorder %s32, 2
    %s34 = scalar_select %p33, 0, %s32
    %s35 = ssub.s32 %s22, %s34
    %s36 = ssub.s32 %s23, %s30
    %s37 = sor.u32 %s35, %s36
    %p38 = scmp.eq.s32.totalorder %s37, 0
    %s40 = sadd.s32 %s39, 1
    %s41 = scalar_select %p38, %s39, %s40
    %p44 = pneg %p38
    %p45 = scmp.eq.s32.totalorder %s15, 1
    %p46 = por %p44, %p45
    %p47 = scmp.ne.s32.totalorder %s39, %s42
    %p48 = scmp.eq.s32.totalorder %s15, 0
    %p49 = por %p47, %p48
    %p50 = scmp.ne.s32.totalorder %s39, %s42
    %p51 = scmp.eq.s32.totalorder %s20, 1
    %p52 = por %p50, %p51
    %p53 = scmp.ne.s32.totalorder %s42, %s43
    %p54 = scmp.eq.s32.totalorder %s20, 0
    %p55 = por %p53, %p54
    %p56 = scmp.ne.s32.totalorder %s42, %s43
    %p57 = scmp.eq.s32.totalorder %s21, 1
    %p58 = por %p56, %p57
    %p60 = scmp.ne.s32.totalorder %s43, %s59
    %p61 = scmp.eq.s32.totalorder %s21, 0
    %p62 = por %p60, %p61
    %s64 = sadd.s32 %s63, 1
    %p67 = scmp.eq.s32.totalorder %s15, 1
    %p68 = scmp.ne.s32.totalorder %s63, %s65
    %p69 = scmp.eq.s32.totalorder %s15, 0
    %p70 = por %p68, %p69
    %p71 = scmp.ne.s32.totalorder %s63, %s65
    %p72 = scmp.eq.s32.totalorder %s20, 1
    %p73 = por %p71, %p72
    %p74 = scmp.ne.s32.totalorder %s65, %s66
    %p75 = scmp.eq.s32.totalorder %s20, 0
    %p76 = por %p74, %p75
    %p77 = scmp.ne.s32.totalorder %s65, %s66
    %p78 = scmp.eq.s32.totalorder %s21, 1
    %p79 = por %p77, %p78
    %p81 = scmp.ne.s32.totalorder %s66, %s80
    %p82 = scmp.eq.s32.totalorder %s21, 0
    %p83 = por %p81, %p82
    %s85 = sadd.s32 %s84, 1
    %p88 = scmp.eq.s32.totalorder %s15, 1
    %p89 = scmp.ne.s32.totalorder %s84, %s86
    %p90 = scmp.eq.s32.totalorder %s15, 0
    %p91 = por %p89, %p90
    %p92 = scmp.ne.s32.totalorder %s84, %s86
    %p93 = scmp.eq.s32.totalorder %s20, 1
    %p94 = por %p92, %p93
    %p95 = scmp.ne.s32.totalorder %s86, %s87
    %p96 = scmp.eq.s32.totalorder %s20, 0
    %p97 = por %p95, %p96
    %p98 = scmp.ne.s32.totalorder %s86, %s87
    %p99 = scmp.eq.s32.totalorder %s21, 1
    %p100 = por %p98, %p99
    %p102 = scmp.ne.s32.totalorder %s87, %s101
    %p103 = scmp.eq.s32.totalorder %s21, 0
    %p104 = por %p102, %p103
    %s106 = sadd.s32 %s105, 1
    %p109 = scmp.eq.s32.totalorder %s15, 1
    %p110 = scmp.ne.s32.totalorder %s105, %s107
    %p111 = scmp.eq.s32.totalorder %s15, 0
    %p112 = por %p110, %p111
    %p113 = scmp.ne.s32.totalorder %s105, %s107
    %p114 = scmp.eq.s32.totalorder %s20, 1
    %p115 = por %p113, %p114
    %p116 = scmp.ne.s32.totalorder %s107, %s108
    %p117 = scmp.eq.s32.totalorder %s20, 0
    %p118 = por %p116, %p117
    %p119 = scmp.ne.s32.totalorder %s107, %s108
    %p120 = scmp.eq.s32.totalorder %s21, 1
    %p121 = por %p119, %p120
    %p123 = scmp.ne.s32.totalorder %s108, %s122
    %p124 = scmp.eq.s32.totalorder %s21, 0
    %p125 = por %p123, %p124
    %s127 = sadd.s32 %s126, 1
    %p130 = scmp.eq.s32.totalorder %s15, 1
    %p131 = scmp.ne.s32.totalorder %s126, %s128
    %p132 = scmp.eq.s32.totalorder %s15, 0
    %p133 = por %p131, %p132
    %p134 = scmp.ne.s32.totalorder %s126, %s128
    %p135 = scmp.eq.s32.totalorder %s20, 1
    %p136 = por %p134, %p135
    %p137 = scmp.ne.s32.totalorder %s128, %s129
    %p138 = scmp.eq.s32.totalorder %s20, 0
    %p139 = por %p137, %p138
    %p140 = scmp.ne.s32.totalorder %s128, %s129
    %p141 = scmp.eq.s32.totalorder %s21, 1
    %p142 = por %p140, %p141
    %p144 = scmp.ne.s32.totalorder %s129, %s143
    %p145 = scmp.eq.s32.totalorder %s21, 0
    %p146 = por %p144, %p145
    %s148 = sadd.s32 %s147, 1
    %p151 = scmp.eq.s32.totalorder %s15, 1
    %p152 = scmp.ne.s32.totalorder %s147, %s149
    %p153 = scmp.eq.s32.totalorder %s15, 0
    %p154 = por %p152, %p153
    %p155 = scmp.ne.s32.totalorder %s147, %s149
    %p156 = scmp.eq.s32.totalorder %s20, 1
    %p157 = por %p155, %p156
    %p158 = scmp.ne.s32.totalorder %s149, %s150
    %p159 = scmp.eq.s32.totalorder %s20, 0
    %p160 = por %p158, %p159
    %p161 = scmp.ne.s32.totalorder %s149, %s150
    %p162 = scmp.eq.s32.totalorder %s21, 1
    %p163 = por %p161, %p162
    %p165 = scmp.ne.s32.totalorder %s150, %s164
    %p166 = scmp.eq.s32.totalorder %s21, 0
    %p167 = por %p165, %p166
    %s169 = sadd.s32 %s168, 1
    %p172 = scmp.eq.s32.totalorder %s15, 1
    %p173 = scmp.ne.s32.totalorder %s168, %s170
    %p174 = scmp.eq.s32.totalorder %s15, 0
    %p175 = por %p173, %p174
    %p176 = scmp.ne.s32.totalorder %s168, %s170
    %p177 = scmp.eq.s32.totalorder %s20, 1
    %p178 = por %p176, %p177
    %p179 = scmp.ne.s32.totalorder %s170, %s171
    %p180 = scmp.eq.s32.totalorder %s20, 0
    %p181 = por %p179, %p180
    %p182 = scmp.ne.s32.totalorder %s170, %s171
    %p183 = scmp.eq.s32.totalorder %s21, 1
    %p184 = por %p182, %p183
    %p186 = scmp.ne.s32.totalorder %s171, %s185
    %p187 = scmp.eq.s32.totalorder %s21, 0
    %p188 = por %p186, %p187
    %s190 = sadd.s32 %s189, 1
    %p193 = scmp.eq.s32.totalorder %s15, 1
    %p194 = scmp.ne.s32.totalorder %s189, %s191
    %p195 = scmp.eq.s32.totalorder %s15, 0
    %p196 = por %p194, %p195
    %p197 = scmp.ne.s32.totalorder %s189, %s191
    %p198 = scmp.eq.s32.totalorder %s20, 1
    %p199 = por %p197, %p198
    %p200 = scmp.ne.s32.totalorder %s191, %s192
    %p201 = scmp.eq.s32.totalorder %s20, 0
    %p202 = por %p200, %p201
    %p203 = scmp.ne.s32.totalorder %s191, %s192
    %p204 = scmp.eq.s32.totalorder %s21, 1
    %p205 = por %p203, %p204
    %p207 = scmp.ne.s32.totalorder %s192, %s206
    %p208 = scmp.eq.s32.totalorder %s21, 0
    %p209 = por %p207, %p208
    %s211 = sadd.s32 %s210, 1
    %p214 = scmp.eq.s32.totalorder %s15, 1
    %p215 = scmp.ne.s32.totalorder %s210, %s212
    %p216 = scmp.eq.s32.totalorder %s15, 0
    %p217 = por %p215, %p216
    %p218 = scmp.ne.s32.totalorder %s210, %s212
    %p219 = scmp.eq.s32.totalorder %s20, 1
    %p220 = por %p218, %p219
    %p221 = scmp.ne.s32.totalorder %s212, %s213
    %p222 = scmp.eq.s32.totalorder %s20, 0
    %p223 = por %p221, %p222
    %p224 = scmp.ne.s32.totalorder %s212, %s213
    %p225 = scmp.eq.s32.totalorder %s21, 1
    %p226 = por %p224, %p225
    %p228 = scmp.ne.s32.totalorder %s213, %s227
    %p229 = scmp.eq.s32.totalorder %s21, 0
    %p230 = por %p228, %p229
    %s231 = ssub.s32 %s22, %s34
    %s232 = ssub.s32 %s23, %s30
    %s233 = sor.u32 %s231, %s232
    %p234 = scmp.eq.s32.totalorder %s233, 0
    %s236 = sadd.s32 %s235, 1
    %s237 = scalar_select %p234, %s235, %s236
    %p240 = pneg %p234
    %p241 = scmp.eq.s32.totalorder %s15, 1
    %p242 = por %p240, %p241
    %p243 = scmp.ne.s32.totalorder %s235, %s238
    %p244 = scmp.eq.s32.totalorder %s15, 0
    %p245 = por %p243, %p244
    %p246 = scmp.ne.s32.totalorder %s235, %s238
    %p247 = scmp.eq.s32.totalorder %s20, 1
    %p248 = por %p246, %p247
    %p249 = scmp.ne.s32.totalorder %s238, %s239
    %p250 = scmp.eq.s32.totalorder %s20, 0
    %p251 = por %p249, %p250
    %p252 = scmp.ne.s32.totalorder %s238, %s239
    %p253 = scmp.eq.s32.totalorder %s21, 1
    %p254 = por %p252, %p253
    %p256 = scmp.ne.s32.totalorder %s239, %s255
    %p257 = scmp.eq.s32.totalorder %s21, 0
    %p258 = por %p256, %p257
    %p259 = scmp.le.s32.totalorder 1, %s15
    %p260 = scmp.lt.s32.totalorder %s15, 3
    %p261 = pnand %p259, %p260
    %p262 = pneg %p261
    // Predicated region
    $region9: #{tpu_custom_call.1} parent=5 // pred_check
      _
    $region10: #{tpu_custom_call.1} parent=5 // pred_check_branch
      %264 = sbr.rel (%p261) target = $region12
    $region11: #{tpu_custom_call.1} parent=5 // pred_region
      %s265 = ssub.s32 %s15, 1
      // Predicated region
      $region13: #{tpu_custom_call.1} parent=11 // pred_check
        %p266 = pneg %p76
      $region14: #{tpu_custom_call.1} parent=11 // pred_check_branch
        %268 = sbr.rel (%p266) target = $region16
      $region15: #{tpu_custom_call.1} parent=11 // pred_region
        _
      $region16: #{tpu_custom_call.1} parent=11 // pred_fallthru
        _
      // Predicated region
      $region17: #{tpu_custom_call.1} parent=11 // pred_check
        %p269 = pneg %p97
      $region18: #{tpu_custom_call.1} parent=11 // pred_check_branch
        %271 = sbr.rel (%p269) target = $region20
      $region19: #{tpu_custom_call.1} parent=11 // pred_region
        _
      $region20: #{tpu_custom_call.1} parent=11 // pred_fallthru
        _
      // Predicated region
      $region21: #{tpu_custom_call.1} parent=11 // pred_check
        %p272 = pneg %p118
      $region22: #{tpu_custom_call.1} parent=11 // pred_check_branch
        %274 = sbr.rel (%p272) target = $region24
      $region23: #{tpu_custom_call.1} parent=11 // pred_region
        _
      $region24: #{tpu_custom_call.1} parent=11 // pred_fallthru
        _
      // Predicated region
      $region25: #{tpu_custom_call.1} parent=11 // pred_check
        %p275 = pneg %p139
      $region26: #{tpu_custom_call.1} parent=11 // pred_check_branch
        %277 = sbr.rel (%p275) target = $region28
      $region27: #{tpu_custom_call.1} parent=11 // pred_region
        _
      $region28: #{tpu_custom_call.1} parent=11 // pred_fallthru
        _
      // Predicated region
      $region29: #{tpu_custom_call.1} parent=11 // pred_check
        %p278 = pneg %p160
      $region30: #{tpu_custom_call.1} parent=11 // pred_check_branch
        %280 = sbr.rel (%p278) target = $region32
      $region31: #{tpu_custom_call.1} parent=11 // pred_region
        _
      $region32: #{tpu_custom_call.1} parent=11 // pred_fallthru
        _
      // Predicated region
      $region33: #{tpu_custom_call.1} parent=11 // pred_check
        %p281 = pneg %p181
      $region34: #{tpu_custom_call.1} parent=11 // pred_check_branch
        %283 = sbr.rel (%p281) target = $region36
      $region35: #{tpu_custom_call.1} parent=11 // pred_region
        _
      $region36: #{tpu_custom_call.1} parent=11 // pred_fallthru
        _
      // Predicated region
      $region37: #{tpu_custom_call.1} parent=11 // pred_check
        %p284 = pneg %p202
      $region38: #{tpu_custom_call.1} parent=11 // pred_check_branch
        %286 = sbr.rel (%p284) target = $region40
      $region39: #{tpu_custom_call.1} parent=11 // pred_region
        _
      $region40: #{tpu_custom_call.1} parent=11 // pred_fallthru
        _
      // Predicated region
      $region41: #{tpu_custom_call.1} parent=11 // pred_check
        %p287 = pneg %p223
      $region42: #{tpu_custom_call.1} parent=11 // pred_check_branch
        %289 = sbr.rel (%p287) target = $region44
      $region43: #{tpu_custom_call.1} parent=11 // pred_region
        _
      $region44: #{tpu_custom_call.1} parent=11 // pred_fallthru
        _
    $region12: #{tpu_custom_call.1} parent=5 // pred_fallthru
      _
    %p290 = scmp.lt.s32.totalorder %s15, 2
    // Predicated region
    $region45: #{tpu_custom_call.1} parent=5 // pred_check
      %p291 = pneg %p290
    $region46: #{tpu_custom_call.1} parent=5 // pred_check_branch
      %293 = sbr.rel (%p291) target = $region48
    $region47: #{tpu_custom_call.1} parent=5 // pred_region
      // Predicated region
      $region49: #{tpu_custom_call.1} parent=47 // pred_check
        %p294 = pneg %p49
      $region50: #{tpu_custom_call.1} parent=47 // pred_check_branch
        %296 = sbr.rel (%p294) target = $region52
      $region51: #{tpu_custom_call.1} parent=47 // pred_region
        %p297 = scmp.lt.s32.totalorder %s22, 1
        %s298 = scalar_select %p297, %s22, 1
        %p299 = scmp.lt.s32.totalorder %s23, 0
        %s300 = scalar_select %p299, %s23, 0
        %s301 = smul.addr %s298, 8
        %s302 = sadd.s32 %s300, %s301
        %s303 = smul.addr %s302, 8
        %s304 = scalar_lea.vmem %s0, %s303
      $region52: #{tpu_custom_call.1} parent=47 // pred_fallthru
        _
    $region48: #{tpu_custom_call.1} parent=5 // pred_fallthru
      _
    %p305 = scmp.le.s32.totalorder 1, %s15
    %p306 = scmp.lt.s32.totalorder %s15, 3
    %p307 = pnand %p305, %p306
    %p308 = pneg %p307
    // Predicated region
    $region53: #{tpu_custom_call.1} parent=5 // pred_check
      _
    $region54: #{tpu_custom_call.1} parent=5 // pred_check_branch
      %310 = sbr.rel (%p307) target = $region56
    $region55: #{tpu_custom_call.1} parent=5 // pred_region
      %s311 = ssub.s32 %s15, 1
      %p312 = scmp.lt.s32.totalorder %s24, 1
      %s313 = scalar_select %p312, %s24, 1
      %p314 = scmp.lt.s32.totalorder %s25, 0
      %s315 = scalar_select %p314, %s25, 0
      %s316 = smul.addr %s313, 8
      %s317 = sadd.s32 %s315, %s316
      %s318 = smul.addr %s317, 8
      %s319 = scalar_lea.vmem %s0, %s318
      %p320 = pneg %p55
      %p321 = pneg %p52
      %p322 = pneg %p76
      %p323 = pneg %p73
      %p324 = pneg %p97
      %p325 = pneg %p94
      %p326 = pneg %p118
      %p327 = pneg %p115
      %p328 = pneg %p139
      %p329 = pneg %p136
      %p330 = pneg %p160
      %p331 = pneg %p157
      %p332 = pneg %p181
      %p333 = pneg %p178
      %p334 = pneg %p202
      %p335 = pneg %p199
      %p336 = pneg %p223
      %p337 = pneg %p220
      %p338 = pneg %p251
      %p339 = pneg %p248
      %p340 = scmp.lt.s32.totalorder %s24, 1
      %s341 = scalar_select %p340, %s24, 1
      %p342 = scmp.lt.s32.totalorder %s25, 0
      %s343 = scalar_select %p342, %s25, 0
      %s344 = smul.addr %s341, 4
      %s345 = sadd.s32 %s343, %s344
      %s346 = smul.addr %s345, 8
      %s347 = scalar_lea.vmem %s9, %s346
      %p348 = scmp.lt.s32.totalorder %s24, 1
      %s349 = scalar_select %p348, %s24, 1
      %p350 = scmp.lt.s32.totalorder %s25, 0
      %s351 = scalar_select %p350, %s25, 0
      %s352 = smul.addr %s349, 8
      %s353 = sadd.s32 %s351, %s352
      %s354 = smul.addr %s353, 8
      %s355 = scalar_lea.vmem %s0, %s354
      %p356 = scmp.lt.s32.totalorder %s24, 1
      %s357 = scalar_select %p356, %s24, 1
      %p358 = scmp.lt.s32.totalorder %s25, 0
      %s359 = scalar_select %p358, %s25, 0
      %s360 = smul.addr %s357, 4
      %s361 = sadd.s32 %s359, %s360
      %s362 = smul.addr %s361, 8
      %s363 = scalar_lea.vmem %s9, %s362
      %v364 = vld [vmem:[%s355] sm:$0x7f]
      %v365 = vld [vmem:[%s1] sm:$0xff]
      %v366 = vld [vmem:[%s2] sm:$0xff]
      %368 = vset.pattern.permute.xlu0 0
      %369 = vperm.xlu0 %368, %v366
      %v370 = vpop.permute.xlu0 %369
      %vm372 = vcmask 23552
      %v374 = vsel %vm372, %v365, 0
      %vm376 = vcmask 1042432
      %v378 = vsel %vm376, %v364, 0
      %380 = vmatprep.subr.mxu0 0.0
      %381 = vmatpush1.msra.mxu0 %v378
      %382 = vmatprep.subr.mxu0 0.0
      %383 = vmatpush1.msra.mxu0 0.0
      %384 = vmatprep.subr.mxu0 0.0
      %385 = vmatpush1.msra.mxu0 0.0
      %386 = vmatprep.subr.mxu0 0.0
      %387 = vmatpush1.msra.mxu0 0.0
      %388 = vmatprep.subr.mxu0 0.0
      %389 = vmatpush1.msra.mxu0 0.0
      %390 = vmatprep.subr.mxu0 0.0
      %391 = vmatpush1.msra.mxu0 0.0
      %392 = vmatprep.subr.mxu0 0.0
      %393 = vmatpush1.msra.mxu0 0.0
      %394 = vmatprep.subr.mxu0 0.0
      %395 = vmatpush1.msra.mxu0 0.0
      %396 = vmatprep.subr.mxu0 0.0
      %397 = vmatpush1.msra.mxu0 0.0
      %398 = vmatprep.subr.mxu0 0.0
      %399 = vmatpush1.msra.mxu0 0.0
      %400 = vmatprep.subr.mxu0 0.0
      %401 = vmatpush1.msra.mxu0 0.0
      %402 = vmatprep.subr.mxu0 0.0
      %403 = vmatpush1.msra.mxu0 0.0
      %404 = vmatprep.subr.mxu0 0.0
      %405 = vmatpush1.msra.mxu0 0.0
      %406 = vmatprep.subr.mxu0 0.0
      %407 = vmatpush1.msra.mxu0 0.0
      %408 = vmatprep.subr.mxu0 0.0
      %409 = vmatpush1.msra.mxu0 0.0
      %410 = vmatprep.subr.mxu0 0.0
      %411 = vmatpush1.msra.mxu0 0.0
      %412 = vmatprep.subr.mxu0 0.0
      %413 = vmatpush1.msra.mxu0 0.0
      %414 = vmatprep.subr.mxu0 0.0
      %415 = vmatpush1.msra.mxu0 0.0
      %416 = vmatprep.subr.mxu0 0.0
      %417 = vmatpush1.msra.mxu0 0.0
      %418 = vmatprep.subr.mxu0 0.0
      %419 = vmatpush1.msra.mxu0 0.0
      %420 = vmatprep.subr.mxu0 0.0
      %421 = vmatpush1.msra.mxu0 0.0
      %422 = vmatprep.subr.mxu0 0.0
      %423 = vmatpush1.msra.mxu0 0.0
      %424 = vmatprep.subr.mxu0 0.0
      %425 = vmatpush1.msra.mxu0 0.0
      %426 = vmatprep.subr.mxu0 0.0
      %427 = vmatpush1.msra.mxu0 0.0
      %428 = vmatprep.subr.mxu0 0.0
      %429 = vmatpush1.msra.mxu0 0.0
      %430 = vmatprep.subr.mxu0 0.0
      %431 = vmatpush1.msra.mxu0 0.0
      %432 = vmatprep.subr.mxu0 0.0
      %433 = vmatpush1.msra.mxu0 0.0
      %434 = vmatprep.subr.mxu0 0.0
      %435 = vmatpush1.msra.mxu0 0.0
      %436 = vmatprep.subr.mxu0 0.0
      %437 = vmatpush1.msra.mxu0 0.0
      %438 = vmatprep.subr.mxu0 0.0
      %439 = vmatpush1.msra.mxu0 0.0
      %440 = vmatprep.subr.mxu0 0.0
      %441 = vmatpush1.msra.mxu0 0.0
      %442 = vmatprep.subr.mxu0 0.0
      %443 = vmatpush1.msra.mxu0 0.0
      %444 = vmatprep.mubr.f32.mxu0 0.0
      %445 = vmatmul.mubr.f32.gmra.mrb[0].mxu0 %v374
      %v446 = vpop.f32.mrb[0].mxu0
      %v447 = vadd.f32 %v370, %v446
      %v448 = vpop.f32.mrb[0].mxu0
      %449 = vdwg.mxu0
      %v450 = vmax.f32 %v447, 0.0
      %v451 = vld [vmem:[%s3] sm:$0xff]
      %v452 = vld [vmem:[%s4] sm:$0xff]
      %454 = vset.pattern.permute.xlu0 0
      %455 = vperm.xlu0 %454, %v452
      %v456 = vpop.permute.xlu0 %455
      %vm458 = vcmask 64512
      %v460 = vsel %vm458, %v451, 0
      %462 = vmatprep.subr.mxu0 0.0
      %463 = vmatpush1.msra.mxu0 %v450
      %464 = vmatprep.subr.mxu0 0.0
      %465 = vmatpush1.msra.mxu0 0.0
      %466 = vmatprep.subr.mxu0 0.0
      %467 = vmatpush1.msra.mxu0 0.0
      %468 = vmatprep.subr.mxu0 0.0
      %469 = vmatpush1.msra.mxu0 0.0
      %470 = vmatprep.subr.mxu0 0.0
      %471 = vmatpush1.msra.mxu0 0.0
      %472 = vmatprep.subr.mxu0 0.0
      %473 = vmatpush1.msra.mxu0 0.0
      %474 = vmatprep.subr.mxu0 0.0
      %475 = vmatpush1.msra.mxu0 0.0
      %476 = vmatprep.subr.mxu0 0.0
      %477 = vmatpush1.msra.mxu0 0.0
      %478 = vmatprep.subr.mxu0 0.0
      %479 = vmatpush1.msra.mxu0 0.0
      %480 = vmatprep.subr.mxu0 0.0
      %481 = vmatpush1.msra.mxu0 0.0
      %482 = vmatprep.subr.mxu0 0.0
      %483 = vmatpush1.msra.mxu0 0.0
      %484 = vmatprep.subr.mxu0 0.0
      %485 = vmatpush1.msra.mxu0 0.0
      %486 = vmatprep.subr.mxu0 0.0
      %487 = vmatpush1.msra.mxu0 0.0
      %488 = vmatprep.subr.mxu0 0.0
      %489 = vmatpush1.msra.mxu0 0.0
      %490 = vmatprep.subr.mxu0 0.0
      %491 = vmatpush1.msra.mxu0 0.0
      %492 = vmatprep.subr.mxu0 0.0
      %493 = vmatpush1.msra.mxu0 0.0
      %494 = vmatprep.subr.mxu0 0.0
      %495 = vmatpush1.msra.mxu0 0.0
      %496 = vmatprep.subr.mxu0 0.0
      %497 = vmatpush1.msra.mxu0 0.0
      %498 = vmatprep.subr.mxu0 0.0
      %499 = vmatpush1.msra.mxu0 0.0
      %500 = vmatprep.subr.mxu0 0.0
      %501 = vmatpush1.msra.mxu0 0.0
      %502 = vmatprep.subr.mxu0 0.0
      %503 = vmatpush1.msra.mxu0 0.0
      %504 = vmatprep.subr.mxu0 0.0
      %505 = vmatpush1.msra.mxu0 0.0
      %506 = vmatprep.subr.mxu0 0.0
      %507 = vmatpush1.msra.mxu0 0.0
      %508 = vmatprep.subr.mxu0 0.0
      %509 = vmatpush1.msra.mxu0 0.0
      %510 = vmatprep.subr.mxu0 0.0
      %511 = vmatpush1.msra.mxu0 0.0
      %512 = vmatprep.subr.mxu0 0.0
      %513 = vmatpush1.msra.mxu0 0.0
      %514 = vmatprep.subr.mxu0 0.0
      %515 = vmatpush1.msra.mxu0 0.0
      %516 = vmatprep.subr.mxu0 0.0
      %517 = vmatpush1.msra.mxu0 0.0
      %518 = vmatprep.subr.mxu0 0.0
      %519 = vmatpush1.msra.mxu0 0.0
      %520 = vmatprep.subr.mxu0 0.0
      %521 = vmatpush1.msra.mxu0 0.0
      %522 = vmatprep.subr.mxu0 0.0
      %523 = vmatpush1.msra.mxu0 0.0
      %524 = vmatprep.subr.mxu0 0.0
      %525 = vmatpush1.msra.mxu0 0.0
      %526 = vmatprep.mubr.f32.mxu0 0.0
      %527 = vmatmul.mubr.f32.gmra.mrb[0].mxu0 %v460
      %v528 = vpop.f32.mrb[0].mxu0
      %v529 = vadd.f32 %v456, %v528
      %v530 = vpop.f32.mrb[0].mxu0
      %531 = vdwg.mxu0
      %v532 = vmax.f32 %v529, 0.0
      %v533 = vld [vmem:[%s5] sm:$0xff]
      %v534 = vld [vmem:[%s5 + $0x8] sm:$0xff]
      %v535 = vld [vmem:[%s6] sm:$0xff]
      %v536 = vld [vmem:[%s6 + $0x8] sm:$0xff]
      %538 = vset.pattern.permute.xlu0 0
      %539 = vperm.xlu0 %538, %v535
      %v540 = vpop.permute.xlu0 %539
      %543 = vset.pattern.permute.xlu0 0
      %544 = vperm.xlu0 %543, %v536
      %v545 = vpop.permute.xlu0 %544
      %v548 = vsel %vm458, %v533, 0
      %v551 = vsel %vm458, %v534, 0
      %553 = vmatprep.subr.mxu0 0.0
      %554 = vmatpush1.msra.mxu0 %v532
      %555 = vmatprep.subr.mxu0 0.0
      %556 = vmatpush1.msra.mxu0 0.0
      %557 = vmatprep.subr.mxu0 0.0
      %558 = vmatpush1.msra.mxu0 0.0
      %559 = vmatprep.subr.mxu0 0.0
      %560 = vmatpush1.msra.mxu0 0.0
      %561 = vmatprep.subr.mxu0 0.0
      %562 = vmatpush1.msra.mxu0 0.0
      %563 = vmatprep.subr.mxu0 0.0
      %564 = vmatpush1.msra.mxu0 0.0
      %565 = vmatprep.subr.mxu0 0.0
      %566 = vmatpush1.msra.mxu0 0.0
      %567 = vmatprep.subr.mxu0 0.0
      %568 = vmatpush1.msra.mxu0 0.0
      %569 = vmatprep.subr.mxu0 0.0
      %570 = vmatpush1.msra.mxu0 0.0
      %571 = vmatprep.subr.mxu0 0.0
      %572 = vmatpush1.msra.mxu0 0.0
      %573 = vmatprep.subr.mxu0 0.0
      %574 = vmatpush1.msra.mxu0 0.0
      %575 = vmatprep.subr.mxu0 0.0
      %576 = vmatpush1.msra.mxu0 0.0
      %577 = vmatprep.subr.mxu0 0.0
      %578 = vmatpush1.msra.mxu0 0.0
      %579 = vmatprep.subr.mxu0 0.0
      %580 = vmatpush1.msra.mxu0 0.0
      %581 = vmatprep.subr.mxu0 0.0
      %582 = vmatpush1.msra.mxu0 0.0
      %583 = vmatprep.subr.mxu0 0.0
      %584 = vmatpush1.msra.mxu0 0.0
      %585 = vmatprep.subr.mxu0 0.0
      %586 = vmatpush1.msra.mxu0 0.0
      %587 = vmatprep.subr.mxu0 0.0
      %588 = vmatpush1.msra.mxu0 0.0
      %589 = vmatprep.subr.mxu0 0.0
      %590 = vmatpush1.msra.mxu0 0.0
      %591 = vmatprep.subr.mxu0 0.0
      %592 = vmatpush1.msra.mxu0 0.0
      %593 = vmatprep.subr.mxu0 0.0
      %594 = vmatpush1.msra.mxu0 0.0
      %595 = vmatprep.subr.mxu0 0.0
      %596 = vmatpush1.msra.mxu0 0.0
      %597 = vmatprep.subr.mxu0 0.0
      %598 = vmatpush1.msra.mxu0 0.0
      %599 = vmatprep.subr.mxu0 0.0
      %600 = vmatpush1.msra.mxu0 0.0
      %601 = vmatprep.subr.mxu0 0.0
      %602 = vmatpush1.msra.mxu0 0.0
      %603 = vmatprep.subr.mxu0 0.0
      %604 = vmatpush1.msra.mxu0 0.0
      %605 = vmatprep.subr.mxu0 0.0
      %606 = vmatpush1.msra.mxu0 0.0
      %607 = vmatprep.subr.mxu0 0.0
      %608 = vmatpush1.msra.mxu0 0.0
      %609 = vmatprep.subr.mxu0 0.0
      %610 = vmatpush1.msra.mxu0 0.0
      %611 = vmatprep.subr.mxu0 0.0
      %612 = vmatpush1.msra.mxu0 0.0
      %613 = vmatprep.subr.mxu0 0.0
      %614 = vmatpush1.msra.mxu0 0.0
      %615 = vmatprep.subr.mxu0 0.0
      %616 = vmatpush1.msra.mxu0 0.0
      %617 = vmatprep.mubr.f32.mxu0 0.0
      %618 = vmatmul.mubr.f32.gmra.mrb[0].mxu0 %v548
      %v619 = vpop.f32.mrb[0].mxu0
      %v620 = vadd.f32 %v540, %v619
      %v621 = vpop.f32.mrb[0].mxu0
      %622 = vmatprep.mubr.f32.mxu0 0.0
      %623 = vmatmul.mubr.f32.gmra.mrb[0].mxu0 %v551
      %v624 = vpop.f32.mrb[0].mxu0
      %v625 = vadd.f32 %v545, %v624
      %v626 = vpop.f32.mrb[0].mxu0
      %627 = vdwg.mxu0
      %v628 = vmax.f32 %v620, 0.0
      %v629 = vmax.f32 %v625, 0.0
      %v630 = vcombine.high %v364, %v364
      %v632 = vunpack.c.l.s4 1966171168
      %v633 = vunpack.c.0.s8 %v632
      %v634 = vlaneseq
      %v635 = vshrl.u32 %v634, 7
      %v636 = vsub.s32 %v633, %v635
      %v637 = vrot.slane %v364, %v636
      %v639 = vunpack.c.l.s4 1966171168
      %v640 = vunpack.c.0.s8 %v639
      %v641 = vlaneseq
      %v642 = vshrl.u32 %v641, 7
      %v643 = vsub.s32 %v640, %v642
      %v644 = vrot.slane %v630, %v643
      %v645 = vcombine.high %v637, %v637
      %v646 = vcombine.high %v644, %v644
      %v648 = vunpack.c.l.s4 1966171168
      %v649 = vunpack.c.0.s8 %v648
      %v650 = vlaneseq
      %v651 = vshrl.u32 %v650, 7
      %v652 = vsub.s32 %v649, %v651
      %v653 = vrot.slane %v637, %v652
      %v655 = vunpack.c.l.s4 1966171168
      %v656 = vunpack.c.0.s8 %v655
      %v657 = vlaneseq
      %v658 = vshrl.u32 %v657, 7
      %v659 = vsub.s32 %v656, %v658
      %v660 = vrot.slane %v644, %v659
      %v662 = vunpack.c.l.s4 1966171168
      %v663 = vunpack.c.0.s8 %v662
      %v664 = vlaneseq
      %v665 = vshrl.u32 %v664, 7
      %v666 = vsub.s32 %v663, %v665
      %v667 = vrot.slane %v645, %v666
      %v669 = vunpack.c.l.s4 1966171168
      %v670 = vunpack.c.0.s8 %v669
      %v671 = vlaneseq
      %v672 = vshrl.u32 %v671, 7
      %v673 = vsub.s32 %v670, %v672
      %v674 = vrot.slane %v646, %v673
      %v675 = vcombine.high %v653, %v653
      %v676 = vcombine.high %v660, %v660
      %v677 = vcombine.high %v667, %v667
      %v678 = vlaneseq
      %v679 = vshrl.u32 %v678, 7
      %v680 = vsub.s32 0, %v679
      %v681 = vrot.slane %v653, %v680
      %v682 = vlaneseq
      %v683 = vshrl.u32 %v682, 7
      %v684 = vsub.s32 0, %v683
      %v685 = vrot.slane %v667, %v684
      %v686 = vlaneseq
      %v687 = vshrl.u32 %v686, 7
      %v688 = vsub.s32 0, %v687
      %v689 = vrot.slane %v675, %v688
      %v690 = vlaneseq
      %v691 = vshrl.u32 %v690, 7
      %v692 = vsub.s32 0, %v691
      %v693 = vrot.slane %v677, %v692
      %v694 = vlaneseq
      %v695 = vshrl.u32 %v694, 7
      %v696 = vsub.s32 0, %v695
      %v697 = vrot.slane %v660, %v696
      %v698 = vlaneseq
      %v699 = vshrl.u32 %v698, 7
      %v700 = vsub.s32 0, %v699
      %v701 = vrot.slane %v674, %v700
      %v702 = vlaneseq
      %v703 = vshrl.u32 %v702, 7
      %v704 = vsub.s32 0, %v703
      %v705 = vrot.slane %v676, %v704
      %v713 = vmul.f32 %v681, %v628
      %v714 = vmul.f32 %v681, %v629
      %v715 = vmul.f32 %v685, %v628
      %v716 = vmul.f32 %v685, %v629
      %v717 = vmul.f32 %v689, %v628
      %v718 = vmul.f32 %v689, %v629
      %v719 = vmul.f32 %v693, %v628
      %v720 = vmul.f32 %v693, %v629
      %v721 = vmul.f32 %v697, %v628
      %v722 = vmul.f32 %v697, %v629
      %v723 = vmul.f32 %v701, %v628
      %v724 = vmul.f32 %v701, %v629
      %v725 = vmul.f32 %v705, %v628
      %v726 = vmul.f32 %v705, %v629
      %v727 = vadd.f32 %v713, 0.0
      %v728 = vadd.f32 %v714, 0.0
      %v729 = vadd.f32 %v715, 0.0
      %v730 = vadd.f32 %v716, 0.0
      %v731 = vadd.f32 %v717, 0.0
      %v732 = vadd.f32 %v718, 0.0
      %v733 = vadd.f32 %v719, 0.0
      %v734 = vadd.f32 %v720, 0.0
      %v735 = vadd.f32 %v721, 0.0
      %v736 = vadd.f32 %v722, 0.0
      %v737 = vadd.f32 %v723, 0.0
      %v738 = vadd.f32 %v724, 0.0
      %v739 = vadd.f32 %v725, 0.0
      %v740 = vadd.f32 %v726, 0.0
      %s741 = scalar_lea.vmem %s355, 8
      %v742 = vld [vmem:[%s741] sm:$0x7f]
      %v744 = vsel %vm376, %v742, 0
      %746 = vmatprep.subr.mxu0 0.0
      %747 = vmatpush1.msra.mxu0 %v744
      %748 = vmatprep.subr.mxu0 0.0
      %749 = vmatpush1.msra.mxu0 0.0
      %750 = vmatprep.subr.mxu0 0.0
      %751 = vmatpush1.msra.mxu0 0.0
      %752 = vmatprep.subr.mxu0 0.0
      %753 = vmatpush1.msra.mxu0 0.0
      %754 = vmatprep.subr.mxu0 0.0
      %755 = vmatpush1.msra.mxu0 0.0
      %756 = vmatprep.subr.mxu0 0.0
      %757 = vmatpush1.msra.mxu0 0.0
      %758 = vmatprep.subr.mxu0 0.0
      %759 = vmatpush1.msra.mxu0 0.0
      %760 = vmatprep.subr.mxu0 0.0
      %761 = vmatpush1.msra.mxu0 0.0
      %762 = vmatprep.subr.mxu0 0.0
      %763 = vmatpush1.msra.mxu0 0.0
      %764 = vmatprep.subr.mxu0 0.0
      %765 = vmatpush1.msra.mxu0 0.0
      %766 = vmatprep.subr.mxu0 0.0
      %767 = vmatpush1.msra.mxu0 0.0
      %768 = vmatprep.subr.mxu0 0.0
      %769 = vmatpush1.msra.mxu0 0.0
      %770 = vmatprep.subr.mxu0 0.0
      %771 = vmatpush1.msra.mxu0 0.0
      %772 = vmatprep.subr.mxu0 0.0
      %773 = vmatpush1.msra.mxu0 0.0
      %774 = vmatprep.subr.mxu0 0.0
      %775 = vmatpush1.msra.mxu0 0.0
      %776 = vmatprep.subr.mxu0 0.0
      %777 = vmatpush1.msra.mxu0 0.0
      %778 = vmatprep.subr.mxu0 0.0
      %779 = vmatpush1.msra.mxu0 0.0
      %780 = vmatprep.subr.mxu0 0.0
      %781 = vmatpush1.msra.mxu0 0.0
      %782 = vmatprep.subr.mxu0 0.0
      %783 = vmatpush1.msra.mxu0 0.0
      %784 = vmatprep.subr.mxu0 0.0
      %785 = vmatpush1.msra.mxu0 0.0
      %786 = vmatprep.subr.mxu0 0.0
      %787 = vmatpush1.msra.mxu0 0.0
      %788 = vmatprep.subr.mxu0 0.0
      %789 = vmatpush1.msra.mxu0 0.0
      %790 = vmatprep.subr.mxu0 0.0
      %791 = vmatpush1.msra.mxu0 0.0
      %792 = vmatprep.subr.mxu0 0.0
      %793 = vmatpush1.msra.mxu0 0.0
      %794 = vmatprep.subr.mxu0 0.0
      %795 = vmatpush1.msra.mxu0 0.0
      %796 = vmatprep.subr.mxu0 0.0
      %797 = vmatpush1.msra.mxu0 0.0
      %798 = vmatprep.subr.mxu0 0.0
      %799 = vmatpush1.msra.mxu0 0.0
      %800 = vmatprep.subr.mxu0 0.0
      %801 = vmatpush1.msra.mxu0 0.0
      %802 = vmatprep.subr.mxu0 0.0
      %803 = vmatpush1.msra.mxu0 0.0
      %804 = vmatprep.subr.mxu0 0.0
      %805 = vmatpush1.msra.mxu0 0.0
      %806 = vmatprep.subr.mxu0 0.0
      %807 = vmatpush1.msra.mxu0 0.0
      %808 = vmatprep.subr.mxu0 0.0
      %809 = vmatpush1.msra.mxu0 0.0
      %810 = vmatprep.mubr.f32.mxu0 0.0
      %811 = vmatmul.mubr.f32.gmra.mrb[0].mxu0 %v374
      %v812 = vpop.f32.mrb[0].mxu0
      %v813 = vadd.f32 %v370, %v812
      %v814 = vpop.f32.mrb[0].mxu0
      %815 = vdwg.mxu0
      %v816 = vmax.f32 %v813, 0.0
      %817 = vmatprep.subr.mxu0 0.0
      %818 = vmatpush1.msra.mxu0 %v816
      %819 = vmatprep.subr.mxu0 0.0
      %820 = vmatpush1.msra.mxu0 0.0
      %821 = vmatprep.subr.mxu0 0.0
      %822 = vmatpush1.msra.mxu0 0.0
      %823 = vmatprep.subr.mxu0 0.0
      %824 = vmatpush1.msra.mxu0 0.0
      %825 = vmatprep.subr.mxu0 0.0
      %826 = vmatpush1.msra.mxu0 0.0
      %827 = vmatprep.subr.mxu0 0.0
      %828 = vmatpush1.msra.mxu0 0.0
      %829 = vmatprep.subr.mxu0 0.0
      %830 = vmatpush1.msra.mxu0 0.0
      %831 = vmatprep.subr.mxu0 0.0
      %832 = vmatpush1.msra.mxu0 0.0
      %833 = vmatprep.subr.mxu0 0.0
      %834 = vmatpush1.msra.mxu0 0.0
      %835 = vmatprep.subr.mxu0 0.0
      %836 = vmatpush1.msra.mxu0 0.0
      %837 = vmatprep.subr.mxu0 0.0
      %838 = vmatpush1.msra.mxu0 0.0
      %839 = vmatprep.subr.mxu0 0.0
      %840 = vmatpush1.msra.mxu0 0.0
      %841 = vmatprep.subr.mxu0 0.0
      %842 = vmatpush1.msra.mxu0 0.0
      %843 = vmatprep.subr.mxu0 0.0
      %844 = vmatpush1.msra.mxu0 0.0
      %845 = vmatprep.subr.mxu0 0.0
      %846 = vmatpush1.msra.mxu0 0.0
      %847 = vmatprep.subr.mxu0 0.0
      %848 = vmatpush1.msra.mxu0 0.0
      %849 = vmatprep.subr.mxu0 0.0
      %850 = vmatpush1.msra.mxu0 0.0
      %851 = vmatprep.subr.mxu0 0.0
      %852 = vmatpush1.msra.mxu0 0.0
      %853 = vmatprep.subr.mxu0 0.0
      %854 = vmatpush1.msra.mxu0 0.0
      %855 = vmatprep.subr.mxu0 0.0
      %856 = vmatpush1.msra.mxu0 0.0
      %857 = vmatprep.subr.mxu0 0.0
      %858 = vmatpush1.msra.mxu0 0.0
      %859 = vmatprep.subr.mxu0 0.0
      %860 = vmatpush1.msra.mxu0 0.0
      %861 = vmatprep.subr.mxu0 0.0
      %862 = vmatpush1.msra.mxu0 0.0
      %863 = vmatprep.subr.mxu0 0.0
      %864 = vmatpush1.msra.mxu0 0.0
      %865 = vmatprep.subr.mxu0 0.0
      %866 = vmatpush1.msra.mxu0 0.0
      %867 = vmatprep.subr.mxu0 0.0
      %868 = vmatpush1.msra.mxu0 0.0
      %869 = vmatprep.subr.mxu0 0.0
      %870 = vmatpush1.msra.mxu0 0.0
      %871 = vmatprep.subr.mxu0 0.0
      %872 = vmatpush1.msra.mxu0 0.0
      %873 = vmatprep.subr.mxu0 0.0
      %874 = vmatpush1.msra.mxu0 0.0
      %875 = vmatprep.subr.mxu0 0.0
      %876 = vmatpush1.msra.mxu0 0.0
      %877 = vmatprep.subr.mxu0 0.0
      %878 = vmatpush1.msra.mxu0 0.0
      %879 = vmatprep.subr.mxu0 0.0
      %880 = vmatpush1.msra.mxu0 0.0
      %881 = vmatprep.mubr.f32.mxu0 0.0
      %882 = vmatmul.mubr.f32.gmra.mrb[0].mxu0 %v460
      %v883 = vpop.f32.mrb[0].mxu0
      %v884 = vadd.f32 %v456, %v883
      %v885 = vpop.f32.mrb[0].mxu0
      %886 = vdwg.mxu0
      %v887 = vmax.f32 %v884, 0.0
      %888 = vmatprep.subr.mxu0 0.0
      %889 = vmatpush1.msra.mxu0 %v887
      %890 = vmatprep.subr.mxu0 0.0
      %891 = vmatpush1.msra.mxu0 0.0
      %892 = vmatprep.subr.mxu0 0.0
      %893 = vmatpush1.msra.mxu0 0.0
      %894 = vmatprep.subr.mxu0 0.0
      %895 = vmatpush1.msra.mxu0 0.0
      %896 = vmatprep.subr.mxu0 0.0
      %897 = vmatpush1.msra.mxu0 0.0
      %898 = vmatprep.subr.mxu0 0.0
      %899 = vmatpush1.msra.mxu0 0.0
      %900 = vmatprep.subr.mxu0 0.0
      %901 = vmatpush1.msra.mxu0 0.0
      %902 = vmatprep.subr.mxu0 0.0
      %903 = vmatpush1.msra.mxu0 0.0
      %904 = vmatprep.subr.mxu0 0.0
      %905 = vmatpush1.msra.mxu0 0.0
      %906 = vmatprep.subr.mxu0 0.0
      %907 = vmatpush1.msra.mxu0 0.0
      %908 = vmatprep.subr.mxu0 0.0
      %909 = vmatpush1.msra.mxu0 0.0
      %910 = vmatprep.subr.mxu0 0.0
      %911 = vmatpush1.msra.mxu0 0.0
      %912 = vmatprep.subr.mxu0 0.0
      %913 = vmatpush1.msra.mxu0 0.0
      %914 = vmatprep.subr.mxu0 0.0
      %915 = vmatpush1.msra.mxu0 0.0
      %916 = vmatprep.subr.mxu0 0.0
      %917 = vmatpush1.msra.mxu0 0.0
      %918 = vmatprep.subr.mxu0 0.0
      %919 = vmatpush1.msra.mxu0 0.0
      %920 = vmatprep.subr.mxu0 0.0
      %921 = vmatpush1.msra.mxu0 0.0
      %922 = vmatprep.subr.mxu0 0.0
      %923 = vmatpush1.msra.mxu0 0.0
      %924 = vmatprep.subr.mxu0 0.0
      %925 = vmatpush1.msra.mxu0 0.0
      %926 = vmatprep.subr.mxu0 0.0
      %927 = vmatpush1.msra.mxu0 0.0
      %928 = vmatprep.subr.mxu0 0.0
      %929 = vmatpush1.msra.mxu0 0.0
      %930 = vmatprep.subr.mxu0 0.0
      %931 = vmatpush1.msra.mxu0 0.0
      %932 = vmatprep.subr.mxu0 0.0
      %933 = vmatpush1.msra.mxu0 0.0
      %934 = vmatprep.subr.mxu0 0.0
      %935 = vmatpush1.msra.mxu0 0.0
      %936 = vmatprep.subr.mxu0 0.0
      %937 = vmatpush1.msra.mxu0 0.0
      %938 = vmatprep.subr.mxu0 0.0
      %939 = vmatpush1.msra.mxu0 0.0
      %940 = vmatprep.subr.mxu0 0.0
      %941 = vmatpush1.msra.mxu0 0.0
      %942 = vmatprep.subr.mxu0 0.0
      %943 = vmatpush1.msra.mxu0 0.0
      %944 = vmatprep.subr.mxu0 0.0
      %945 = vmatpush1.msra.mxu0 0.0
      %946 = vmatprep.subr.mxu0 0.0
      %947 = vmatpush1.msra.mxu0 0.0
      %948 = vmatprep.subr.mxu0 0.0
      %949 = vmatpush1.msra.mxu0 0.0
      %950 = vmatprep.subr.mxu0 0.0
      %951 = vmatpush1.msra.mxu0 0.0
      %952 = vmatprep.mubr.f32.mxu0 0.0
      %953 = vmatmul.mubr.f32.gmra.mrb[0].mxu0 %v548
      %v954 = vpop.f32.mrb[0].mxu0
      %v955 = vadd.f32 %v540, %v954
      %v956 = vpop.f32.mrb[0].mxu0
      %957 = vmatprep.mubr.f32.mxu0 0.0
      %958 = vmatmul.mubr.f32.gmra.mrb[0].mxu0 %v551
      %v959 = vpop.f32.mrb[0].mxu0
      %v960 = vadd.f32 %v545, %v959
      %v961 = vpop.f32.mrb[0].mxu0
      %962 = vdwg.mxu0
      %v963 = vmax.f32 %v955, 0.0
      %v964 = vmax.f32 %v960, 0.0
      %v965 = vcombine.high %v742, %v742
      %v967 = vunpack.c.l.s4 1966171168
      %v968 = vunpack.c.0.s8 %v967
      %v969 = vlaneseq
      %v970 = vshrl.u32 %v969, 7
      %v971 = vsub.s32 %v968, %v970
      %v972 = vrot.slane %v742, %v971
      %v974 = vunpack.c.l.s4 1966171168
      %v975 = vunpack.c.0.s8 %v974
      %v976 = vlaneseq
      %v977 = vshrl.u32 %v976, 7
      %v978 = vsub.s32 %v975, %v977
      %v979 = vrot.slane %v965, %v978
      %v980 = vcombine.high %v972, %v972
      %v981 = vcombine.high %v979, %v979
      %v983 = vunpack.c.l.s4 1966171168
      %v984 = vunpack.c.0.s8 %v983
      %v985 = vlaneseq
      %v986 = vshrl.u32 %v985, 7
      %v987 = vsub.s32 %v984, %v986
      %v988 = vrot.slane %v972, %v987
      %v990 = vunpack.c.l.s4 1966171168
      %v991 = vunpack.c.0.s8 %v990
      %v992 = vlaneseq
      %v993 = vshrl.u32 %v992, 7
      %v994 = vsub.s32 %v991, %v993
      %v995 = vrot.slane %v979, %v994
      %v997 = vunpack.c.l.s4 1966171168
      %v998 = vunpack.c.0.s8 %v997
      %v999 = vlaneseq
      %v1000 = vshrl.u32 %v999, 7
      %v1001 = vsub.s32 %v998, %v1000
      %v1002 = vrot.slane %v980, %v1001
      %v1004 = vunpack.c.l.s4 1966171168
      %v1005 = vunpack.c.0.s8 %v1004
      %v1006 = vlaneseq
      %v1007 = vshrl.u32 %v1006, 7
      %v1008 = vsub.s32 %v1005, %v1007
      %v1009 = vrot.slane %v981, %v1008
      %v1010 = vcombine.high %v988, %v988
      %v1011 = vcombine.high %v995, %v995
      %v1012 = vcombine.high %v1002, %v1002
      %v1013 = vlaneseq
      %v1014 = vshrl.u32 %v1013, 7
      %v1015 = vsub.s32 0, %v1014
      %v1016 = vrot.slane %v988, %v1015
      %v1017 = vlaneseq
      %v1018 = vshrl.u32 %v1017, 7
      %v1019 = vsub.s32 0, %v1018
      %v1020 = vrot.slane %v1002, %v1019
      %v1021 = vlaneseq
      %v1022 = vshrl.u32 %v1021, 7
      %v1023 = vsub.s32 0, %v1022
      %v1024 = vrot.slane %v1010, %v1023
      %v1025 = vlaneseq
      %v1026 = vshrl.u32 %v1025, 7
      %v1027 = vsub.s32 0, %v1026
      %v1028 = vrot.slane %v1012, %v1027
      %v1029 = vlaneseq
      %v1030 = vshrl.u32 %v1029, 7
      %v1031 = vsub.s32 0, %v1030
      %v1032 = vrot.slane %v995, %v1031
      %v1033 = vlaneseq
      %v1034 = vshrl.u32 %v1033, 7
      %v1035 = vsub.s32 0, %v1034
      %v1036 = vrot.slane %v1009, %v1035
      %v1037 = vlaneseq
      %v1038 = vshrl.u32 %v1037, 7
      %v1039 = vsub.s32 0, %v1038
      %v1040 = vrot.slane %v1011, %v1039
      %v1048 = vmul.f32 %v1016, %v963
      %v1049 = vmul.f32 %v1016, %v964
      %v1050 = vmul.f32 %v1020, %v963
      %v1051 = vmul.f32 %v1020, %v964
      %v1052 = vmul.f32 %v1024, %v963
      %v1053 = vmul.f32 %v1024, %v964
      %v1054 = vmul.f32 %v1028, %v963
      %v1055 = vmul.f32 %v1028, %v964
      %v1056 = vmul.f32 %v1032, %v963
      %v1057 = vmul.f32 %v1032, %v964
      %v1058 = vmul.f32 %v1036, %v963
      %v1059 = vmul.f32 %v1036, %v964
      %v1060 = vmul.f32 %v1040, %v963
      %v1061 = vmul.f32 %v1040, %v964
      %v1062 = vadd.f32 %v727, %v1048
      %v1063 = vadd.f32 %v728, %v1049
      %v1064 = vadd.f32 %v729, %v1050
      %v1065 = vadd.f32 %v730, %v1051
      %v1066 = vadd.f32 %v731, %v1052
      %v1067 = vadd.f32 %v732, %v1053
      %v1068 = vadd.f32 %v733, %v1054
      %v1069 = vadd.f32 %v734, %v1055
      %v1070 = vadd.f32 %v735, %v1056
      %v1071 = vadd.f32 %v736, %v1057
      %v1072 = vadd.f32 %v737, %v1058
      %v1073 = vadd.f32 %v738, %v1059
      %v1074 = vadd.f32 %v739, %v1060
      %v1075 = vadd.f32 %v740, %v1061
      %s1076 = scalar_lea.vmem %s355, 16
      %v1077 = vld [vmem:[%s1076] sm:$0x7f]
      %v1079 = vsel %vm376, %v1077, 0
      %1081 = vmatprep.subr.mxu0 0.0
      %1082 = vmatpush1.msra.mxu0 %v1079
      %1083 = vmatprep.subr.mxu0 0.0
      %1084 = vmatpush1.msra.mxu0 0.0
      %1085 = vmatprep.subr.mxu0 0.0
      %1086 = vmatpush1.msra.mxu0 0.0
      %1087 = vmatprep.subr.mxu0 0.0
      %1088 = vmatpush1.msra.mxu0 0.0
      %1089 = vmatprep.subr.mxu0 0.0
      %1090 = vmatpush1.msra.mxu0 0.0
      %1091 = vmatprep.subr.mxu0 0.0
      %1092 = vmatpush1.msra.mxu0 0.0
      %1093 = vmatprep.subr.mxu0 0.0
      %1094 = vmatpush1.msra.mxu0 0.0
      %1095 = vmatprep.subr.mxu0 0.0
      %1096 = vmatpush1.msra.mxu0 0.0
      %1097 = vmatprep.subr.mxu0 0.0
      %1098 = vmatpush1.msra.mxu0 0.0
      %1099 = vmatprep.subr.mxu0 0.0
      %1100 = vmatpush1.msra.mxu0 0.0
      %1101 = vmatprep.subr.mxu0 0.0
      %1102 = vmatpush1.msra.mxu0 0.0
      %1103 = vmatprep.subr.mxu0 0.0
      %1104 = vmatpush1.msra.mxu0 0.0
      %1105 = vmatprep.subr.mxu0 0.0
      %1106 = vmatpush1.msra.mxu0 0.0
      %1107 = vmatprep.subr.mxu0 0.0
      %1108 = vmatpush1.msra.mxu0 0.0
      %1109 = vmatprep.subr.mxu0 0.0
      %1110 = vmatpush1.msra.mxu0 0.0
      %1111 = vmatprep.subr.mxu0 0.0
      %1112 = vmatpush1.msra.mxu0 0.0
      %1113 = vmatprep.subr.mxu0 0.0
      %1114 = vmatpush1.msra.mxu0 0.0
      %1115 = vmatprep.subr.mxu0 0.0
      %1116 = vmatpush1.msra.mxu0 0.0
      %1117 = vmatprep.subr.mxu0 0.0
      %1118 = vmatpush1.msra.mxu0 0.0
      %1119 = vmatprep.subr.mxu0 0.0
      %1120 = vmatpush1.msra.mxu0 0.0
      %1121 = vmatprep.subr.mxu0 0.0
      %1122 = vmatpush1.msra.mxu0 0.0
      %1123 = vmatprep.subr.mxu0 0.0
      %1124 = vmatpush1.msra.mxu0 0.0
      %1125 = vmatprep.subr.mxu0 0.0
      %1126 = vmatpush1.msra.mxu0 0.0
      %1127 = vmatprep.subr.mxu0 0.0
      %1128 = vmatpush1.msra.mxu0 0.0
      %1129 = vmatprep.subr.mxu0 0.0
      %1130 = vmatpush1.msra.mxu0 0.0
      %1131 = vmatprep.subr.mxu0 0.0
      %1132 = vmatpush1.msra.mxu0 0.0
      %1133 = vmatprep.subr.mxu0 0.0
      %1134 = vmatpush1.msra.mxu0 0.0
      %1135 = vmatprep.subr.mxu0 0.0
      %1136 = vmatpush1.msra.mxu0 0.0
      %1137 = vmatprep.subr.mxu0 0.0
      %1138 = vmatpush1.msra.mxu0 0.0
      %1139 = vmatprep.subr.mxu0 0.0
      %1140 = vmatpush1.msra.mxu0 0.0
      %1141 = vmatprep.subr.mxu0 0.0
      %1142 = vmatpush1.msra.mxu0 0.0
      %1143 = vmatprep.subr.mxu0 0.0
      %1144 = vmatpush1.msra.mxu0 0.0
      %1145 = vmatprep.mubr.f32.mxu0 0.0
      %1146 = vmatmul.mubr.f32.gmra.mrb[0].mxu0 %v374
      %v1147 = vpop.f32.mrb[0].mxu0
      %v1148 = vadd.f32 %v370, %v1147
      %v1149 = vpop.f32.mrb[0].mxu0
      %1150 = vdwg.mxu0
      %v1151 = vmax.f32 %v1148, 0.0
      %1152 = vmatprep.subr.mxu0 0.0
      %1153 = vmatpush1.msra.mxu0 %v1151
      %1154 = vmatprep.subr.mxu0 0.0
      %1155 = vmatpush1.msra.mxu0 0.0
      %1156 = vmatprep.subr.mxu0 0.0
      %1157 = vmatpush1.msra.mxu0 0.0
      %1158 = vmatprep.subr.mxu0 0.0
      %1159 = vmatpush1.msra.mxu0 0.0
      %1160 = vmatprep.subr.mxu0 0.0
      %1161 = vmatpush1.msra.mxu0 0.0
      %1162 = vmatprep.subr.mxu0 0.0
      %1163 = vmatpush1.msra.mxu0 0.0
      %1164 = vmatprep.subr.mxu0 0.0
      %1165 = vmatpush1.msra.mxu0 0.0
      %1166 = vmatprep.subr.mxu0 0.0
      %1167 = vmatpush1.msra.mxu0 0.0
      %1168 = vmatprep.subr.mxu0 0.0
      %1169 = vmatpush1.msra.mxu0 0.0
      %1170 = vmatprep.subr.mxu0 0.0
      %1171 = vmatpush1.msra.mxu0 0.0
      %1172 = vmatprep.subr.mxu0 0.0
      %1173 = vmatpush1.msra.mxu0 0.0
      %1174 = vmatprep.subr.mxu0 0.0
      %1175 = vmatpush1.msra.mxu0 0.0
      %1176 = vmatprep.subr.mxu0 0.0
      %1177 = vmatpush1.msra.mxu0 0.0
      %1178 = vmatprep.subr.mxu0 0.0
      %1179 = vmatpush1.msra.mxu0 0.0
      %1180 = vmatprep.subr.mxu0 0.0
      %1181 = vmatpush1.msra.mxu0 0.0
      %1182 = vmatprep.subr.mxu0 0.0
      %1183 = vmatpush1.msra.mxu0 0.0
      %1184 = vmatprep.subr.mxu0 0.0
      %1185 = vmatpush1.msra.mxu0 0.0
      %1186 = vmatprep.subr.mxu0 0.0
      %1187 = vmatpush1.msra.mxu0 0.0
      %1188 = vmatprep.subr.mxu0 0.0
      %1189 = vmatpush1.msra.mxu0 0.0
      %1190 = vmatprep.subr.mxu0 0.0
      %1191 = vmatpush1.msra.mxu0 0.0
      %1192 = vmatprep.subr.mxu0 0.0
      %1193 = vmatpush1.msra.mxu0 0.0
      %1194 = vmatprep.subr.mxu0 0.0
      %1195 = vmatpush1.msra.mxu0 0.0
      %1196 = vmatprep.subr.mxu0 0.0
      %1197 = vmatpush1.msra.mxu0 0.0
      %1198 = vmatprep.subr.mxu0 0.0
      %1199 = vmatpush1.msra.mxu0 0.0
      %1200 = vmatprep.subr.mxu0 0.0
      %1201 = vmatpush1.msra.mxu0 0.0
      %1202 = vmatprep.subr.mxu0 0.0
      %1203 = vmatpush1.msra.mxu0 0.0
      %1204 = vmatprep.subr.mxu0 0.0
      %1205 = vmatpush1.msra.mxu0 0.0
      %1206 = vmatprep.subr.mxu0 0.0
      %1207 = vmatpush1.msra.mxu0 0.0
      %1208 = vmatprep.subr.mxu0 0.0
      %1209 = vmatpush1.msra.mxu0 0.0
      %1210 = vmatprep.subr.mxu0 0.0
      %1211 = vmatpush1.msra.mxu0 0.0
      %1212 = vmatprep.subr.mxu0 0.0
      %1213 = vmatpush1.msra.mxu0 0.0
      %1214 = vmatprep.subr.mxu0 0.0
      %1215 = vmatpush1.msra.mxu0 0.0
      %1216 = vmatprep.mubr.f32.mxu0 0.0
      %1217 = vmatmul.mubr.f32.gmra.mrb[0].mxu0 %v460
      %v1218 = vpop.f32.mrb[0].mxu0
      %v1219 = vadd.f32 %v456, %v1218
      %v1220 = vpop.f32.mrb[0].mxu0
      %1221 = vdwg.mxu0
      %v1222 = vmax.f32 %v1219, 0.0
      %1223 = vmatprep.subr.mxu0 0.0
      %1224 = vmatpush1.msra.mxu0 %v1222
      %1225 = vmatprep.subr.mxu0 0.0
      %1226 = vmatpush1.msra.mxu0 0.0
      %1227 = vmatprep.subr.mxu0 0.0
      %1228 = vmatpush1.msra.mxu0 0.0
      %1229 = vmatprep.subr.mxu0 0.0
      %1230 = vmatpush1.msra.mxu0 0.0
      %1231 = vmatprep.subr.mxu0 0.0
      %1232 = vmatpush1.msra.mxu0 0.0
      %1233 = vmatprep.subr.mxu0 0.0
      %1234 = vmatpush1.msra.mxu0 0.0
      %1235 = vmatprep.subr.mxu0 0.0
      %1236 = vmatpush1.msra.mxu0 0.0
      %1237 = vmatprep.subr.mxu0 0.0
      %1238 = vmatpush1.msra.mxu0 0.0
      %1239 = vmatprep.subr.mxu0 0.0
      %1240 = vmatpush1.msra.mxu0 0.0
      %1241 = vmatprep.subr.mxu0 0.0
      %1242 = vmatpush1.msra.mxu0 0.0
      %1243 = vmatprep.subr.mxu0 0.0
      %1244 = vmatpush1.msra.mxu0 0.0
      %1245 = vmatprep.subr.mxu0 0.0
      %1246 = vmatpush1.msra.mxu0 0.0
      %1247 = vmatprep.subr.mxu0 0.0
      %1248 = vmatpush1.msra.mxu0 0.0
      %1249 = vmatprep.subr.mxu0 0.0
      %1250 = vmatpush1.msra.mxu0 0.0
      %1251 = vmatprep.subr.mxu0 0.0
      %1252 = vmatpush1.msra.mxu0 0.0
      %1253 = vmatprep.subr.mxu0 0.0
      %1254 = vmatpush1.msra.mxu0 0.0
      %1255 = vmatprep.subr.mxu0 0.0
      %1256 = vmatpush1.msra.mxu0 0.0
      %1257 = vmatprep.subr.mxu0 0.0
      %1258 = vmatpush1.msra.mxu0 0.0
      %1259 = vmatprep.subr.mxu0 0.0
      %1260 = vmatpush1.msra.mxu0 0.0
      %1261 = vmatprep.subr.mxu0 0.0
      %1262 = vmatpush1.msra.mxu0 0.0
      %1263 = vmatprep.subr.mxu0 0.0
      %1264 = vmatpush1.msra.mxu0 0.0
      %1265 = vmatprep.subr.mxu0 0.0
      %1266 = vmatpush1.msra.mxu0 0.0
      %1267 = vmatprep.subr.mxu0 0.0
      %1268 = vmatpush1.msra.mxu0 0.0
      %1269 = vmatprep.subr.mxu0 0.0
      %1270 = vmatpush1.msra.mxu0 0.0
      %1271 = vmatprep.subr.mxu0 0.0
      %1272 = vmatpush1.msra.mxu0 0.0
      %1273 = vmatprep.subr.mxu0 0.0
      %1274 = vmatpush1.msra.mxu0 0.0
      %1275 = vmatprep.subr.mxu0 0.0
      %1276 = vmatpush1.msra.mxu0 0.0
      %1277 = vmatprep.subr.mxu0 0.0
      %1278 = vmatpush1.msra.mxu0 0.0
      %1279 = vmatprep.subr.mxu0 0.0
      %1280 = vmatpush1.msra.mxu0 0.0
      %1281 = vmatprep.subr.mxu0 0.0
      %1282 = vmatpush1.msra.mxu0 0.0
      %1283 = vmatprep.subr.mxu0 0.0
      %1284 = vmatpush1.msra.mxu0 0.0
      %1285 = vmatprep.subr.mxu0 0.0
      %1286 = vmatpush1.msra.mxu0 0.0
      %1287 = vmatprep.mubr.f32.mxu0 0.0
      %1288 = vmatmul.mubr.f32.gmra.mrb[0].mxu0 %v548
      %v1289 = vpop.f32.mrb[0].mxu0
      %v1290 = vadd.f32 %v540, %v1289
      %v1291 = vpop.f32.mrb[0].mxu0
      %1292 = vmatprep.mubr.f32.mxu0 0.0
      %1293 = vmatmul.mubr.f32.gmra.mrb[0].mxu0 %v551
      %v1294 = vpop.f32.mrb[0].mxu0
      %v1295 = vadd.f32 %v545, %v1294
      %v1296 = vpop.f32.mrb[0].mxu0
      %1297 = vdwg.mxu0
      %v1298 = vmax.f32 %v1290, 0.0
      %v1299 = vmax.f32 %v1295, 0.0
      %v1300 = vcombine.high %v1077, %v1077
      %v1302 = vunpack.c.l.s4 1966171168
      %v1303 = vunpack.c.0.s8 %v1302
      %v1304 = vlaneseq
      %v1305 = vshrl.u32 %v1304, 7
      %v1306 = vsub.s32 %v1303, %v1305
      %v1307 = vrot.slane %v1077, %v1306
      %v1309 = vunpack.c.l.s4 1966171168
      %v1310 = vunpack.c.0.s8 %v1309
      %v1311 = vlaneseq
      %v1312 = vshrl.u32 %v1311, 7
      %v1313 = vsub.s32 %v1310, %v1312
      %v1314 = vrot.slane %v1300, %v1313
      %v1315 = vcombine.high %v1307, %v1307
      %v1316 = vcombine.high %v1314, %v1314
      %v1318 = vunpack.c.l.s4 1966171168
      %v1319 = vunpack.c.0.s8 %v1318
      %v1320 = vlaneseq
      %v1321 = vshrl.u32 %v1320, 7
      %v1322 = vsub.s32 %v1319, %v1321
      %v1323 = vrot.slane %v1307, %v1322
      %v1325 = vunpack.c.l.s4 1966171168
      %v1326 = vunpack.c.0.s8 %v1325
      %v1327 = vlaneseq
      %v1328 = vshrl.u32 %v1327, 7
      %v1329 = vsub.s32 %v1326, %v1328
      %v1330 = vrot.slane %v1314, %v1329
      %v1332 = vunpack.c.l.s4 1966171168
      %v1333 = vunpack.c.0.s8 %v1332
      %v1334 = vlaneseq
      %v1335 = vshrl.u32 %v1334, 7
      %v1336 = vsub.s32 %v1333, %v1335
      %v1337 = vrot.slane %v1315, %v1336
      %v1339 = vunpack.c.l.s4 1966171168
      %v1340 = vunpack.c.0.s8 %v1339
      %v1341 = vlaneseq
      %v1342 = vshrl.u32 %v1341, 7
      %v1343 = vsub.s32 %v1340, %v1342
      %v1344 = vrot.slane %v1316, %v1343
      %v1345 = vcombine.high %v1323, %v1323
      %v1346 = vcombine.high %v1330, %v1330
      %v1347 = vcombine.high %v1337, %v1337
      %v1348 = vlaneseq
      %v1349 = vshrl.u32 %v1348, 7
      %v1350 = vsub.s32 0, %v1349
      %v1351 = vrot.slane %v1323, %v1350
      %v1352 = vlaneseq
      %v1353 = vshrl.u32 %v1352, 7
      %v1354 = vsub.s32 0, %v1353
      %v1355 = vrot.slane %v1337, %v1354
      %v1356 = vlaneseq
      %v1357 = vshrl.u32 %v1356, 7
      %v1358 = vsub.s32 0, %v1357
      %v1359 = vrot.slane %v1345, %v1358
      %v1360 = vlaneseq
      %v1361 = vshrl.u32 %v1360, 7
      %v1362 = vsub.s32 0, %v1361
      %v1363 = vrot.slane %v1347, %v1362
      %v1364 = vlaneseq
      %v1365 = vshrl.u32 %v1364, 7
      %v1366 = vsub.s32 0, %v1365
      %v1367 = vrot.slane %v1330, %v1366
      %v1368 = vlaneseq
      %v1369 = vshrl.u32 %v1368, 7
      %v1370 = vsub.s32 0, %v1369
      %v1371 = vrot.slane %v1344, %v1370
      %v1372 = vlaneseq
      %v1373 = vshrl.u32 %v1372, 7
      %v1374 = vsub.s32 0, %v1373
      %v1375 = vrot.slane %v1346, %v1374
      %v1383 = vmul.f32 %v1351, %v1298
      %v1384 = vmul.f32 %v1351, %v1299
      %v1385 = vmul.f32 %v1355, %v1298
      %v1386 = vmul.f32 %v1355, %v1299
      %v1387 = vmul.f32 %v1359, %v1298
      %v1388 = vmul.f32 %v1359, %v1299
      %v1389 = vmul.f32 %v1363, %v1298
      %v1390 = vmul.f32 %v1363, %v1299
      %v1391 = vmul.f32 %v1367, %v1298
      %v1392 = vmul.f32 %v1367, %v1299
      %v1393 = vmul.f32 %v1371, %v1298
      %v1394 = vmul.f32 %v1371, %v1299
      %v1395 = vmul.f32 %v1375, %v1298
      %v1396 = vmul.f32 %v1375, %v1299
      %v1397 = vadd.f32 %v1062, %v1383
      %v1398 = vadd.f32 %v1063, %v1384
      %v1399 = vadd.f32 %v1064, %v1385
      %v1400 = vadd.f32 %v1065, %v1386
      %v1401 = vadd.f32 %v1066, %v1387
      %v1402 = vadd.f32 %v1067, %v1388
      %v1403 = vadd.f32 %v1068, %v1389
      %v1404 = vadd.f32 %v1069, %v1390
      %v1405 = vadd.f32 %v1070, %v1391
      %v1406 = vadd.f32 %v1071, %v1392
      %v1407 = vadd.f32 %v1072, %v1393
      %v1408 = vadd.f32 %v1073, %v1394
      %v1409 = vadd.f32 %v1074, %v1395
      %v1410 = vadd.f32 %v1075, %v1396
      %s1411 = scalar_lea.vmem %s355, 24
      %v1412 = vld [vmem:[%s1411] sm:$0x7f]
      %v1414 = vsel %vm376, %v1412, 0
      %1416 = vmatprep.subr.mxu0 0.0
      %1417 = vmatpush1.msra.mxu0 %v1414
      %1418 = vmatprep.subr.mxu0 0.0
      %1419 = vmatpush1.msra.mxu0 0.0
      %1420 = vmatprep.subr.mxu0 0.0
      %1421 = vmatpush1.msra.mxu0 0.0
      %1422 = vmatprep.subr.mxu0 0.0
      %1423 = vmatpush1.msra.mxu0 0.0
      %1424 = vmatprep.subr.mxu0 0.0
      %1425 = vmatpush1.msra.mxu0 0.0
      %1426 = vmatprep.subr.mxu0 0.0
      %1427 = vmatpush1.msra.mxu0 0.0
      %1428 = vmatprep.subr.mxu0 0.0
      %1429 = vmatpush1.msra.mxu0 0.0
      %1430 = vmatprep.subr.mxu0 0.0
      %1431 = vmatpush1.msra.mxu0 0.0
      %1432 = vmatprep.subr.mxu0 0.0
      %1433 = vmatpush1.msra.mxu0 0.0
      %1434 = vmatprep.subr.mxu0 0.0
      %1435 = vmatpush1.msra.mxu0 0.0
      %1436 = vmatprep.subr.mxu0 0.0
      %1437 = vmatpush1.msra.mxu0 0.0
      %1438 = vmatprep.subr.mxu0 0.0
      %1439 = vmatpush1.msra.mxu0 0.0
      %1440 = vmatprep.subr.mxu0 0.0
      %1441 = vmatpush1.msra.mxu0 0.0
      %1442 = vmatprep.subr.mxu0 0.0
      %1443 = vmatpush1.msra.mxu0 0.0
      %1444 = vmatprep.subr.mxu0 0.0
      %1445 = vmatpush1.msra.mxu0 0.0
      %1446 = vmatprep.subr.mxu0 0.0
      %1447 = vmatpush1.msra.mxu0 0.0
      %1448 = vmatprep.subr.mxu0 0.0
      %1449 = vmatpush1.msra.mxu0 0.0
      %1450 = vmatprep.subr.mxu0 0.0
      %1451 = vmatpush1.msra.mxu0 0.0
      %1452 = vmatprep.subr.mxu0 0.0
      %1453 = vmatpush1.msra.mxu0 0.0
      %1454 = vmatprep.subr.mxu0 0.0
      %1455 = vmatpush1.msra.mxu0 0.0
      %1456 = vmatprep.subr.mxu0 0.0
      %1457 = vmatpush1.msra.mxu0 0.0
      %1458 = vmatprep.subr.mxu0 0.0
      %1459 = vmatpush1.msra.mxu0 0.0
      %1460 = vmatprep.subr.mxu0 0.0
      %1461 = vmatpush1.msra.mxu0 0.0
      %1462 = vmatprep.subr.mxu0 0.0
      %1463 = vmatpush1.msra.mxu0 0.0
      %1464 = vmatprep.subr.mxu0 0.0
      %1465 = vmatpush1.msra.mxu0 0.0
      %1466 = vmatprep.subr.mxu0 0.0
      %1467 = vmatpush1.msra.mxu0 0.0
      %1468 = vmatprep.subr.mxu0 0.0
      %1469 = vmatpush1.msra.mxu0 0.0
      %1470 = vmatprep.subr.mxu0 0.0
      %1471 = vmatpush1.msra.mxu0 0.0
      %1472 = vmatprep.subr.mxu0 0.0
      %1473 = vmatpush1.msra.mxu0 0.0
      %1474 = vmatprep.subr.mxu0 0.0
      %1475 = vmatpush1.msra.mxu0 0.0
      %1476 = vmatprep.subr.mxu0 0.0
      %1477 = vmatpush1.msra.mxu0 0.0
      %1478 = vmatprep.subr.mxu0 0.0
      %1479 = vmatpush1.msra.mxu0 0.0
      %1480 = vmatprep.mubr.f32.mxu0 0.0
      %1481 = vmatmul.mubr.f32.gmra.mrb[0].mxu0 %v374
      %v1482 = vpop.f32.mrb[0].mxu0
      %v1483 = vadd.f32 %v370, %v1482
      %v1484 = vpop.f32.mrb[0].mxu0
      %1485 = vdwg.mxu0
      %v1486 = vmax.f32 %v1483, 0.0
      %1487 = vmatprep.subr.mxu0 0.0
      %1488 = vmatpush1.msra.mxu0 %v1486
      %1489 = vmatprep.subr.mxu0 0.0
      %1490 = vmatpush1.msra.mxu0 0.0
      %1491 = vmatprep.subr.mxu0 0.0
      %1492 = vmatpush1.msra.mxu0 0.0
      %1493 = vmatprep.subr.mxu0 0.0
      %1494 = vmatpush1.msra.mxu0 0.0
      %1495 = vmatprep.subr.mxu0 0.0
      %1496 = vmatpush1.msra.mxu0 0.0
      %1497 = vmatprep.subr.mxu0 0.0
      %1498 = vmatpush1.msra.mxu0 0.0
      %1499 = vmatprep.subr.mxu0 0.0
      %1500 = vmatpush1.msra.mxu0 0.0
      %1501 = vmatprep.subr.mxu0 0.0
      %1502 = vmatpush1.msra.mxu0 0.0
      %1503 = vmatprep.subr.mxu0 0.0
      %1504 = vmatpush1.msra.mxu0 0.0
      %1505 = vmatprep.subr.mxu0 0.0
      %1506 = vmatpush1.msra.mxu0 0.0
      %1507 = vmatprep.subr.mxu0 0.0
      %1508 = vmatpush1.msra.mxu0 0.0
      %1509 = vmatprep.subr.mxu0 0.0
      %1510 = vmatpush1.msra.mxu0 0.0
      %1511 = vmatprep.subr.mxu0 0.0
      %1512 = vmatpush1.msra.mxu0 0.0
      %1513 = vmatprep.subr.mxu0 0.0
      %1514 = vmatpush1.msra.mxu0 0.0
      %1515 = vmatprep.subr.mxu0 0.0
      %1516 = vmatpush1.msra.mxu0 0.0
      %1517 = vmatprep.subr.mxu0 0.0
      %1518 = vmatpush1.msra.mxu0 0.0
      %1519 = vmatprep.subr.mxu0 0.0
      %1520 = vmatpush1.msra.mxu0 0.0
      %1521 = vmatprep.subr.mxu0 0.0
      %1522 = vmatpush1.msra.mxu0 0.0
      %1523 = vmatprep.subr.mxu0 0.0
      %1524 = vmatpush1.msra.mxu0 0.0
      %1525 = vmatprep.subr.mxu0 0.0
      %1526 = vmatpush1.msra.mxu0 0.0
      %1527 = vmatprep.subr.mxu0 0.0
      %1528 = vmatpush1.msra.mxu0 0.0
      %1529 = vmatprep.subr.mxu0 0.0
      %1530 = vmatpush1.msra.mxu0 0.0
      %1531 = vmatprep.subr.mxu0 0.0
      %1532 = vmatpush1.msra.mxu0 0.0
      %1533 = vmatprep.subr.mxu0 0.0
      %1534 = vmatpush1.msra.mxu0 0.0
      %1535 = vmatprep.subr.mxu0 0.0
      %1536 = vmatpush1.msra.mxu0 0.0
      %1537 = vmatprep.subr.mxu0 0.0
      %1538 = vmatpush1.msra.mxu0 0.0
      %1539 = vmatprep.subr.mxu0 0.0
      %1540 = vmatpush1.msra.mxu0 0.0
      %1541 = vmatprep.subr.mxu0 0.0
      %1542 = vmatpush1.msra.mxu0 0.0
      %1543 = vmatprep.subr.mxu0 0.0
      %1544 = vmatpush1.msra.mxu0 0.0
      %1545 = vmatprep.subr.mxu0 0.0
      %1546 = vmatpush1.msra.mxu0 0.0
      %1547 = vmatprep.subr.mxu0 0.0
      %1548 = vmatpush1.msra.mxu0 0.0
      %1549 = vmatprep.subr.mxu0 0.0
      %1550 = vmatpush1.msra.mxu0 0.0
      %1551 = vmatprep.mubr.f32.mxu0 0.0
      %1552 = vmatmul.mubr.f32.gmra.mrb[0].mxu0 %v460
      %v1553 = vpop.f32.mrb[0].mxu0
      %v1554 = vadd.f32 %v456, %v1553
      %v1555 = vpop.f32.mrb[0].mxu0
      %1556 = vdwg.mxu0
      %v1557 = vmax.f32 %v1554, 0.0
      %1558 = vmatprep.subr.mxu0 0.0
      %1559 = vmatpush1.msra.mxu0 %v1557
      %1560 = vmatprep.subr.mxu0 0.0
      %1561 = vmatpush1.msra.mxu0 0.0
      %1562 = vmatprep.subr.mxu0 0.0
      %1563 = vmatpush1.msra.mxu0 0.0
      %1564 = vmatprep.subr.mxu0 0.0
      %1565 = vmatpush1.msra.mxu0 0.0
      %1566 = vmatprep.subr.mxu0 0.0
      %1567 = vmatpush1.msra.mxu0 0.0
      %1568 = vmatprep.subr.mxu0 0.0
      %1569 = vmatpush1.msra.mxu0 0.0
      %1570 = vmatprep.subr.mxu0 0.0
      %1571 = vmatpush1.msra.mxu0 0.0
      %1572 = vmatprep.subr.mxu0 0.0
      %1573 = vmatpush1.msra.mxu0 0.0
      %1574 = vmatprep.subr.mxu0 0.0
      %1575 = vmatpush1.msra.mxu0 0.0
      %1576 = vmatprep.subr.mxu0 0.0
      %1577 = vmatpush1.msra.mxu0 0.0
      %1578 = vmatprep.subr.mxu0 0.0
      %1579 = vmatpush1.msra.mxu0 0.0
      %1580 = vmatprep.subr.mxu0 0.0
      %1581 = vmatpush1.msra.mxu0 0.0
      %1582 = vmatprep.subr.mxu0 0.0
      %1583 = vmatpush1.msra.mxu0 0.0
      %1584 = vmatprep.subr.mxu0 0.0
      %1585 = vmatpush1.msra.mxu0 0.0
      %1586 = vmatprep.subr.mxu0 0.0
      %1587 = vmatpush1.msra.mxu0 0.0
      %1588 = vmatprep.subr.mxu0 0.0
      %1589 = vmatpush1.msra.mxu0 0.0
      %1590 = vmatprep.subr.mxu0 0.0
      %1591 = vmatpush1.msra.mxu0 0.0
      %1592 = vmatprep.subr.mxu0 0.0
      %1593 = vmatpush1.msra.mxu0 0.0
      %1594 = vmatprep.subr.mxu0 0.0
      %1595 = vmatpush1.msra.mxu0 0.0
      %1596 = vmatprep.subr.mxu0 0.0
      %1597 = vmatpush1.msra.mxu0 0.0
      %1598 = vmatprep.subr.mxu0 0.0
      %1599 = vmatpush1.msra.mxu0 0.0
      %1600 = vmatprep.subr.mxu0 0.0
      %1601 = vmatpush1.msra.mxu0 0.0
      %1602 = vmatprep.subr.mxu0 0.0
      %1603 = vmatpush1.msra.mxu0 0.0
      %1604 = vmatprep.subr.mxu0 0.0
      %1605 = vmatpush1.msra.mxu0 0.0
      %1606 = vmatprep.subr.mxu0 0.0
      %1607 = vmatpush1.msra.mxu0 0.0
      %1608 = vmatprep.subr.mxu0 0.0
      %1609 = vmatpush1.msra.mxu0 0.0
      %1610 = vmatprep.subr.mxu0 0.0
      %1611 = vmatpush1.msra.mxu0 0.0
      %1612 = vmatprep.subr.mxu0 0.0
      %1613 = vmatpush1.msra.mxu0 0.0
      %1614 = vmatprep.subr.mxu0 0.0
      %1615 = vmatpush1.msra.mxu0 0.0
      %1616 = vmatprep.subr.mxu0 0.0
      %1617 = vmatpush1.msra.mxu0 0.0
      %1618 = vmatprep.subr.mxu0 0.0
      %1619 = vmatpush1.msra.mxu0 0.0
      %1620 = vmatprep.subr.mxu0 0.0
      %1621 = vmatpush1.msra.mxu0 0.0
      %1622 = vmatprep.mubr.f32.mxu0 0.0
      %1623 = vmatmul.mubr.f32.gmra.mrb[0].mxu0 %v548
      %v1624 = vpop.f32.mrb[0].mxu0
      %v1625 = vadd.f32 %v540, %v1624
      %v1626 = vpop.f32.mrb[0].mxu0
      %1627 = vmatprep.mubr.f32.mxu0 0.0
      %1628 = vmatmul.mubr.f32.gmra.mrb[0].mxu0 %v551
      %v1629 = vpop.f32.mrb[0].mxu0
      %v1630 = vadd.f32 %v545, %v1629
      %v1631 = vpop.f32.mrb[0].mxu0
      %1632 = vdwg.mxu0
      %v1633 = vmax.f32 %v1625, 0.0
      %v1634 = vmax.f32 %v1630, 0.0
      %v1635 = vcombine.high %v1412, %v1412
      %v1637 = vunpack.c.l.s4 1966171168
      %v1638 = vunpack.c.0.s8 %v1637
      %v1639 = vlaneseq
      %v1640 = vshrl.u32 %v1639, 7
      %v1641 = vsub.s32 %v1638, %v1640
      %v1642 = vrot.slane %v1412, %v1641
      %v1644 = vunpack.c.l.s4 1966171168
      %v1645 = vunpack.c.0.s8 %v1644
      %v1646 = vlaneseq
      %v1647 = vshrl.u32 %v1646, 7
      %v1648 = vsub.s32 %v1645, %v1647
      %v1649 = vrot.slane %v1635, %v1648
      %v1650 = vcombine.high %v1642, %v1642
      %v1651 = vcombine.high %v1649, %v1649
      %v1653 = vunpack.c.l.s4 1966171168
      %v1654 = vunpack.c.0.s8 %v1653
      %v1655 = vlaneseq
      %v1656 = vshrl.u32 %v1655, 7
      %v1657 = vsub.s32 %v1654, %v1656
      %v1658 = vrot.slane %v1642, %v1657
      %v1660 = vunpack.c.l.s4 1966171168
      %v1661 = vunpack.c.0.s8 %v1660
      %v1662 = vlaneseq
      %v1663 = vshrl.u32 %v1662, 7
      %v1664 = vsub.s32 %v1661, %v1663
      %v1665 = vrot.slane %v1649, %v1664
      %v1667 = vunpack.c.l.s4 1966171168
      %v1668 = vunpack.c.0.s8 %v1667
      %v1669 = vlaneseq
      %v1670 = vshrl.u32 %v1669, 7
      %v1671 = vsub.s32 %v1668, %v1670
      %v1672 = vrot.slane %v1650, %v1671
      %v1674 = vunpack.c.l.s4 1966171168
      %v1675 = vunpack.c.0.s8 %v1674
      %v1676 = vlaneseq
      %v1677 = vshrl.u32 %v1676, 7
      %v1678 = vsub.s32 %v1675, %v1677
      %v1679 = vrot.slane %v1651, %v1678
      %v1680 = vcombine.high %v1658, %v1658
      %v1681 = vcombine.high %v1665, %v1665
      %v1682 = vcombine.high %v1672, %v1672
      %v1683 = vlaneseq
      %v1684 = vshrl.u32 %v1683, 7
      %v1685 = vsub.s32 0, %v1684
      %v1686 = vrot.slane %v1658, %v1685
      %v1687 = vlaneseq
      %v1688 = vshrl.u32 %v1687, 7
      %v1689 = vsub.s32 0, %v1688
      %v1690 = vrot.slane %v1672, %v1689
      %v1691 = vlaneseq
      %v1692 = vshrl.u32 %v1691, 7
      %v1693 = vsub.s32 0, %v1692
      %v1694 = vrot.slane %v1680, %v1693
      %v1695 = vlaneseq
      %v1696 = vshrl.u32 %v1695, 7
      %v1697 = vsub.s32 0, %v1696
      %v1698 = vrot.slane %v1682, %v1697
      %v1699 = vlaneseq
      %v1700 = vshrl.u32 %v1699, 7
      %v1701 = vsub.s32 0, %v1700
      %v1702 = vrot.slane %v1665, %v1701
      %v1703 = vlaneseq
      %v1704 = vshrl.u32 %v1703, 7
      %v1705 = vsub.s32 0, %v1704
      %v1706 = vrot.slane %v1679, %v1705
      %v1707 = vlaneseq
      %v1708 = vshrl.u32 %v1707, 7
      %v1709 = vsub.s32 0, %v1708
      %v1710 = vrot.slane %v1681, %v1709
      %v1718 = vmul.f32 %v1686, %v1633
      %v1719 = vmul.f32 %v1686, %v1634
      %v1720 = vmul.f32 %v1690, %v1633
      %v1721 = vmul.f32 %v1690, %v1634
      %v1722 = vmul.f32 %v1694, %v1633
      %v1723 = vmul.f32 %v1694, %v1634
      %v1724 = vmul.f32 %v1698, %v1633
      %v1725 = vmul.f32 %v1698, %v1634
      %v1726 = vmul.f32 %v1702, %v1633
      %v1727 = vmul.f32 %v1702, %v1634
      %v1728 = vmul.f32 %v1706, %v1633
      %v1729 = vmul.f32 %v1706, %v1634
      %v1730 = vmul.f32 %v1710, %v1633
      %v1731 = vmul.f32 %v1710, %v1634
      %v1732 = vadd.f32 %v1397, %v1718
      %v1733 = vadd.f32 %v1398, %v1719
      %v1734 = vadd.f32 %v1399, %v1720
      %v1735 = vadd.f32 %v1400, %v1721
      %v1736 = vadd.f32 %v1401, %v1722
      %v1737 = vadd.f32 %v1402, %v1723
      %v1738 = vadd.f32 %v1403, %v1724
      %v1739 = vadd.f32 %v1404, %v1725
      %v1740 = vadd.f32 %v1405, %v1726
      %v1741 = vadd.f32 %v1406, %v1727
      %v1742 = vadd.f32 %v1407, %v1728
      %v1743 = vadd.f32 %v1408, %v1729
      %v1744 = vadd.f32 %v1409, %v1730
      %v1745 = vadd.f32 %v1410, %v1731
      %s1746 = scalar_lea.vmem %s355, 32
      %v1747 = vld [vmem:[%s1746] sm:$0x7f]
      %v1749 = vsel %vm376, %v1747, 0
      %1751 = vmatprep.subr.mxu0 0.0
      %1752 = vmatpush1.msra.mxu0 %v1749
      %1753 = vmatprep.subr.mxu0 0.0
      %1754 = vmatpush1.msra.mxu0 0.0
      %1755 = vmatprep.subr.mxu0 0.0
      %1756 = vmatpush1.msra.mxu0 0.0
      %1757 = vmatprep.subr.mxu0 0.0
      %1758 = vmatpush1.msra.mxu0 0.0
      %1759 = vmatprep.subr.mxu0 0.0
      %1760 = vmatpush1.msra.mxu0 0.0
      %1761 = vmatprep.subr.mxu0 0.0
      %1762 = vmatpush1.msra.mxu0 0.0
      %1763 = vmatprep.subr.mxu0 0.0
      %1764 = vmatpush1.msra.mxu0 0.0
      %1765 = vmatprep.subr.mxu0 0.0
      %1766 = vmatpush1.msra.mxu0 0.0
      %1767 = vmatprep.subr.mxu0 0.0
      %1768 = vmatpush1.msra.mxu0 0.0
      %1769 = vmatprep.subr.mxu0 0.0
      %1770 = vmatpush1.msra.mxu0 0.0
      %1771 = vmatprep.subr.mxu0 0.0
      %1772 = vmatpush1.msra.mxu0 0.0
      %1773 = vmatprep.subr.mxu0 0.0
      %1774 = vmatpush1.msra.mxu0 0.0
      %1775 = vmatprep.subr.mxu0 0.0
      %1776 = vmatpush1.msra.mxu0 0.0
      %1777 = vmatprep.subr.mxu0 0.0
      %1778 = vmatpush1.msra.mxu0 0.0
      %1779 = vmatprep.subr.mxu0 0.0
      %1780 = vmatpush1.msra.mxu0 0.0
      %1781 = vmatprep.subr.mxu0 0.0
      %1782 = vmatpush1.msra.mxu0 0.0
      %1783 = vmatprep.subr.mxu0 0.0
      %1784 = vmatpush1.msra.mxu0 0.0
      %1785 = vmatprep.subr.mxu0 0.0
      %1786 = vmatpush1.msra.mxu0 0.0
      %1787 = vmatprep.subr.mxu0 0.0
      %1788 = vmatpush1.msra.mxu0 0.0
      %1789 = vmatprep.subr.mxu0 0.0
      %1790 = vmatpush1.msra.mxu0 0.0
      %1791 = vmatprep.subr.mxu0 0.0
      %1792 = vmatpush1.msra.mxu0 0.0
      %1793 = vmatprep.subr.mxu0 0.0
      %1794 = vmatpush1.msra.mxu0 0.0
      %1795 = vmatprep.subr.mxu0 0.0
      %1796 = vmatpush1.msra.mxu0 0.0
      %1797 = vmatprep.subr.mxu0 0.0
      %1798 = vmatpush1.msra.mxu0 0.0
      %1799 = vmatprep.subr.mxu0 0.0
      %1800 = vmatpush1.msra.mxu0 0.0
      %1801 = vmatprep.subr.mxu0 0.0
      %1802 = vmatpush1.msra.mxu0 0.0
      %1803 = vmatprep.subr.mxu0 0.0
      %1804 = vmatpush1.msra.mxu0 0.0
      %1805 = vmatprep.subr.mxu0 0.0
      %1806 = vmatpush1.msra.mxu0 0.0
      %1807 = vmatprep.subr.mxu0 0.0
      %1808 = vmatpush1.msra.mxu0 0.0
      %1809 = vmatprep.subr.mxu0 0.0
      %1810 = vmatpush1.msra.mxu0 0.0
      %1811 = vmatprep.subr.mxu0 0.0
      %1812 = vmatpush1.msra.mxu0 0.0
      %1813 = vmatprep.subr.mxu0 0.0
      %1814 = vmatpush1.msra.mxu0 0.0
      %1815 = vmatprep.mubr.f32.mxu0 0.0
      %1816 = vmatmul.mubr.f32.gmra.mrb[0].mxu0 %v374
      %v1817 = vpop.f32.mrb[0].mxu0
      %v1818 = vadd.f32 %v370, %v1817
      %v1819 = vpop.f32.mrb[0].mxu0
      %1820 = vdwg.mxu0
      %v1821 = vmax.f32 %v1818, 0.0
      %1822 = vmatprep.subr.mxu0 0.0
      %1823 = vmatpush1.msra.mxu0 %v1821
      %1824 = vmatprep.subr.mxu0 0.0
      %1825 = vmatpush1.msra.mxu0 0.0
      %1826 = vmatprep.subr.mxu0 0.0
      %1827 = vmatpush1.msra.mxu0 0.0
      %1828 = vmatprep.subr.mxu0 0.0
      %1829 = vmatpush1.msra.mxu0 0.0
      %1830 = vmatprep.subr.mxu0 0.0
      %1831 = vmatpush1.msra.mxu0 0.0
      %1832 = vmatprep.subr.mxu0 0.0
      %1833 = vmatpush1.msra.mxu0 0.0
      %1834 = vmatprep.subr.mxu0 0.0
      %1835 = vmatpush1.msra.mxu0 0.0
      %1836 = vmatprep.subr.mxu0 0.0
      %1837 = vmatpush1.msra.mxu0 0.0
      %1838 = vmatprep.subr.mxu0 0.0
      %1839 = vmatpush1.msra.mxu0 0.0
      %1840 = vmatprep.subr.mxu0 0.0
      %1841 = vmatpush1.msra.mxu0 0.0
      %1842 = vmatprep.subr.mxu0 0.0
      %1843 = vmatpush1.msra.mxu0 0.0
      %1844 = vmatprep.subr.mxu0 0.0
      %1845 = vmatpush1.msra.mxu0 0.0
      %1846 = vmatprep.subr.mxu0 0.0
      %1847 = vmatpush1.msra.mxu0 0.0
      %1848 = vmatprep.subr.mxu0 0.0
      %1849 = vmatpush1.msra.mxu0 0.0
      %1850 = vmatprep.subr.mxu0 0.0
      %1851 = vmatpush1.msra.mxu0 0.0
      %1852 = vmatprep.subr.mxu0 0.0
      %1853 = vmatpush1.msra.mxu0 0.0
      %1854 = vmatprep.subr.mxu0 0.0
      %1855 = vmatpush1.msra.mxu0 0.0
      %1856 = vmatprep.subr.mxu0 0.0
      %1857 = vmatpush1.msra.mxu0 0.0
      %1858 = vmatprep.subr.mxu0 0.0
      %1859 = vmatpush1.msra.mxu0 0.0
      %1860 = vmatprep.subr.mxu0 0.0
      %1861 = vmatpush1.msra.mxu0 0.0
      %1862 = vmatprep.subr.mxu0 0.0
      %1863 = vmatpush1.msra.mxu0 0.0
      %1864 = vmatprep.subr.mxu0 0.0
      %1865 = vmatpush1.msra.mxu0 0.0
      %1866 = vmatprep.subr.mxu0 0.0
      %1867 = vmatpush1.msra.mxu0 0.0
      %1868 = vmatprep.subr.mxu0 0.0
      %1869 = vmatpush1.msra.mxu0 0.0
      %1870 = vmatprep.subr.mxu0 0.0
      %1871 = vmatpush1.msra.mxu0 0.0
      %1872 = vmatprep.subr.mxu0 0.0
      %1873 = vmatpush1.msra.mxu0 0.0
      %1874 = vmatprep.subr.mxu0 0.0
      %1875 = vmatpush1.msra.mxu0 0.0
      %1876 = vmatprep.subr.mxu0 0.0
      %1877 = vmatpush1.msra.mxu0 0.0
      %1878 = vmatprep.subr.mxu0 0.0
      %1879 = vmatpush1.msra.mxu0 0.0
      %1880 = vmatprep.subr.mxu0 0.0
      %1881 = vmatpush1.msra.mxu0 0.0
      %1882 = vmatprep.subr.mxu0 0.0
      %1883 = vmatpush1.msra.mxu0 0.0
      %1884 = vmatprep.subr.mxu0 0.0
      %1885 = vmatpush1.msra.mxu0 0.0
      %1886 = vmatprep.mubr.f32.mxu0 0.0
      %1887 = vmatmul.mubr.f32.gmra.mrb[0].mxu0 %v460
      %v1888 = vpop.f32.mrb[0].mxu0
      %v1889 = vadd.f32 %v456, %v1888
      %v1890 = vpop.f32.mrb[0].mxu0
      %1891 = vdwg.mxu0
      %v1892 = vmax.f32 %v1889, 0.0
      %1893 = vmatprep.subr.mxu0 0.0
      %1894 = vmatpush1.msra.mxu0 %v1892
      %1895 = vmatprep.subr.mxu0 0.0
      %1896 = vmatpush1.msra.mxu0 0.0
      %1897 = vmatprep.subr.mxu0 0.0
      %1898 = vmatpush1.msra.mxu0 0.0
      %1899 = vmatprep.subr.mxu0 0.0
      %1900 = vmatpush1.msra.mxu0 0.0
      %1901 = vmatprep.subr.mxu0 0.0
      %1902 = vmatpush1.msra.mxu0 0.0
      %1903 = vmatprep.subr.mxu0 0.0
      %1904 = vmatpush1.msra.mxu0 0.0
      %1905 = vmatprep.subr.mxu0 0.0
      %1906 = vmatpush1.msra.mxu0 0.0
      %1907 = vmatprep.subr.mxu0 0.0
      %1908 = vmatpush1.msra.mxu0 0.0
      %1909 = vmatprep.subr.mxu0 0.0
      %1910 = vmatpush1.msra.mxu0 0.0
      %1911 = vmatprep.subr.mxu0 0.0
      %1912 = vmatpush1.msra.mxu0 0.0
      %1913 = vmatprep.subr.mxu0 0.0
      %1914 = vmatpush1.msra.mxu0 0.0
      %1915 = vmatprep.subr.mxu0 0.0
      %1916 = vmatpush1.msra.mxu0 0.0
      %1917 = vmatprep.subr.mxu0 0.0
      %1918 = vmatpush1.msra.mxu0 0.0
      %1919 = vmatprep.subr.mxu0 0.0
      %1920 = vmatpush1.msra.mxu0 0.0
      %1921 = vmatprep.subr.mxu0 0.0
      %1922 = vmatpush1.msra.mxu0 0.0
      %1923 = vmatprep.subr.mxu0 0.0
      %1924 = vmatpush1.msra.mxu0 0.0
      %1925 = vmatprep.subr.mxu0 0.0
      %1926 = vmatpush1.msra.mxu0 0.0
      %1927 = vmatprep.subr.mxu0 0.0
      %1928 = vmatpush1.msra.mxu0 0.0
      %1929 = vmatprep.subr.mxu0 0.0
      %1930 = vmatpush1.msra.mxu0 0.0
      %1931 = vmatprep.subr.mxu0 0.0
      %1932 = vmatpush1.msra.mxu0 0.0
      %1933 = vmatprep.subr.mxu0 0.0
      %1934 = vmatpush1.msra.mxu0 0.0
      %1935 = vmatprep.subr.mxu0 0.0
      %1936 = vmatpush1.msra.mxu0 0.0
      %1937 = vmatprep.subr.mxu0 0.0
      %1938 = vmatpush1.msra.mxu0 0.0
      %1939 = vmatprep.subr.mxu0 0.0
      %1940 = vmatpush1.msra.mxu0 0.0
      %1941 = vmatprep.subr.mxu0 0.0
      %1942 = vmatpush1.msra.mxu0 0.0
      %1943 = vmatprep.subr.mxu0 0.0
      %1944 = vmatpush1.msra.mxu0 0.0
      %1945 = vmatprep.subr.mxu0 0.0
      %1946 = vmatpush1.msra.mxu0 0.0
      %1947 = vmatprep.subr.mxu0 0.0
      %1948 = vmatpush1.msra.mxu0 0.0
      %1949 = vmatprep.subr.mxu0 0.0
      %1950 = vmatpush1.msra.mxu0 0.0
      %1951 = vmatprep.subr.mxu0 0.0
      %1952 = vmatpush1.msra.mxu0 0.0
      %1953 = vmatprep.subr.mxu0 0.0
      %1954 = vmatpush1.msra.mxu0 0.0
      %1955 = vmatprep.subr.mxu0 0.0
      %1956 = vmatpush1.msra.mxu0 0.0
      %1957 = vmatprep.mubr.f32.mxu0 0.0
      %1958 = vmatmul.mubr.f32.gmra.mrb[0].mxu0 %v548
      %v1959 = vpop.f32.mrb[0].mxu0
      %v1960 = vadd.f32 %v540, %v1959
      %v1961 = vpop.f32.mrb[0].mxu0
      %1962 = vmatprep.mubr.f32.mxu0 0.0
      %1963 = vmatmul.mubr.f32.gmra.mrb[0].mxu0 %v551
      %v1964 = vpop.f32.mrb[0].mxu0
      %v1965 = vadd.f32 %v545, %v1964
      %v1966 = vpop.f32.mrb[0].mxu0
      %1967 = vdwg.mxu0
      %v1968 = vmax.f32 %v1960, 0.0
      %v1969 = vmax.f32 %v1965, 0.0
      %v1970 = vcombine.high %v1747, %v1747
      %v1972 = vunpack.c.l.s4 1966171168
      %v1973 = vunpack.c.0.s8 %v1972
      %v1974 = vlaneseq
      %v1975 = vshrl.u32 %v1974, 7
      %v1976 = vsub.s32 %v1973, %v1975
      %v1977 = vrot.slane %v1747, %v1976
      %v1979 = vunpack.c.l.s4 1966171168
      %v1980 = vunpack.c.0.s8 %v1979
      %v1981 = vlaneseq
      %v1982 = vshrl.u32 %v1981, 7
      %v1983 = vsub.s32 %v1980, %v1982
      %v1984 = vrot.slane %v1970, %v1983
      %v1985 = vcombine.high %v1977, %v1977
      %v1986 = vcombine.high %v1984, %v1984
      %v1988 = vunpack.c.l.s4 1966171168
      %v1989 = vunpack.c.0.s8 %v1988
      %v1990 = vlaneseq
      %v1991 = vshrl.u32 %v1990, 7
      %v1992 = vsub.s32 %v1989, %v1991
      %v1993 = vrot.slane %v1977, %v1992
      %v1995 = vunpack.c.l.s4 1966171168
      %v1996 = vunpack.c.0.s8 %v1995
      %v1997 = vlaneseq
      %v1998 = vshrl.u32 %v1997, 7
      %v1999 = vsub.s32 %v1996, %v1998
      %v2000 = vrot.slane %v1984, %v1999
      %v2002 = vunpack.c.l.s4 1966171168
      %v2003 = vunpack.c.0.s8 %v2002
      %v2004 = vlaneseq
      %v2005 = vshrl.u32 %v2004, 7
      %v2006 = vsub.s32 %v2003, %v2005
      %v2007 = vrot.slane %v1985, %v2006
      %v2009 = vunpack.c.l.s4 1966171168
      %v2010 = vunpack.c.0.s8 %v2009
      %v2011 = vlaneseq
      %v2012 = vshrl.u32 %v2011, 7
      %v2013 = vsub.s32 %v2010, %v2012
      %v2014 = vrot.slane %v1986, %v2013
      %v2015 = vcombine.high %v1993, %v1993
      %v2016 = vcombine.high %v2000, %v2000
      %v2017 = vcombine.high %v2007, %v2007
      %v2018 = vlaneseq
      %v2019 = vshrl.u32 %v2018, 7
      %v2020 = vsub.s32 0, %v2019
      %v2021 = vrot.slane %v1993, %v2020
      %v2022 = vlaneseq
      %v2023 = vshrl.u32 %v2022, 7
      %v2024 = vsub.s32 0, %v2023
      %v2025 = vrot.slane %v2007, %v2024
      %v2026 = vlaneseq
      %v2027 = vshrl.u32 %v2026, 7
      %v2028 = vsub.s32 0, %v2027
      %v2029 = vrot.slane %v2015, %v2028
      %v2030 = vlaneseq
      %v2031 = vshrl.u32 %v2030, 7
      %v2032 = vsub.s32 0, %v2031
      %v2033 = vrot.slane %v2017, %v2032
      %v2034 = vlaneseq
      %v2035 = vshrl.u32 %v2034, 7
      %v2036 = vsub.s32 0, %v2035
      %v2037 = vrot.slane %v2000, %v2036
      %v2038 = vlaneseq
      %v2039 = vshrl.u32 %v2038, 7
      %v2040 = vsub.s32 0, %v2039
      %v2041 = vrot.slane %v2014, %v2040
      %v2042 = vlaneseq
      %v2043 = vshrl.u32 %v2042, 7
      %v2044 = vsub.s32 0, %v2043
      %v2045 = vrot.slane %v2016, %v2044
      %v2053 = vmul.f32 %v2021, %v1968
      %v2054 = vmul.f32 %v2021, %v1969
      %v2055 = vmul.f32 %v2025, %v1968
      %v2056 = vmul.f32 %v2025, %v1969
      %v2057 = vmul.f32 %v2029, %v1968
      %v2058 = vmul.f32 %v2029, %v1969
      %v2059 = vmul.f32 %v2033, %v1968
      %v2060 = vmul.f32 %v2033, %v1969
      %v2061 = vmul.f32 %v2037, %v1968
      %v2062 = vmul.f32 %v2037, %v1969
      %v2063 = vmul.f32 %v2041, %v1968
      %v2064 = vmul.f32 %v2041, %v1969
      %v2065 = vmul.f32 %v2045, %v1968
      %v2066 = vmul.f32 %v2045, %v1969
      %v2067 = vadd.f32 %v1732, %v2053
      %v2068 = vadd.f32 %v1733, %v2054
      %v2069 = vadd.f32 %v1734, %v2055
      %v2070 = vadd.f32 %v1735, %v2056
      %v2071 = vadd.f32 %v1736, %v2057
      %v2072 = vadd.f32 %v1737, %v2058
      %v2073 = vadd.f32 %v1738, %v2059
      %v2074 = vadd.f32 %v1739, %v2060
      %v2075 = vadd.f32 %v1740, %v2061
      %v2076 = vadd.f32 %v1741, %v2062
      %v2077 = vadd.f32 %v1742, %v2063
      %v2078 = vadd.f32 %v1743, %v2064
      %v2079 = vadd.f32 %v1744, %v2065
      %v2080 = vadd.f32 %v1745, %v2066
      %s2081 = scalar_lea.vmem %s355, 40
      %v2082 = vld [vmem:[%s2081] sm:$0x7f]
      %v2084 = vsel %vm376, %v2082, 0
      %2086 = vmatprep.subr.mxu0 0.0
      %2087 = vmatpush1.msra.mxu0 %v2084
      %2088 = vmatprep.subr.mxu0 0.0
      %2089 = vmatpush1.msra.mxu0 0.0
      %2090 = vmatprep.subr.mxu0 0.0
      %2091 = vmatpush1.msra.mxu0 0.0
      %2092 = vmatprep.subr.mxu0 0.0
      %2093 = vmatpush1.msra.mxu0 0.0
      %2094 = vmatprep.subr.mxu0 0.0
      %2095 = vmatpush1.msra.mxu0 0.0
      %2096 = vmatprep.subr.mxu0 0.0
      %2097 = vmatpush1.msra.mxu0 0.0
      %2098 = vmatprep.subr.mxu0 0.0
      %2099 = vmatpush1.msra.mxu0 0.0
      %2100 = vmatprep.subr.mxu0 0.0
      %2101 = vmatpush1.msra.mxu0 0.0
      %2102 = vmatprep.subr.mxu0 0.0
      %2103 = vmatpush1.msra.mxu0 0.0
      %2104 = vmatprep.subr.mxu0 0.0
      %2105 = vmatpush1.msra.mxu0 0.0
      %2106 = vmatprep.subr.mxu0 0.0
      %2107 = vmatpush1.msra.mxu0 0.0
      %2108 = vmatprep.subr.mxu0 0.0
      %2109 = vmatpush1.msra.mxu0 0.0
      %2110 = vmatprep.subr.mxu0 0.0
      %2111 = vmatpush1.msra.mxu0 0.0
      %2112 = vmatprep.subr.mxu0 0.0
      %2113 = vmatpush1.msra.mxu0 0.0
      %2114 = vmatprep.subr.mxu0 0.0
      %2115 = vmatpush1.msra.mxu0 0.0
      %2116 = vmatprep.subr.mxu0 0.0
      %2117 = vmatpush1.msra.mxu0 0.0
      %2118 = vmatprep.subr.mxu0 0.0
      %2119 = vmatpush1.msra.mxu0 0.0
      %2120 = vmatprep.subr.mxu0 0.0
      %2121 = vmatpush1.msra.mxu0 0.0
      %2122 = vmatprep.subr.mxu0 0.0
      %2123 = vmatpush1.msra.mxu0 0.0
      %2124 = vmatprep.subr.mxu0 0.0
      %2125 = vmatpush1.msra.mxu0 0.0
      %2126 = vmatprep.subr.mxu0 0.0
      %2127 = vmatpush1.msra.mxu0 0.0
      %2128 = vmatprep.subr.mxu0 0.0
      %2129 = vmatpush1.msra.mxu0 0.0
      %2130 = vmatprep.subr.mxu0 0.0
      %2131 = vmatpush1.msra.mxu0 0.0
      %2132 = vmatprep.subr.mxu0 0.0
      %2133 = vmatpush1.msra.mxu0 0.0
      %2134 = vmatprep.subr.mxu0 0.0
      %2135 = vmatpush1.msra.mxu0 0.0
      %2136 = vmatprep.subr.mxu0 0.0
      %2137 = vmatpush1.msra.mxu0 0.0
      %2138 = vmatprep.subr.mxu0 0.0
      %2139 = vmatpush1.msra.mxu0 0.0
      %2140 = vmatprep.subr.mxu0 0.0
      %2141 = vmatpush1.msra.mxu0 0.0
      %2142 = vmatprep.subr.mxu0 0.0
      %2143 = vmatpush1.msra.mxu0 0.0
      %2144 = vmatprep.subr.mxu0 0.0
      %2145 = vmatpush1.msra.mxu0 0.0
      %2146 = vmatprep.subr.mxu0 0.0
      %2147 = vmatpush1.msra.mxu0 0.0
      %2148 = vmatprep.subr.mxu0 0.0
      %2149 = vmatpush1.msra.mxu0 0.0
      %2150 = vmatprep.mubr.f32.mxu0 0.0
      %2151 = vmatmul.mubr.f32.gmra.mrb[0].mxu0 %v374
      %v2152 = vpop.f32.mrb[0].mxu0
      %v2153 = vadd.f32 %v370, %v2152
      %v2154 = vpop.f32.mrb[0].mxu0
      %2155 = vdwg.mxu0
      %v2156 = vmax.f32 %v2153, 0.0
      %2157 = vmatprep.subr.mxu0 0.0
      %2158 = vmatpush1.msra.mxu0 %v2156
      %2159 = vmatprep.subr.mxu0 0.0
      %2160 = vmatpush1.msra.mxu0 0.0
      %2161 = vmatprep.subr.mxu0 0.0
      %2162 = vmatpush1.msra.mxu0 0.0
      %2163 = vmatprep.subr.mxu0 0.0
      %2164 = vmatpush1.msra.mxu0 0.0
      %2165 = vmatprep.subr.mxu0 0.0
      %2166 = vmatpush1.msra.mxu0 0.0
      %2167 = vmatprep.subr.mxu0 0.0
      %2168 = vmatpush1.msra.mxu0 0.0
      %2169 = vmatprep.subr.mxu0 0.0
      %2170 = vmatpush1.msra.mxu0 0.0
      %2171 = vmatprep.subr.mxu0 0.0
      %2172 = vmatpush1.msra.mxu0 0.0
      %2173 = vmatprep.subr.mxu0 0.0
      %2174 = vmatpush1.msra.mxu0 0.0
      %2175 = vmatprep.subr.mxu0 0.0
      %2176 = vmatpush1.msra.mxu0 0.0
      %2177 = vmatprep.subr.mxu0 0.0
      %2178 = vmatpush1.msra.mxu0 0.0
      %2179 = vmatprep.subr.mxu0 0.0
      %2180 = vmatpush1.msra.mxu0 0.0
      %2181 = vmatprep.subr.mxu0 0.0
      %2182 = vmatpush1.msra.mxu0 0.0
      %2183 = vmatprep.subr.mxu0 0.0
      %2184 = vmatpush1.msra.mxu0 0.0
      %2185 = vmatprep.subr.mxu0 0.0
      %2186 = vmatpush1.msra.mxu0 0.0
      %2187 = vmatprep.subr.mxu0 0.0
      %2188 = vmatpush1.msra.mxu0 0.0
      %2189 = vmatprep.subr.mxu0 0.0
      %2190 = vmatpush1.msra.mxu0 0.0
      %2191 = vmatprep.subr.mxu0 0.0
      %2192 = vmatpush1.msra.mxu0 0.0
      %2193 = vmatprep.subr.mxu0 0.0
      %2194 = vmatpush1.msra.mxu0 0.0
      %2195 = vmatprep.subr.mxu0 0.0
      %2196 = vmatpush1.msra.mxu0 0.0
      %2197 = vmatprep.subr.mxu0 0.0
      %2198 = vmatpush1.msra.mxu0 0.0
      %2199 = vmatprep.subr.mxu0 0.0
      %2200 = vmatpush1.msra.mxu0 0.0
      %2201 = vmatprep.subr.mxu0 0.0
      %2202 = vmatpush1.msra.mxu0 0.0
      %2203 = vmatprep.subr.mxu0 0.0
      %2204 = vmatpush1.msra.mxu0 0.0
      %2205 = vmatprep.subr.mxu0 0.0
      %2206 = vmatpush1.msra.mxu0 0.0
      %2207 = vmatprep.subr.mxu0 0.0
      %2208 = vmatpush1.msra.mxu0 0.0
      %2209 = vmatprep.subr.mxu0 0.0
      %2210 = vmatpush1.msra.mxu0 0.0
      %2211 = vmatprep.subr.mxu0 0.0
      %2212 = vmatpush1.msra.mxu0 0.0
      %2213 = vmatprep.subr.mxu0 0.0
      %2214 = vmatpush1.msra.mxu0 0.0
      %2215 = vmatprep.subr.mxu0 0.0
      %2216 = vmatpush1.msra.mxu0 0.0
      %2217 = vmatprep.subr.mxu0 0.0
      %2218 = vmatpush1.msra.mxu0 0.0
      %2219 = vmatprep.subr.mxu0 0.0
      %2220 = vmatpush1.msra.mxu0 0.0
      %2221 = vmatprep.mubr.f32.mxu0 0.0
      %2222 = vmatmul.mubr.f32.gmra.mrb[0].mxu0 %v460
      %v2223 = vpop.f32.mrb[0].mxu0
      %v2224 = vadd.f32 %v456, %v2223
      %v2225 = vpop.f32.mrb[0].mxu0
      %2226 = vdwg.mxu0
      %v2227 = vmax.f32 %v2224, 0.0
      %2228 = vmatprep.subr.mxu0 0.0
      %2229 = vmatpush1.msra.mxu0 %v2227
      %2230 = vmatprep.subr.mxu0 0.0
      %2231 = vmatpush1.msra.mxu0 0.0
      %2232 = vmatprep.subr.mxu0 0.0
      %2233 = vmatpush1.msra.mxu0 0.0
      %2234 = vmatprep.subr.mxu0 0.0
      %2235 = vmatpush1.msra.mxu0 0.0
      %2236 = vmatprep.subr.mxu0 0.0
      %2237 = vmatpush1.msra.mxu0 0.0
      %2238 = vmatprep.subr.mxu0 0.0
      %2239 = vmatpush1.msra.mxu0 0.0
      %2240 = vmatprep.subr.mxu0 0.0
      %2241 = vmatpush1.msra.mxu0 0.0
      %2242 = vmatprep.subr.mxu0 0.0
      %2243 = vmatpush1.msra.mxu0 0.0
      %2244 = vmatprep.subr.mxu0 0.0
      %2245 = vmatpush1.msra.mxu0 0.0
      %2246 = vmatprep.subr.mxu0 0.0
      %2247 = vmatpush1.msra.mxu0 0.0
      %2248 = vmatprep.subr.mxu0 0.0
      %2249 = vmatpush1.msra.mxu0 0.0
      %2250 = vmatprep.subr.mxu0 0.0
      %2251 = vmatpush1.msra.mxu0 0.0
      %2252 = vmatprep.subr.mxu0 0.0
      %2253 = vmatpush1.msra.mxu0 0.0
      %2254 = vmatprep.subr.mxu0 0.0
      %2255 = vmatpush1.msra.mxu0 0.0
      %2256 = vmatprep.subr.mxu0 0.0
      %2257 = vmatpush1.msra.mxu0 0.0
      %2258 = vmatprep.subr.mxu0 0.0
      %2259 = vmatpush1.msra.mxu0 0.0
      %2260 = vmatprep.subr.mxu0 0.0
      %2261 = vmatpush1.msra.mxu0 0.0
      %2262 = vmatprep.subr.mxu0 0.0
      %2263 = vmatpush1.msra.mxu0 0.0
      %2264 = vmatprep.subr.mxu0 0.0
      %2265 = vmatpush1.msra.mxu0 0.0
      %2266 = vmatprep.subr.mxu0 0.0
      %2267 = vmatpush1.msra.mxu0 0.0
      %2268 = vmatprep.subr.mxu0 0.0
      %2269 = vmatpush1.msra.mxu0 0.0
      %2270 = vmatprep.subr.mxu0 0.0
      %2271 = vmatpush1.msra.mxu0 0.0
      %2272 = vmatprep.subr.mxu0 0.0
      %2273 = vmatpush1.msra.mxu0 0.0
      %2274 = vmatprep.subr.mxu0 0.0
      %2275 = vmatpush1.msra.mxu0 0.0
      %2276 = vmatprep.subr.mxu0 0.0
      %2277 = vmatpush1.msra.mxu0 0.0
      %2278 = vmatprep.subr.mxu0 0.0
      %2279 = vmatpush1.msra.mxu0 0.0
      %2280 = vmatprep.subr.mxu0 0.0
      %2281 = vmatpush1.msra.mxu0 0.0
      %2282 = vmatprep.subr.mxu0 0.0
      %2283 = vmatpush1.msra.mxu0 0.0
      %2284 = vmatprep.subr.mxu0 0.0
      %2285 = vmatpush1.msra.mxu0 0.0
      %2286 = vmatprep.subr.mxu0 0.0
      %2287 = vmatpush1.msra.mxu0 0.0
      %2288 = vmatprep.subr.mxu0 0.0
      %2289 = vmatpush1.msra.mxu0 0.0
      %2290 = vmatprep.subr.mxu0 0.0
      %2291 = vmatpush1.msra.mxu0 0.0
      %2292 = vmatprep.mubr.f32.mxu0 0.0
      %2293 = vmatmul.mubr.f32.gmra.mrb[0].mxu0 %v548
      %v2294 = vpop.f32.mrb[0].mxu0
      %v2295 = vadd.f32 %v540, %v2294
      %v2296 = vpop.f32.mrb[0].mxu0
      %2297 = vmatprep.mubr.f32.mxu0 0.0
      %2298 = vmatmul.mubr.f32.gmra.mrb[0].mxu0 %v551
      %v2299 = vpop.f32.mrb[0].mxu0
      %v2300 = vadd.f32 %v545, %v2299
      %v2301 = vpop.f32.mrb[0].mxu0
      %2302 = vdwg.mxu0
      %v2303 = vmax.f32 %v2295, 0.0
      %v2304 = vmax.f32 %v2300, 0.0
      %v2305 = vcombine.high %v2082, %v2082
      %v2307 = vunpack.c.l.s4 1966171168
      %v2308 = vunpack.c.0.s8 %v2307
      %v2309 = vlaneseq
      %v2310 = vshrl.u32 %v2309, 7
      %v2311 = vsub.s32 %v2308, %v2310
      %v2312 = vrot.slane %v2082, %v2311
      %v2314 = vunpack.c.l.s4 1966171168
      %v2315 = vunpack.c.0.s8 %v2314
      %v2316 = vlaneseq
      %v2317 = vshrl.u32 %v2316, 7
      %v2318 = vsub.s32 %v2315, %v2317
      %v2319 = vrot.slane %v2305, %v2318
      %v2320 = vcombine.high %v2312, %v2312
      %v2321 = vcombine.high %v2319, %v2319
      %v2323 = vunpack.c.l.s4 1966171168
      %v2324 = vunpack.c.0.s8 %v2323
      %v2325 = vlaneseq
      %v2326 = vshrl.u32 %v2325, 7
      %v2327 = vsub.s32 %v2324, %v2326
      %v2328 = vrot.slane %v2312, %v2327
      %v2330 = vunpack.c.l.s4 1966171168
      %v2331 = vunpack.c.0.s8 %v2330
      %v2332 = vlaneseq
      %v2333 = vshrl.u32 %v2332, 7
      %v2334 = vsub.s32 %v2331, %v2333
      %v2335 = vrot.slane %v2319, %v2334
      %v2337 = vunpack.c.l.s4 1966171168
      %v2338 = vunpack.c.0.s8 %v2337
      %v2339 = vlaneseq
      %v2340 = vshrl.u32 %v2339, 7
      %v2341 = vsub.s32 %v2338, %v2340
      %v2342 = vrot.slane %v2320, %v2341
      %v2344 = vunpack.c.l.s4 1966171168
      %v2345 = vunpack.c.0.s8 %v2344
      %v2346 = vlaneseq
      %v2347 = vshrl.u32 %v2346, 7
      %v2348 = vsub.s32 %v2345, %v2347
      %v2349 = vrot.slane %v2321, %v2348
      %v2350 = vcombine.high %v2328, %v2328
      %v2351 = vcombine.high %v2335, %v2335
      %v2352 = vcombine.high %v2342, %v2342
      %v2353 = vlaneseq
      %v2354 = vshrl.u32 %v2353, 7
      %v2355 = vsub.s32 0, %v2354
      %v2356 = vrot.slane %v2328, %v2355
      %v2357 = vlaneseq
      %v2358 = vshrl.u32 %v2357, 7
      %v2359 = vsub.s32 0, %v2358
      %v2360 = vrot.slane %v2342, %v2359
      %v2361 = vlaneseq
      %v2362 = vshrl.u32 %v2361, 7
      %v2363 = vsub.s32 0, %v2362
      %v2364 = vrot.slane %v2350, %v2363
      %v2365 = vlaneseq
      %v2366 = vshrl.u32 %v2365, 7
      %v2367 = vsub.s32 0, %v2366
      %v2368 = vrot.slane %v2352, %v2367
      %v2369 = vlaneseq
      %v2370 = vshrl.u32 %v2369, 7
      %v2371 = vsub.s32 0, %v2370
      %v2372 = vrot.slane %v2335, %v2371
      %v2373 = vlaneseq
      %v2374 = vshrl.u32 %v2373, 7
      %v2375 = vsub.s32 0, %v2374
      %v2376 = vrot.slane %v2349, %v2375
      %v2377 = vlaneseq
      %v2378 = vshrl.u32 %v2377, 7
      %v2379 = vsub.s32 0, %v2378
      %v2380 = vrot.slane %v2351, %v2379
      %v2388 = vmul.f32 %v2356, %v2303
      %v2389 = vmul.f32 %v2356, %v2304
      %v2390 = vmul.f32 %v2360, %v2303
      %v2391 = vmul.f32 %v2360, %v2304
      %v2392 = vmul.f32 %v2364, %v2303
      %v2393 = vmul.f32 %v2364, %v2304
      %v2394 = vmul.f32 %v2368, %v2303
      %v2395 = vmul.f32 %v2368, %v2304
      %v2396 = vmul.f32 %v2372, %v2303
      %v2397 = vmul.f32 %v2372, %v2304
      %v2398 = vmul.f32 %v2376, %v2303
      %v2399 = vmul.f32 %v2376, %v2304
      %v2400 = vmul.f32 %v2380, %v2303
      %v2401 = vmul.f32 %v2380, %v2304
      %v2402 = vadd.f32 %v2067, %v2388
      %v2403 = vadd.f32 %v2068, %v2389
      %v2404 = vadd.f32 %v2069, %v2390
      %v2405 = vadd.f32 %v2070, %v2391
      %v2406 = vadd.f32 %v2071, %v2392
      %v2407 = vadd.f32 %v2072, %v2393
      %v2408 = vadd.f32 %v2073, %v2394
      %v2409 = vadd.f32 %v2074, %v2395
      %v2410 = vadd.f32 %v2075, %v2396
      %v2411 = vadd.f32 %v2076, %v2397
      %v2412 = vadd.f32 %v2077, %v2398
      %v2413 = vadd.f32 %v2078, %v2399
      %v2414 = vadd.f32 %v2079, %v2400
      %v2415 = vadd.f32 %v2080, %v2401
      %s2416 = scalar_lea.vmem %s355, 48
      %v2417 = vld [vmem:[%s2416] sm:$0x7f]
      %v2419 = vsel %vm376, %v2417, 0
      %2421 = vmatprep.subr.mxu0 0.0
      %2422 = vmatpush1.msra.mxu0 %v2419
      %2423 = vmatprep.subr.mxu0 0.0
      %2424 = vmatpush1.msra.mxu0 0.0
      %2425 = vmatprep.subr.mxu0 0.0
      %2426 = vmatpush1.msra.mxu0 0.0
      %2427 = vmatprep.subr.mxu0 0.0
      %2428 = vmatpush1.msra.mxu0 0.0
      %2429 = vmatprep.subr.mxu0 0.0
      %2430 = vmatpush1.msra.mxu0 0.0
      %2431 = vmatprep.subr.mxu0 0.0
      %2432 = vmatpush1.msra.mxu0 0.0
      %2433 = vmatprep.subr.mxu0 0.0
      %2434 = vmatpush1.msra.mxu0 0.0
      %2435 = vmatprep.subr.mxu0 0.0
      %2436 = vmatpush1.msra.mxu0 0.0
      %2437 = vmatprep.subr.mxu0 0.0
      %2438 = vmatpush1.msra.mxu0 0.0
      %2439 = vmatprep.subr.mxu0 0.0
      %2440 = vmatpush1.msra.mxu0 0.0
      %2441 = vmatprep.subr.mxu0 0.0
      %2442 = vmatpush1.msra.mxu0 0.0
      %2443 = vmatprep.subr.mxu0 0.0
      %2444 = vmatpush1.msra.mxu0 0.0
      %2445 = vmatprep.subr.mxu0 0.0
      %2446 = vmatpush1.msra.mxu0 0.0
      %2447 = vmatprep.subr.mxu0 0.0
      %2448 = vmatpush1.msra.mxu0 0.0
      %2449 = vmatprep.subr.mxu0 0.0
      %2450 = vmatpush1.msra.mxu0 0.0
      %2451 = vmatprep.subr.mxu0 0.0
      %2452 = vmatpush1.msra.mxu0 0.0
      %2453 = vmatprep.subr.mxu0 0.0
      %2454 = vmatpush1.msra.mxu0 0.0
      %2455 = vmatprep.subr.mxu0 0.0
      %2456 = vmatpush1.msra.mxu0 0.0
      %2457 = vmatprep.subr.mxu0 0.0
      %2458 = vmatpush1.msra.mxu0 0.0
      %2459 = vmatprep.subr.mxu0 0.0
      %2460 = vmatpush1.msra.mxu0 0.0
      %2461 = vmatprep.subr.mxu0 0.0
      %2462 = vmatpush1.msra.mxu0 0.0
      %2463 = vmatprep.subr.mxu0 0.0
      %2464 = vmatpush1.msra.mxu0 0.0
      %2465 = vmatprep.subr.mxu0 0.0
      %2466 = vmatpush1.msra.mxu0 0.0
      %2467 = vmatprep.subr.mxu0 0.0
      %2468 = vmatpush1.msra.mxu0 0.0
      %2469 = vmatprep.subr.mxu0 0.0
      %2470 = vmatpush1.msra.mxu0 0.0
      %2471 = vmatprep.subr.mxu0 0.0
      %2472 = vmatpush1.msra.mxu0 0.0
      %2473 = vmatprep.subr.mxu0 0.0
      %2474 = vmatpush1.msra.mxu0 0.0
      %2475 = vmatprep.subr.mxu0 0.0
      %2476 = vmatpush1.msra.mxu0 0.0
      %2477 = vmatprep.subr.mxu0 0.0
      %2478 = vmatpush1.msra.mxu0 0.0
      %2479 = vmatprep.subr.mxu0 0.0
      %2480 = vmatpush1.msra.mxu0 0.0
      %2481 = vmatprep.subr.mxu0 0.0
      %2482 = vmatpush1.msra.mxu0 0.0
      %2483 = vmatprep.subr.mxu0 0.0
      %2484 = vmatpush1.msra.mxu0 0.0
      %2485 = vmatprep.mubr.f32.mxu0 0.0
      %2486 = vmatmul.mubr.f32.gmra.mrb[0].mxu0 %v374
      %v2487 = vpop.f32.mrb[0].mxu0
      %v2488 = vadd.f32 %v370, %v2487
      %v2489 = vpop.f32.mrb[0].mxu0
      %2490 = vdwg.mxu0
      %v2491 = vmax.f32 %v2488, 0.0
      %2492 = vmatprep.subr.mxu0 0.0
      %2493 = vmatpush1.msra.mxu0 %v2491
      %2494 = vmatprep.subr.mxu0 0.0
      %2495 = vmatpush1.msra.mxu0 0.0
      %2496 = vmatprep.subr.mxu0 0.0
      %2497 = vmatpush1.msra.mxu0 0.0
      %2498 = vmatprep.subr.mxu0 0.0
      %2499 = vmatpush1.msra.mxu0 0.0
      %2500 = vmatprep.subr.mxu0 0.0
      %2501 = vmatpush1.msra.mxu0 0.0
      %2502 = vmatprep.subr.mxu0 0.0
      %2503 = vmatpush1.msra.mxu0 0.0
      %2504 = vmatprep.subr.mxu0 0.0
      %2505 = vmatpush1.msra.mxu0 0.0
      %2506 = vmatprep.subr.mxu0 0.0
      %2507 = vmatpush1.msra.mxu0 0.0
      %2508 = vmatprep.subr.mxu0 0.0
      %2509 = vmatpush1.msra.mxu0 0.0
      %2510 = vmatprep.subr.mxu0 0.0
      %2511 = vmatpush1.msra.mxu0 0.0
      %2512 = vmatprep.subr.mxu0 0.0
      %2513 = vmatpush1.msra.mxu0 0.0
      %2514 = vmatprep.subr.mxu0 0.0
      %2515 = vmatpush1.msra.mxu0 0.0
      %2516 = vmatprep.subr.mxu0 0.0
      %2517 = vmatpush1.msra.mxu0 0.0
      %2518 = vmatprep.subr.mxu0 0.0
      %2519 = vmatpush1.msra.mxu0 0.0
      %2520 = vmatprep.subr.mxu0 0.0
      %2521 = vmatpush1.msra.mxu0 0.0
      %2522 = vmatprep.subr.mxu0 0.0
      %2523 = vmatpush1.msra.mxu0 0.0
      %2524 = vmatprep.subr.mxu0 0.0
      %2525 = vmatpush1.msra.mxu0 0.0
      %2526 = vmatprep.subr.mxu0 0.0
      %2527 = vmatpush1.msra.mxu0 0.0
      %2528 = vmatprep.subr.mxu0 0.0
      %2529 = vmatpush1.msra.mxu0 0.0
      %2530 = vmatprep.subr.mxu0 0.0
      %2531 = vmatpush1.msra.mxu0 0.0
      %2532 = vmatprep.subr.mxu0 0.0
      %2533 = vmatpush1.msra.mxu0 0.0
      %2534 = vmatprep.subr.mxu0 0.0
      %2535 = vmatpush1.msra.mxu0 0.0
      %2536 = vmatprep.subr.mxu0 0.0
      %2537 = vmatpush1.msra.mxu0 0.0
      %2538 = vmatprep.subr.mxu0 0.0
      %2539 = vmatpush1.msra.mxu0 0.0
      %2540 = vmatprep.subr.mxu0 0.0
      %2541 = vmatpush1.msra.mxu0 0.0
      %2542 = vmatprep.subr.mxu0 0.0
      %2543 = vmatpush1.msra.mxu0 0.0
      %2544 = vmatprep.subr.mxu0 0.0
      %2545 = vmatpush1.msra.mxu0 0.0
      %2546 = vmatprep.subr.mxu0 0.0
      %2547 = vmatpush1.msra.mxu0 0.0
      %2548 = vmatprep.subr.mxu0 0.0
      %2549 = vmatpush1.msra.mxu0 0.0
      %2550 = vmatprep.subr.mxu0 0.0
      %2551 = vmatpush1.msra.mxu0 0.0
      %2552 = vmatprep.subr.mxu0 0.0
      %2553 = vmatpush1.msra.mxu0 0.0
      %2554 = vmatprep.subr.mxu0 0.0
      %2555 = vmatpush1.msra.mxu0 0.0
      %2556 = vmatprep.mubr.f32.mxu0 0.0
      %2557 = vmatmul.mubr.f32.gmra.mrb[0].mxu0 %v460
      %v2558 = vpop.f32.mrb[0].mxu0
      %v2559 = vadd.f32 %v456, %v2558
      %v2560 = vpop.f32.mrb[0].mxu0
      %2561 = vdwg.mxu0
      %v2562 = vmax.f32 %v2559, 0.0
      %2563 = vmatprep.subr.mxu0 0.0
      %2564 = vmatpush1.msra.mxu0 %v2562
      %2565 = vmatprep.subr.mxu0 0.0
      %2566 = vmatpush1.msra.mxu0 0.0
      %2567 = vmatprep.subr.mxu0 0.0
      %2568 = vmatpush1.msra.mxu0 0.0
      %2569 = vmatprep.subr.mxu0 0.0
      %2570 = vmatpush1.msra.mxu0 0.0
      %2571 = vmatprep.subr.mxu0 0.0
      %2572 = vmatpush1.msra.mxu0 0.0
      %2573 = vmatprep.subr.mxu0 0.0
      %2574 = vmatpush1.msra.mxu0 0.0
      %2575 = vmatprep.subr.mxu0 0.0
      %2576 = vmatpush1.msra.mxu0 0.0
      %2577 = vmatprep.subr.mxu0 0.0
      %2578 = vmatpush1.msra.mxu0 0.0
      %2579 = vmatprep.subr.mxu0 0.0
      %2580 = vmatpush1.msra.mxu0 0.0
      %2581 = vmatprep.subr.mxu0 0.0
      %2582 = vmatpush1.msra.mxu0 0.0
      %2583 = vmatprep.subr.mxu0 0.0
      %2584 = vmatpush1.msra.mxu0 0.0
      %2585 = vmatprep.subr.mxu0 0.0
      %2586 = vmatpush1.msra.mxu0 0.0
      %2587 = vmatprep.subr.mxu0 0.0
      %2588 = vmatpush1.msra.mxu0 0.0
      %2589 = vmatprep.subr.mxu0 0.0
      %2590 = vmatpush1.msra.mxu0 0.0
      %2591 = vmatprep.subr.mxu0 0.0
      %2592 = vmatpush1.msra.mxu0 0.0
      %2593 = vmatprep.subr.mxu0 0.0
      %2594 = vmatpush1.msra.mxu0 0.0
      %2595 = vmatprep.subr.mxu0 0.0
      %2596 = vmatpush1.msra.mxu0 0.0
      %2597 = vmatprep.subr.mxu0 0.0
      %2598 = vmatpush1.msra.mxu0 0.0
      %2599 = vmatprep.subr.mxu0 0.0
      %2600 = vmatpush1.msra.mxu0 0.0
      %2601 = vmatprep.subr.mxu0 0.0
      %2602 = vmatpush1.msra.mxu0 0.0
      %2603 = vmatprep.subr.mxu0 0.0
      %2604 = vmatpush1.msra.mxu0 0.0
      %2605 = vmatprep.subr.mxu0 0.0
      %2606 = vmatpush1.msra.mxu0 0.0
      %2607 = vmatprep.subr.mxu0 0.0
      %2608 = vmatpush1.msra.mxu0 0.0
      %2609 = vmatprep.subr.mxu0 0.0
      %2610 = vmatpush1.msra.mxu0 0.0
      %2611 = vmatprep.subr.mxu0 0.0
      %2612 = vmatpush1.msra.mxu0 0.0
      %2613 = vmatprep.subr.mxu0 0.0
      %2614 = vmatpush1.msra.mxu0 0.0
      %2615 = vmatprep.subr.mxu0 0.0
      %2616 = vmatpush1.msra.mxu0 0.0
      %2617 = vmatprep.subr.mxu0 0.0
      %2618 = vmatpush1.msra.mxu0 0.0
      %2619 = vmatprep.subr.mxu0 0.0
      %2620 = vmatpush1.msra.mxu0 0.0
      %2621 = vmatprep.subr.mxu0 0.0
      %2622 = vmatpush1.msra.mxu0 0.0
      %2623 = vmatprep.subr.mxu0 0.0
      %2624 = vmatpush1.msra.mxu0 0.0
      %2625 = vmatprep.subr.mxu0 0.0
      %2626 = vmatpush1.msra.mxu0 0.0
      %2627 = vmatprep.mubr.f32.mxu0 0.0
      %2628 = vmatmul.mubr.f32.gmra.mrb[0].mxu0 %v548
      %v2629 = vpop.f32.mrb[0].mxu0
      %v2630 = vadd.f32 %v540, %v2629
      %v2631 = vpop.f32.mrb[0].mxu0
      %2632 = vmatprep.mubr.f32.mxu0 0.0
      %2633 = vmatmul.mubr.f32.gmra.mrb[0].mxu0 %v551
      %v2634 = vpop.f32.mrb[0].mxu0
      %v2635 = vadd.f32 %v545, %v2634
      %v2636 = vpop.f32.mrb[0].mxu0
      %2637 = vdwg.mxu0
      %v2638 = vmax.f32 %v2630, 0.0
      %v2639 = vmax.f32 %v2635, 0.0
      %v2640 = vcombine.high %v2417, %v2417
      %v2642 = vunpack.c.l.s4 1966171168
      %v2643 = vunpack.c.0.s8 %v2642
      %v2644 = vlaneseq
      %v2645 = vshrl.u32 %v2644, 7
      %v2646 = vsub.s32 %v2643, %v2645
      %v2647 = vrot.slane %v2417, %v2646
      %v2649 = vunpack.c.l.s4 1966171168
      %v2650 = vunpack.c.0.s8 %v2649
      %v2651 = vlaneseq
      %v2652 = vshrl.u32 %v2651, 7
      %v2653 = vsub.s32 %v2650, %v2652
      %v2654 = vrot.slane %v2640, %v2653
      %v2655 = vcombine.high %v2647, %v2647
      %v2656 = vcombine.high %v2654, %v2654
      %v2658 = vunpack.c.l.s4 1966171168
      %v2659 = vunpack.c.0.s8 %v2658
      %v2660 = vlaneseq
      %v2661 = vshrl.u32 %v2660, 7
      %v2662 = vsub.s32 %v2659, %v2661
      %v2663 = vrot.slane %v2647, %v2662
      %v2665 = vunpack.c.l.s4 1966171168
      %v2666 = vunpack.c.0.s8 %v2665
      %v2667 = vlaneseq
      %v2668 = vshrl.u32 %v2667, 7
      %v2669 = vsub.s32 %v2666, %v2668
      %v2670 = vrot.slane %v2654, %v2669
      %v2672 = vunpack.c.l.s4 1966171168
      %v2673 = vunpack.c.0.s8 %v2672
      %v2674 = vlaneseq
      %v2675 = vshrl.u32 %v2674, 7
      %v2676 = vsub.s32 %v2673, %v2675
      %v2677 = vrot.slane %v2655, %v2676
      %v2679 = vunpack.c.l.s4 1966171168
      %v2680 = vunpack.c.0.s8 %v2679
      %v2681 = vlaneseq
      %v2682 = vshrl.u32 %v2681, 7
      %v2683 = vsub.s32 %v2680, %v2682
      %v2684 = vrot.slane %v2656, %v2683
      %v2685 = vcombine.high %v2663, %v2663
      %v2686 = vcombine.high %v2670, %v2670
      %v2687 = vcombine.high %v2677, %v2677
      %v2688 = vlaneseq
      %v2689 = vshrl.u32 %v2688, 7
      %v2690 = vsub.s32 0, %v2689
      %v2691 = vrot.slane %v2663, %v2690
      %v2692 = vlaneseq
      %v2693 = vshrl.u32 %v2692, 7
      %v2694 = vsub.s32 0, %v2693
      %v2695 = vrot.slane %v2677, %v2694
      %v2696 = vlaneseq
      %v2697 = vshrl.u32 %v2696, 7
      %v2698 = vsub.s32 0, %v2697
      %v2699 = vrot.slane %v2685, %v2698
      %v2700 = vlaneseq
      %v2701 = vshrl.u32 %v2700, 7
      %v2702 = vsub.s32 0, %v2701
      %v2703 = vrot.slane %v2687, %v2702
      %v2704 = vlaneseq
      %v2705 = vshrl.u32 %v2704, 7
      %v2706 = vsub.s32 0, %v2705
      %v2707 = vrot.slane %v2670, %v2706
      %v2708 = vlaneseq
      %v2709 = vshrl.u32 %v2708, 7
      %v2710 = vsub.s32 0, %v2709
      %v2711 = vrot.slane %v2684, %v2710
      %v2712 = vlaneseq
      %v2713 = vshrl.u32 %v2712, 7
      %v2714 = vsub.s32 0, %v2713
      %v2715 = vrot.slane %v2686, %v2714
      %v2723 = vmul.f32 %v2691, %v2638
      %v2724 = vmul.f32 %v2691, %v2639
      %v2725 = vmul.f32 %v2695, %v2638
      %v2726 = vmul.f32 %v2695, %v2639
      %v2727 = vmul.f32 %v2699, %v2638
      %v2728 = vmul.f32 %v2699, %v2639
      %v2729 = vmul.f32 %v2703, %v2638
      %v2730 = vmul.f32 %v2703, %v2639
      %v2731 = vmul.f32 %v2707, %v2638
      %v2732 = vmul.f32 %v2707, %v2639
      %v2733 = vmul.f32 %v2711, %v2638
      %v2734 = vmul.f32 %v2711, %v2639
      %v2735 = vmul.f32 %v2715, %v2638
      %v2736 = vmul.f32 %v2715, %v2639
      %v2737 = vadd.f32 %v2402, %v2723
      %v2738 = vadd.f32 %v2403, %v2724
      %v2739 = vadd.f32 %v2404, %v2725
      %v2740 = vadd.f32 %v2405, %v2726
      %v2741 = vadd.f32 %v2406, %v2727
      %v2742 = vadd.f32 %v2407, %v2728
      %v2743 = vadd.f32 %v2408, %v2729
      %v2744 = vadd.f32 %v2409, %v2730
      %v2745 = vadd.f32 %v2410, %v2731
      %v2746 = vadd.f32 %v2411, %v2732
      %v2747 = vadd.f32 %v2412, %v2733
      %v2748 = vadd.f32 %v2413, %v2734
      %v2749 = vadd.f32 %v2414, %v2735
      %v2750 = vadd.f32 %v2415, %v2736
      %s2751 = scalar_lea.vmem %s355, 56
      %v2752 = vld [vmem:[%s2751] sm:$0x7f]
      %v2754 = vsel %vm376, %v2752, 0
      %2756 = vmatprep.subr.mxu0 0.0
      %2757 = vmatpush1.msra.mxu0 %v2754
      %2758 = vmatprep.subr.mxu0 0.0
      %2759 = vmatpush1.msra.mxu0 0.0
      %2760 = vmatprep.subr.mxu0 0.0
      %2761 = vmatpush1.msra.mxu0 0.0
      %2762 = vmatprep.subr.mxu0 0.0
      %2763 = vmatpush1.msra.mxu0 0.0
      %2764 = vmatprep.subr.mxu0 0.0
      %2765 = vmatpush1.msra.mxu0 0.0
      %2766 = vmatprep.subr.mxu0 0.0
      %2767 = vmatpush1.msra.mxu0 0.0
      %2768 = vmatprep.subr.mxu0 0.0
      %2769 = vmatpush1.msra.mxu0 0.0
      %2770 = vmatprep.subr.mxu0 0.0
      %2771 = vmatpush1.msra.mxu0 0.0
      %2772 = vmatprep.subr.mxu0 0.0
      %2773 = vmatpush1.msra.mxu0 0.0
      %2774 = vmatprep.subr.mxu0 0.0
      %2775 = vmatpush1.msra.mxu0 0.0
      %2776 = vmatprep.subr.mxu0 0.0
      %2777 = vmatpush1.msra.mxu0 0.0
      %2778 = vmatprep.subr.mxu0 0.0
      %2779 = vmatpush1.msra.mxu0 0.0
      %2780 = vmatprep.subr.mxu0 0.0
      %2781 = vmatpush1.msra.mxu0 0.0
      %2782 = vmatprep.subr.mxu0 0.0
      %2783 = vmatpush1.msra.mxu0 0.0
      %2784 = vmatprep.subr.mxu0 0.0
      %2785 = vmatpush1.msra.mxu0 0.0
      %2786 = vmatprep.subr.mxu0 0.0
      %2787 = vmatpush1.msra.mxu0 0.0
      %2788 = vmatprep.subr.mxu0 0.0
      %2789 = vmatpush1.msra.mxu0 0.0
      %2790 = vmatprep.subr.mxu0 0.0
      %2791 = vmatpush1.msra.mxu0 0.0
      %2792 = vmatprep.subr.mxu0 0.0
      %2793 = vmatpush1.msra.mxu0 0.0
      %2794 = vmatprep.subr.mxu0 0.0
      %2795 = vmatpush1.msra.mxu0 0.0
      %2796 = vmatprep.subr.mxu0 0.0
      %2797 = vmatpush1.msra.mxu0 0.0
      %2798 = vmatprep.subr.mxu0 0.0
      %2799 = vmatpush1.msra.mxu0 0.0
      %2800 = vmatprep.subr.mxu0 0.0
      %2801 = vmatpush1.msra.mxu0 0.0
      %2802 = vmatprep.subr.mxu0 0.0
      %2803 = vmatpush1.msra.mxu0 0.0
      %2804 = vmatprep.subr.mxu0 0.0
      %2805 = vmatpush1.msra.mxu0 0.0
      %2806 = vmatprep.subr.mxu0 0.0
      %2807 = vmatpush1.msra.mxu0 0.0
      %2808 = vmatprep.subr.mxu0 0.0
      %2809 = vmatpush1.msra.mxu0 0.0
      %2810 = vmatprep.subr.mxu0 0.0
      %2811 = vmatpush1.msra.mxu0 0.0
      %2812 = vmatprep.subr.mxu0 0.0
      %2813 = vmatpush1.msra.mxu0 0.0
      %2814 = vmatprep.subr.mxu0 0.0
      %2815 = vmatpush1.msra.mxu0 0.0
      %2816 = vmatprep.subr.mxu0 0.0
      %2817 = vmatpush1.msra.mxu0 0.0
      %2818 = vmatprep.subr.mxu0 0.0
      %2819 = vmatpush1.msra.mxu0 0.0
      %2820 = vmatprep.mubr.f32.mxu0 0.0
      %2821 = vmatmul.mubr.f32.gmra.mrb[0].mxu0 %v374
      %v2822 = vpop.f32.mrb[0].mxu0
      %v2823 = vadd.f32 %v370, %v2822
      %v2824 = vpop.f32.mrb[0].mxu0
      %2825 = vdwg.mxu0
      %v2826 = vmax.f32 %v2823, 0.0
      %2827 = vmatprep.subr.mxu0 0.0
      %2828 = vmatpush1.msra.mxu0 %v2826
      %2829 = vmatprep.subr.mxu0 0.0
      %2830 = vmatpush1.msra.mxu0 0.0
      %2831 = vmatprep.subr.mxu0 0.0
      %2832 = vmatpush1.msra.mxu0 0.0
      %2833 = vmatprep.subr.mxu0 0.0
      %2834 = vmatpush1.msra.mxu0 0.0
      %2835 = vmatprep.subr.mxu0 0.0
      %2836 = vmatpush1.msra.mxu0 0.0
      %2837 = vmatprep.subr.mxu0 0.0
      %2838 = vmatpush1.msra.mxu0 0.0
      %2839 = vmatprep.subr.mxu0 0.0
      %2840 = vmatpush1.msra.mxu0 0.0
      %2841 = vmatprep.subr.mxu0 0.0
      %2842 = vmatpush1.msra.mxu0 0.0
      %2843 = vmatprep.subr.mxu0 0.0
      %2844 = vmatpush1.msra.mxu0 0.0
      %2845 = vmatprep.subr.mxu0 0.0
      %2846 = vmatpush1.msra.mxu0 0.0
      %2847 = vmatprep.subr.mxu0 0.0
      %2848 = vmatpush1.msra.mxu0 0.0
      %2849 = vmatprep.subr.mxu0 0.0
      %2850 = vmatpush1.msra.mxu0 0.0
      %2851 = vmatprep.subr.mxu0 0.0
      %2852 = vmatpush1.msra.mxu0 0.0
      %2853 = vmatprep.subr.mxu0 0.0
      %2854 = vmatpush1.msra.mxu0 0.0
      %2855 = vmatprep.subr.mxu0 0.0
      %2856 = vmatpush1.msra.mxu0 0.0
      %2857 = vmatprep.subr.mxu0 0.0
      %2858 = vmatpush1.msra.mxu0 0.0
      %2859 = vmatprep.subr.mxu0 0.0
      %2860 = vmatpush1.msra.mxu0 0.0
      %2861 = vmatprep.subr.mxu0 0.0
      %2862 = vmatpush1.msra.mxu0 0.0
      %2863 = vmatprep.subr.mxu0 0.0
      %2864 = vmatpush1.msra.mxu0 0.0
      %2865 = vmatprep.subr.mxu0 0.0
      %2866 = vmatpush1.msra.mxu0 0.0
      %2867 = vmatprep.subr.mxu0 0.0
      %2868 = vmatpush1.msra.mxu0 0.0
      %2869 = vmatprep.subr.mxu0 0.0
      %2870 = vmatpush1.msra.mxu0 0.0
      %2871 = vmatprep.subr.mxu0 0.0
      %2872 = vmatpush1.msra.mxu0 0.0
      %2873 = vmatprep.subr.mxu0 0.0
      %2874 = vmatpush1.msra.mxu0 0.0
      %2875 = vmatprep.subr.mxu0 0.0
      %2876 = vmatpush1.msra.mxu0 0.0
      %2877 = vmatprep.subr.mxu0 0.0
      %2878 = vmatpush1.msra.mxu0 0.0
      %2879 = vmatprep.subr.mxu0 0.0
      %2880 = vmatpush1.msra.mxu0 0.0
      %2881 = vmatprep.subr.mxu0 0.0
      %2882 = vmatpush1.msra.mxu0 0.0
      %2883 = vmatprep.subr.mxu0 0.0
      %2884 = vmatpush1.msra.mxu0 0.0
      %2885 = vmatprep.subr.mxu0 0.0
      %2886 = vmatpush1.msra.mxu0 0.0
      %2887 = vmatprep.subr.mxu0 0.0
      %2888 = vmatpush1.msra.mxu0 0.0
      %2889 = vmatprep.subr.mxu0 0.0
      %2890 = vmatpush1.msra.mxu0 0.0
      %2891 = vmatprep.mubr.f32.mxu0 0.0
      %2892 = vmatmul.mubr.f32.gmra.mrb[0].mxu0 %v460
      %v2893 = vpop.f32.mrb[0].mxu0
      %v2894 = vadd.f32 %v456, %v2893
      %v2895 = vpop.f32.mrb[0].mxu0
      %2896 = vdwg.mxu0
      %v2897 = vmax.f32 %v2894, 0.0
      %2898 = vmatprep.subr.mxu0 0.0
      %2899 = vmatpush1.msra.mxu0 %v2897
      %2900 = vmatprep.subr.mxu0 0.0
      %2901 = vmatpush1.msra.mxu0 0.0
      %2902 = vmatprep.subr.mxu0 0.0
      %2903 = vmatpush1.msra.mxu0 0.0
      %2904 = vmatprep.subr.mxu0 0.0
      %2905 = vmatpush1.msra.mxu0 0.0
      %2906 = vmatprep.subr.mxu0 0.0
      %2907 = vmatpush1.msra.mxu0 0.0
      %2908 = vmatprep.subr.mxu0 0.0
      %2909 = vmatpush1.msra.mxu0 0.0
      %2910 = vmatprep.subr.mxu0 0.0
      %2911 = vmatpush1.msra.mxu0 0.0
      %2912 = vmatprep.subr.mxu0 0.0
      %2913 = vmatpush1.msra.mxu0 0.0
      %2914 = vmatprep.subr.mxu0 0.0
      %2915 = vmatpush1.msra.mxu0 0.0
      %2916 = vmatprep.subr.mxu0 0.0
      %2917 = vmatpush1.msra.mxu0 0.0
      %2918 = vmatprep.subr.mxu0 0.0
      %2919 = vmatpush1.msra.mxu0 0.0
      %2920 = vmatprep.subr.mxu0 0.0
      %2921 = vmatpush1.msra.mxu0 0.0
      %2922 = vmatprep.subr.mxu0 0.0
      %2923 = vmatpush1.msra.mxu0 0.0
      %2924 = vmatprep.subr.mxu0 0.0
      %2925 = vmatpush1.msra.mxu0 0.0
      %2926 = vmatprep.subr.mxu0 0.0
      %2927 = vmatpush1.msra.mxu0 0.0
      %2928 = vmatprep.subr.mxu0 0.0
      %2929 = vmatpush1.msra.mxu0 0.0
      %2930 = vmatprep.subr.mxu0 0.0
      %2931 = vmatpush1.msra.mxu0 0.0
      %2932 = vmatprep.subr.mxu0 0.0
      %2933 = vmatpush1.msra.mxu0 0.0
      %2934 = vmatprep.subr.mxu0 0.0
      %2935 = vmatpush1.msra.mxu0 0.0
      %2936 = vmatprep.subr.mxu0 0.0
      %2937 = vmatpush1.msra.mxu0 0.0
      %2938 = vmatprep.subr.mxu0 0.0
      %2939 = vmatpush1.msra.mxu0 0.0
      %2940 = vmatprep.subr.mxu0 0.0
      %2941 = vmatpush1.msra.mxu0 0.0
      %2942 = vmatprep.subr.mxu0 0.0
      %2943 = vmatpush1.msra.mxu0 0.0
      %2944 = vmatprep.subr.mxu0 0.0
      %2945 = vmatpush1.msra.mxu0 0.0
      %2946 = vmatprep.subr.mxu0 0.0
      %2947 = vmatpush1.msra.mxu0 0.0
      %2948 = vmatprep.subr.mxu0 0.0
      %2949 = vmatpush1.msra.mxu0 0.0
      %2950 = vmatprep.subr.mxu0 0.0
      %2951 = vmatpush1.msra.mxu0 0.0
      %2952 = vmatprep.subr.mxu0 0.0
      %2953 = vmatpush1.msra.mxu0 0.0
      %2954 = vmatprep.subr.mxu0 0.0
      %2955 = vmatpush1.msra.mxu0 0.0
      %2956 = vmatprep.subr.mxu0 0.0
      %2957 = vmatpush1.msra.mxu0 0.0
      %2958 = vmatprep.subr.mxu0 0.0
      %2959 = vmatpush1.msra.mxu0 0.0
      %2960 = vmatprep.subr.mxu0 0.0
      %2961 = vmatpush1.msra.mxu0 0.0
      %2962 = vmatprep.mubr.f32.mxu0 0.0
      %2963 = vmatmul.mubr.f32.gmra.mrb[0].mxu0 %v548
      %v2964 = vpop.f32.mrb[0].mxu0
      %v2965 = vadd.f32 %v540, %v2964
      %v2966 = vpop.f32.mrb[0].mxu0
      %2967 = vmatprep.mubr.f32.mxu0 0.0
      %2968 = vmatmul.mubr.f32.gmra.mrb[0].mxu0 %v551
      %v2969 = vpop.f32.mrb[0].mxu0
      %v2970 = vadd.f32 %v545, %v2969
      %v2971 = vpop.f32.mrb[0].mxu0
      %2972 = vdwg.mxu0
      %v2973 = vmax.f32 %v2965, 0.0
      %v2974 = vmax.f32 %v2970, 0.0
      %v2975 = vcombine.high %v2752, %v2752
      %v2977 = vunpack.c.l.s4 1966171168
      %v2978 = vunpack.c.0.s8 %v2977
      %v2979 = vlaneseq
      %v2980 = vshrl.u32 %v2979, 7
      %v2981 = vsub.s32 %v2978, %v2980
      %v2982 = vrot.slane %v2752, %v2981
      %v2984 = vunpack.c.l.s4 1966171168
      %v2985 = vunpack.c.0.s8 %v2984
      %v2986 = vlaneseq
      %v2987 = vshrl.u32 %v2986, 7
      %v2988 = vsub.s32 %v2985, %v2987
      %v2989 = vrot.slane %v2975, %v2988
      %v2990 = vcombine.high %v2982, %v2982
      %v2991 = vcombine.high %v2989, %v2989
      %v2993 = vunpack.c.l.s4 1966171168
      %v2994 = vunpack.c.0.s8 %v2993
      %v2995 = vlaneseq
      %v2996 = vshrl.u32 %v2995, 7
      %v2997 = vsub.s32 %v2994, %v2996
      %v2998 = vrot.slane %v2982, %v2997
      %v3000 = vunpack.c.l.s4 1966171168
      %v3001 = vunpack.c.0.s8 %v3000
      %v3002 = vlaneseq
      %v3003 = vshrl.u32 %v3002, 7
      %v3004 = vsub.s32 %v3001, %v3003
      %v3005 = vrot.slane %v2989, %v3004
      %v3007 = vunpack.c.l.s4 1966171168
      %v3008 = vunpack.c.0.s8 %v3007
      %v3009 = vlaneseq
      %v3010 = vshrl.u32 %v3009, 7
      %v3011 = vsub.s32 %v3008, %v3010
      %v3012 = vrot.slane %v2990, %v3011
      %v3014 = vunpack.c.l.s4 1966171168
      %v3015 = vunpack.c.0.s8 %v3014
      %v3016 = vlaneseq
      %v3017 = vshrl.u32 %v3016, 7
      %v3018 = vsub.s32 %v3015, %v3017
      %v3019 = vrot.slane %v2991, %v3018
      %v3020 = vcombine.high %v2998, %v2998
      %v3021 = vcombine.high %v3005, %v3005
      %v3022 = vcombine.high %v3012, %v3012
      %v3023 = vlaneseq
      %v3024 = vshrl.u32 %v3023, 7
      %v3025 = vsub.s32 0, %v3024
      %v3026 = vrot.slane %v2998, %v3025
      %v3027 = vlaneseq
      %v3028 = vshrl.u32 %v3027, 7
      %v3029 = vsub.s32 0, %v3028
      %v3030 = vrot.slane %v3012, %v3029
      %v3031 = vlaneseq
      %v3032 = vshrl.u32 %v3031, 7
      %v3033 = vsub.s32 0, %v3032
      %v3034 = vrot.slane %v3020, %v3033
      %v3035 = vlaneseq
      %v3036 = vshrl.u32 %v3035, 7
      %v3037 = vsub.s32 0, %v3036
      %v3038 = vrot.slane %v3022, %v3037
      %v3039 = vlaneseq
      %v3040 = vshrl.u32 %v3039, 7
      %v3041 = vsub.s32 0, %v3040
      %v3042 = vrot.slane %v3005, %v3041
      %v3043 = vlaneseq
      %v3044 = vshrl.u32 %v3043, 7
      %v3045 = vsub.s32 0, %v3044
      %v3046 = vrot.slane %v3019, %v3045
      %v3047 = vlaneseq
      %v3048 = vshrl.u32 %v3047, 7
      %v3049 = vsub.s32 0, %v3048
      %v3050 = vrot.slane %v3021, %v3049
      %v3058 = vmul.f32 %v3026, %v2973
      %v3059 = vmul.f32 %v3026, %v2974
      %v3060 = vmul.f32 %v3030, %v2973
      %v3061 = vmul.f32 %v3030, %v2974
      %v3062 = vmul.f32 %v3034, %v2973
      %v3063 = vmul.f32 %v3034, %v2974
      %v3064 = vmul.f32 %v3038, %v2973
      %v3065 = vmul.f32 %v3038, %v2974
      %v3066 = vmul.f32 %v3042, %v2973
      %v3067 = vmul.f32 %v3042, %v2974
      %v3068 = vmul.f32 %v3046, %v2973
      %v3069 = vmul.f32 %v3046, %v2974
      %v3070 = vmul.f32 %v3050, %v2973
      %v3071 = vmul.f32 %v3050, %v2974
      %v3072 = vadd.f32 %v2737, %v3058
      %v3073 = vadd.f32 %v2738, %v3059
      %v3074 = vadd.f32 %v2739, %v3060
      %v3075 = vadd.f32 %v2740, %v3061
      %v3076 = vadd.f32 %v2741, %v3062
      %v3077 = vadd.f32 %v2742, %v3063
      %v3078 = vadd.f32 %v2743, %v3064
      %v3079 = vadd.f32 %v2744, %v3065
      %v3080 = vadd.f32 %v2745, %v3066
      %v3081 = vadd.f32 %v2746, %v3067
      %v3082 = vadd.f32 %v2747, %v3068
      %v3083 = vadd.f32 %v2748, %v3069
      %v3084 = vadd.f32 %v2749, %v3070
      %v3085 = vadd.f32 %v2750, %v3071
      %v3086 = vld [vmem:[%s7] sm:$0xff]
      %v3087 = vld [vmem:[%s7 + $0x8] sm:$0xff]
      %v3088 = vld [vmem:[%s7 + $0x10] sm:$0xff]
      %v3089 = vld [vmem:[%s7 + $0x18] sm:$0xff]
      %v3090 = vld [vmem:[%s8] sm:$0xff]
      %v3091 = vld [vmem:[%s8 + $0x8] sm:$0xff]
      %v3092 = vld [vmem:[%s8 + $0x10] sm:$0xff]
      %v3093 = vld [vmem:[%s8 + $0x18] sm:$0xff]
      %3095 = vset.pattern.permute.xlu0 0
      %3096 = vperm.xlu0 %3095, %v3090
      %v3097 = vpop.permute.xlu0 %3096
      %3100 = vset.pattern.permute.xlu0 0
      %3101 = vperm.xlu0 %3100, %v3091
      %v3102 = vpop.permute.xlu0 %3101
      %3105 = vset.pattern.permute.xlu0 0
      %3106 = vperm.xlu0 %3105, %v3092
      %v3107 = vpop.permute.xlu0 %3106
      %3110 = vset.pattern.permute.xlu0 0
      %3111 = vperm.xlu0 %3110, %v3093
      %v3112 = vpop.permute.xlu0 %3111
      %vm3114 = vcmask 916480
      %v3116 = vsel %vm3114, %v3086, 0
      %v3119 = vsel %vm3114, %v3087, 0
      %v3122 = vsel %vm3114, %v3088, 0
      %v3125 = vsel %vm3114, %v3089, 0
      %3127 = vmatprep.subr.mxu0 0.0
      %3128 = vmatpush1.msra.mxu0 %v3072
      %3129 = vmatprep.subr.mxu0 0.0
      %3130 = vmatpush1.msra.mxu0 %v3073
      %3131 = vmatprep.subr.mxu0 0.0
      %3132 = vmatpush1.msra.mxu0 %v3074
      %3133 = vmatprep.subr.mxu0 0.0
      %3134 = vmatpush1.msra.mxu0 %v3075
      %3135 = vmatprep.subr.mxu0 0.0
      %3136 = vmatpush1.msra.mxu0 %v3076
      %3137 = vmatprep.subr.mxu0 0.0
      %3138 = vmatpush1.msra.mxu0 %v3077
      %3139 = vmatprep.subr.mxu0 0.0
      %3140 = vmatpush1.msra.mxu0 %v3078
      %3141 = vmatprep.subr.mxu0 0.0
      %3142 = vmatpush1.msra.mxu0 %v3079
      %3143 = vmatprep.subr.mxu0 0.0
      %3144 = vmatpush1.msra.mxu0 %v3080
      %3145 = vmatprep.subr.mxu0 0.0
      %3146 = vmatpush1.msra.mxu0 %v3081
      %3147 = vmatprep.subr.mxu0 0.0
      %3148 = vmatpush1.msra.mxu0 %v3082
      %3149 = vmatprep.subr.mxu0 0.0
      %3150 = vmatpush1.msra.mxu0 %v3083
      %3151 = vmatprep.subr.mxu0 0.0
      %3152 = vmatpush1.msra.mxu0 %v3084
      %3153 = vmatprep.subr.mxu0 0.0
      %3154 = vmatpush1.msra.mxu0 %v3085
      %3155 = vmatprep.subr.mxu0 0.0
      %3156 = vmatpush1.msra.mxu0 0.0
      %3157 = vmatprep.subr.mxu0 0.0
      %3158 = vmatpush1.msra.mxu0 0.0
      %3159 = vmatprep.subr.mxu0 0.0
      %3160 = vmatpush1.msra.mxu0 0.0
      %3161 = vmatprep.subr.mxu0 0.0
      %3162 = vmatpush1.msra.mxu0 0.0
      %3163 = vmatprep.subr.mxu0 0.0
      %3164 = vmatpush1.msra.mxu0 0.0
      %3165 = vmatprep.subr.mxu0 0.0
      %3166 = vmatpush1.msra.mxu0 0.0
      %3167 = vmatprep.subr.mxu0 0.0
      %3168 = vmatpush1.msra.mxu0 0.0
      %3169 = vmatprep.subr.mxu0 0.0
      %3170 = vmatpush1.msra.mxu0 0.0
      %3171 = vmatprep.subr.mxu0 0.0
      %3172 = vmatpush1.msra.mxu0 0.0
      %3173 = vmatprep.subr.mxu0 0.0
      %3174 = vmatpush1.msra.mxu0 0.0
      %3175 = vmatprep.subr.mxu0 0.0
      %3176 = vmatpush1.msra.mxu0 0.0
      %3177 = vmatprep.subr.mxu0 0.0
      %3178 = vmatpush1.msra.mxu0 0.0
      %3179 = vmatprep.subr.mxu0 0.0
      %3180 = vmatpush1.msra.mxu0 0.0
      %3181 = vmatprep.subr.mxu0 0.0
      %3182 = vmatpush1.msra.mxu0 0.0
      %3183 = vmatprep.subr.mxu0 0.0
      %3184 = vmatpush1.msra.mxu0 0.0
      %3185 = vmatprep.subr.mxu0 0.0
      %3186 = vmatpush1.msra.mxu0 0.0
      %3187 = vmatprep.subr.mxu0 0.0
      %3188 = vmatpush1.msra.mxu0 0.0
      %3189 = vmatprep.subr.mxu0 0.0
      %3190 = vmatpush1.msra.mxu0 0.0
      %3191 = vmatprep.mubr.f32.mxu0 0.0
      %3192 = vmatmul.mubr.f32.gmra.mrb[0].mxu0 %v3116
      %v3193 = vpop.f32.mrb[0].mxu0
      %v3194 = vadd.f32 %v3097, %v3193
      %v3195 = vpop.f32.mrb[0].mxu0
      %3196 = vmatprep.mubr.f32.mxu0 0.0
      %3197 = vmatmul.mubr.f32.gmra.mrb[0].mxu0 %v3119
      %v3198 = vpop.f32.mrb[0].mxu0
      %v3199 = vadd.f32 %v3102, %v3198
      %v3200 = vpop.f32.mrb[0].mxu0
      %3201 = vmatprep.mubr.f32.mxu0 0.0
      %3202 = vmatmul.mubr.f32.gmra.mrb[0].mxu0 %v3122
      %v3203 = vpop.f32.mrb[0].mxu0
      %v3204 = vadd.f32 %v3107, %v3203
      %v3205 = vpop.f32.mrb[0].mxu0
      %3206 = vmatprep.mubr.f32.mxu0 0.0
      %3207 = vmatmul.mubr.f32.gmra.mrb[0].mxu0 %v3125
      %v3208 = vpop.f32.mrb[0].mxu0
      %v3209 = vadd.f32 %v3112, %v3208
      %v3210 = vpop.f32.mrb[0].mxu0
      %3211 = vdwg.mxu0
      %vm3212 = vcmp.gt.f32.partialorder %v3194, 0.0
      %vm3213 = vcmp.gt.f32.partialorder %v3199, 0.0
      %vm3214 = vcmp.gt.f32.partialorder %v3204, 0.0
      %vm3215 = vcmp.gt.f32.partialorder %v3209, 0.0
      %v3216 = vmul.f32 %v3194, 0.1
      %v3217 = vmul.f32 %v3199, 0.1
      %v3218 = vmul.f32 %v3204, 0.1
      %v3219 = vmul.f32 %v3209, 0.1
      %v3220 = vsel %vm3212, %v3194, %v3216
      %v3221 = vsel %vm3213, %v3199, %v3217
      %v3222 = vsel %vm3214, %v3204, %v3218
      %v3223 = vsel %vm3215, %v3209, %v3219
      %vm3224 = vcmask 130048
      %3225 = vst.msk [vmem:[%s363] sm:$0xff] %vm3224, %v3220
      %3226 = vst.msk [vmem:[%s363 + $0x8] sm:$0xff] %vm3224, %v3221
      %3227 = vst.msk [vmem:[%s363 + $0x10] sm:$0xff] %vm3224, %v3222
      %3228 = vst.msk [vmem:[%s363 + $0x18] sm:$0xff] %vm3224, %v3223
      %p3229 = scmp.lt.s32.totalorder %s24, 1
      %s3230 = scalar_select %p3229, %s24, 1
      %p3231 = scmp.lt.s32.totalorder %s25, 0
      %s3232 = scalar_select %p3231, %s25, 0
      %s3233 = smul.addr %s3230, 4
      %s3234 = sadd.s32 %s3232, %s3233
      %s3235 = smul.addr %s3234, 8
      %s3236 = scalar_lea.vmem %s9, %s3235
      // Predicated region
      $region57: #{tpu_custom_call.1} parent=55 // pred_check
        %p3237 = pneg %p248
      $region58: #{tpu_custom_call.1} parent=55 // pred_check_branch
        %3239 = sbr.rel (%p3237) target = $region60
      $region59: #{tpu_custom_call.1} parent=55 // pred_region
        _
      $region60: #{tpu_custom_call.1} parent=55 // pred_fallthru
        _
    $region56: #{tpu_custom_call.1} parent=5 // pred_fallthru
      _
    %p3240 = scmp.le.s32.totalorder 2, %s15
    // Predicated region
    $region61: #{tpu_custom_call.1} parent=5 // pred_check
      %p3241 = pneg %p3240
    $region62: #{tpu_custom_call.1} parent=5 // pred_check_branch
      %3243 = sbr.rel (%p3241) target = $region64
    $region63: #{tpu_custom_call.1} parent=5 // pred_region
      %s3244 = ssub.s32 %s15, 2
      // Predicated region
      $region65: #{tpu_custom_call.1} parent=63 // pred_check
        %p3245 = pneg %p254
      $region66: #{tpu_custom_call.1} parent=63 // pred_check_branch
        %3247 = sbr.rel (%p3245) target = $region68
      $region67: #{tpu_custom_call.1} parent=63 // pred_region
        %p3248 = scmp.lt.s32.totalorder %s26, 1
        %s3249 = scalar_select %p3248, %s26, 1
        %p3250 = scmp.lt.s32.totalorder %s27, 0
        %s3251 = scalar_select %p3250, %s27, 0
        %s3252 = smul.addr %s3249, 4
        %s3253 = sadd.s32 %s3251, %s3252
        %s3254 = smul.addr %s3253, 8
        %s3255 = scalar_lea.vmem %s9, %s3254
      $region68: #{tpu_custom_call.1} parent=63 // pred_fallthru
        _
    $region64: #{tpu_custom_call.1} parent=5 // pred_fallthru
      _
  $region6: #{tpu_custom_call.1} parent=0 // loop_footer
    %s19 = sadd.s32 1, %s15
  $region7: #{tpu_custom_call.1} parent=0 // loop_footer_branch
    %14 = sbr.rel target = $region3
  $region8: #{tpu_custom_call.1} parent=0 // loop_exit
    _

</llo_original>
